<compile_context>
chip_gen: v7x
topology: tpu7x:2x2x1
jax: 0.10.0
libtpu: 0.0.40
codegen_flags: <defaults>
</compile_context>

<pallas_src>
import functools

import jax
import jax.numpy as jnp
from jax.experimental import pallas as pl
from jax.experimental.pallas import tpu as pltpu


_VMEM_LIMIT_BYTES = 64 * 1024 * 1024   # raise Mosaic scoped-VMEM budget (default 32 MiB)


# ---------------------------------------------------------------------------
# Fused per-layer kernel: (patches @ W) + b -> [instance norm] -> LeakyReLU
#   patches_ref : (1, P, KKC)  bf16   one sample's im2col patches
#   w_ref       : (KKC, Cout)  bf16
#   b_ref       : (1, Cout)    f32
#   o_ref       : (1, P, Cout) bf16
# Grid = (N,): one grid step == one batch sample, so the instance-norm reduction
# over the full spatial extent P happens inside a single block (matches PyTorch).
# ---------------------------------------------------------------------------
def _layer_kernel(patches_ref, w_ref, b_ref, o_ref, *, use_inorm, use_lrelu):
    x = patches_ref[0]                                        # (P, KKC) bf16
    y = jnp.dot(x, w_ref[...], preferred_element_type=jnp.float32)   # MXU bf16 -> f32 acc
    y = y + b_ref[...]                                        # (P, Cout) f32

    if use_inorm:
        # InstanceNorm2d defaults: affine=False, eps=1e-5, biased variance over spatial.
        # One pass: sum / sum-of-squares, var = E[y^2] - mean^2 (clamped), rsqrt on EUP.
        inv_p = jnp.float32(1.0 / y.shape[0])
        s1 = jnp.sum(y, axis=0, keepdims=True)                # (1, Cout)
        s2 = jnp.sum(y * y, axis=0, keepdims=True)            # (1, Cout)
        mean = s1 * inv_p
        var = jnp.maximum(s2 * inv_p - mean * mean, 0.0)
        y = (y - mean) * jax.lax.rsqrt(var + 1e-5)

    if use_lrelu:
        y = jnp.where(y >= 0, y, jnp.float32(0.2) * y)        # LeakyReLU(0.2)

    o_ref[0] = y.astype(o_ref.dtype)


# ---------------------------------------------------------------------------
# Final head kernel (Cout == 1), lane-dense output:
#   pt_ref : (1, KKC, P) bf16   transposed patches
#   w_ref  : (1, KKC)    bf16
#   b_ref  : (1, 1)      f32
#   o_ref  : (1, 1, P)   f32    (P on the lane axis -> unmasked stores)
# ---------------------------------------------------------------------------
def _final_kernel(pt_ref, w_ref, b_ref, o_ref):
    y = jnp.dot(w_ref[...], pt_ref[0], preferred_element_type=jnp.float32)  # (1, P)
    y = y + b_ref[...]
    o_ref[0] = jax.nn.sigmoid(y)


# ---------------------------------------------------------------------------
# im2col (wrapper side, emitted in bf16; contraction order = (kh, kw, cin))
# ---------------------------------------------------------------------------
def _im2col(x, K, stride, pad):
    N, H, W, C = x.shape
    xp = jnp.pad(x, ((0, 0), (pad, pad), (pad, pad), (0, 0)), mode="reflect")
    Ho = (H + 2 * pad - K) // stride + 1
    Wo = (W + 2 * pad - K) // stride + 1
    cols = []
    for kh in range(K):
        for kw in range(K):
            cols.append(xp[:, kh:kh + Ho * stride:stride,
                           kw:kw + Wo * stride:stride, :])     # (N, Ho, Wo, C)
    patches = jnp.stack(cols, axis=3).reshape(N, Ho * Wo, K * K * C)
    return patches, Ho, Wo


def _flatten_weight(w):
    # (Cout, Cin, 4, 4) OIHW -> (K*K*Cin, Cout) with (kh, kw, cin) ordering, bf16.
    Cout = w.shape[0]
    return jnp.transpose(w, (2, 3, 1, 0)).reshape(-1, Cout).astype(jnp.bfloat16)


def conv_layer_pallas(x, w, b, *, stride, use_inorm, use_lrelu):
    """Conv2d(k=4, pad=1 reflect) + optional InstanceNorm + optional LeakyReLU.

    x : (N, H, W, Cin) bf16 NHWC ; w : (Cout, Cin, 4, 4) f32 ; b : (Cout,) f32
    returns (N, Ho, Wo, Cout) bf16
    """
    N, H, W, Cin = x.shape
    Cout = w.shape[0]

    patches, Ho, Wo = _im2col(x, 4, stride, 1)                 # (N, P, KKC) bf16
    w_flat = _flatten_weight(w)                                # (KKC, Cout) bf16
    b2 = b.reshape(1, Cout).astype(jnp.float32)
    P, KKC = Ho * Wo, 16 * Cin

    kernel = functools.partial(_layer_kernel, use_inorm=use_inorm, use_lrelu=use_lrelu)

    out = pl.pallas_call(
        kernel,
        out_shape=jax.ShapeDtypeStruct((N, P, Cout), jnp.bfloat16),
        grid=(N,),
        in_specs=[
            pl.BlockSpec((1, P, KKC), lambda n: (n, 0, 0)),
            # weight / bias index_maps are constant across the grid -> Pallas does
            # not re-DMA them between grid steps.
            pl.BlockSpec((KKC, Cout), lambda n: (0, 0)),
            pl.BlockSpec((1, Cout), lambda n: (0, 0)),
        ],
        out_specs=pl.BlockSpec((1, P, Cout), lambda n: (n, 0, 0)),
        compiler_params=pltpu.CompilerParams(
            dimension_semantics=("parallel",),
            vmem_limit_bytes=_VMEM_LIMIT_BYTES),
    )(patches, w_flat, b2)

    return out.reshape(N, Ho, Wo, Cout)


def final_conv_sigmoid_pallas(x, w, b):
    """Final Conv2d(Cin -> 1, k=4, s=1, pad=1 reflect) + sigmoid, lane-dense output.

    x : (N, H, W, Cin) bf16 ; w : (1, Cin, 4, 4) f32 ; b : (1,) f32
    returns (N, 1, Ho, Wo) f32   (already NCHW)
    """
    N, H, W, Cin = x.shape
    patches, Ho, Wo = _im2col(x, 4, 1, 1)                      # (N, P, KKC) bf16
    patches_t = jnp.transpose(patches, (0, 2, 1))              # (N, KKC, P)
    w_row = _flatten_weight(w).T                               # (1, KKC) bf16
    b2 = b.reshape(1, 1).astype(jnp.float32)
    P, KKC = Ho * Wo, 16 * Cin

    out = pl.pallas_call(
        _final_kernel,
        out_shape=jax.ShapeDtypeStruct((N, 1, P), jnp.float32),
        grid=(N,),
        in_specs=[
            pl.BlockSpec((1, KKC, P), lambda n: (n, 0, 0)),
            pl.BlockSpec((1, KKC), lambda n: (0, 0)),
            pl.BlockSpec((1, 1), lambda n: (0, 0)),
        ],
        out_specs=pl.BlockSpec((1, 1, P), lambda n: (n, 0, 0)),
        compiler_params=pltpu.CompilerParams(
            dimension_semantics=("parallel",),
            vmem_limit_bytes=_VMEM_LIMIT_BYTES),
    )(patches_t, w_row, b2)

    return out.reshape(N, 1, Ho, Wo)


# ---------------------------------------------------------------------------
# Discriminator: parameter init + forward
# ---------------------------------------------------------------------------
def init_discriminator_params(key, input_channels, features):
    """Deterministic synthetic parameters matching the module's shapes (f32)."""
    params = []
    c_in = input_channels
    for c_out in features + [1]:
        key, kw, kb = jax.random.split(key, 3)
        w = 0.05 * jax.random.normal(kw, (c_out, c_in, 4, 4), jnp.float32)
        b = 0.05 * jax.random.normal(kb, (c_out,), jnp.float32)
        params.append((w, b))
        c_in = c_out
    return params


def discriminator_forward(x_nchw, params, features):
    """Forward pass. x_nchw: (N, C, H, W) f32 -> (N, 1, Ho, Wo) f32."""
    # NHWC + bf16 activations (halve inter-layer HBM traffic; MXU-native dtype).
    x = jnp.transpose(x_nchw, (0, 2, 3, 1)).astype(jnp.bfloat16)

    # initial: conv(stride=2) + LeakyReLU (no instance norm)
    w, b = params[0]
    x = conv_layer_pallas(x, w, b, stride=2, use_inorm=False, use_lrelu=True)

    # Blocks: conv + InstanceNorm + LeakyReLU
    for i in range(len(features) - 1):
        stride = 1 if features[i + 1] == features[-1] else 2
        w, b = params[i + 1]
        x = conv_layer_pallas(x, w, b, stride=stride, use_inorm=True, use_lrelu=True)

    # final conv (stride=1) + sigmoid, emits NCHW directly
    w, b = params[-1]
    return final_conv_sigmoid_pallas(x, w, b)


# ---------------------------------------------------------------------------
# Pure-JAX reference (lax conv).  bf16_ops=True mirrors the kernel's bf16 MXU
# operands (tight check); bf16_ops=False is the exact f32 PyTorch semantics
# (loose check, bf16 rounding accounted for in the tolerance).
# ---------------------------------------------------------------------------
def _reference_forward(x_nchw, params, features, *, bf16_ops):
    cast = (lambda a: a.astype(jnp.bfloat16)) if bf16_ops else (lambda a: a.astype(jnp.float32))

    def conv(x, w, b, stride, inorm, lrelu, sig):
        xp = jnp.pad(cast(x), ((0, 0), (0, 0), (1, 1), (1, 1)), mode="reflect")
        y = jax.lax.conv_general_dilated(
            xp, cast(w), window_strides=(stride, stride), padding="VALID",
            dimension_numbers=("NCHW", "OIHW", "NCHW"),
            preferred_element_type=jnp.float32)
        y = y + b.reshape(1, -1, 1, 1)
        if inorm:
            m = jnp.mean(y, axis=(2, 3), keepdims=True)
            v = jnp.mean((y - m) ** 2, axis=(2, 3), keepdims=True)
            y = (y - m) * jax.lax.rsqrt(v + 1e-5)
        if lrelu:
            y = jnp.where(y >= 0, y, 0.2 * y)
        if sig:
            y = jax.nn.sigmoid(y)
        return y

    x = x_nchw
    w, b = params[0]
    x = conv(x, w, b, 2, False, True, False)
    for i in range(len(features) - 1):
        stride = 1 if features[i + 1] == features[-1] else 2
        w, b = params[i + 1]
        x = conv(x, w, b, stride, True, True, False)
    w, b = params[-1]
    return conv(x, w, b, 1, False, False, True)


if __name__ == "__main__":
    key = jax.random.PRNGKey(0)

    # Small shapes consistent with the module (parametric channels/features).
    batch, input_channels, spatial = 2, 3, 32
    features = [8, 16, 32, 64]   # small analogue of [64, 128, 256, 518]

    k_x, k_p = jax.random.split(key)
    x = jax.random.normal(k_x, (batch, input_channels, spatial, spatial), jnp.float32)
    params = init_discriminator_params(k_p, input_channels, features)

    fwd = jax.jit(functools.partial(discriminator_forward, features=features))
    out = jax.block_until_ready(fwd(x, params))

    ref_bf16 = _reference_forward(x, params, features, bf16_ops=True)   # matched-precision
    ref_f32 = _reference_forward(x, params, features, bf16_ops=False)   # exact f32 semantics

    assert out.shape == ref_f32.shape, (out.shape, ref_f32.shape)
    assert bool(jnp.all(jnp.isfinite(out)))
    err_bf16 = float(jnp.max(jnp.abs(out - ref_bf16)))
    err_f32 = float(jnp.max(jnp.abs(out - ref_f32)))
    assert jnp.allclose(out, ref_bf16, rtol=2e-2, atol=2e-2), err_bf16
    # bf16 MXU operands widen the tolerance vs. the pure-f32 reference (sigmoid output in [0,1]).
    assert jnp.allclose(out, ref_f32, rtol=5e-2, atol=5e-2), err_f32

    print("KERNEL_OK")
</pallas_src>

<mosaic_0001>
module attributes {stable_mosaic.version = 11 : i64} {
  func.func @_layer_kernel(%arg0: i32, %arg1: memref<1x256x48xbf16, #tpu.memory_space<vmem>>, %arg2: memref<48x8xbf16, #tpu.memory_space<vmem>>, %arg3: memref<1x8xf32, #tpu.memory_space<vmem>>, %arg4: memref<1x256x8xbf16, #tpu.memory_space<vmem>>) attributes {dimension_semantics = [#tpu.dimension_semantics<parallel>], iteration_bounds = array<i64: 2>, scalar_prefetch = 0 : i64, scratch_operands = 0 : i64, tpu.core_type = #tpu.core_type<tc>, window_params = [{transform_indices = @transform_0, window_bounds = array<i64: 1, 256, 48>}, {pipeline_mode = #tpu.pipeline_mode<synchronous>, transform_indices = @transform_1, window_bounds = array<i64: 48, 8>}, {pipeline_mode = #tpu.pipeline_mode<synchronous>, transform_indices = @transform_2, window_bounds = array<i64: 1, 8>}, {transform_indices = @transform_3, window_bounds = array<i64: 1, 256, 8>}]} {
    %c0 = arith.constant 0 : index
    %c0_0 = arith.constant 0 : index
    %c0_1 = arith.constant 0 : index
    %0 = vector.load %arg1[%c0, %c0_0, %c0_1] : memref<1x256x48xbf16, #tpu.memory_space<vmem>>, vector<1x256x48xbf16>
    %1 = vector.shape_cast %0 : vector<1x256x48xbf16> to vector<256x48xbf16>
    %c0_2 = arith.constant 0 : index
    %c0_3 = arith.constant 0 : index
    %2 = vector.load %arg2[%c0_2, %c0_3] : memref<48x8xbf16, #tpu.memory_space<vmem>>, vector<48x8xbf16>
    %cst = arith.constant dense<0.000000e+00> : vector<256x8xf32>
    %3 = tpu.matmul %1, %2, %cst {dimension_numbers = #tpu.dot_dimension_numbers<[1], [0], [0], [1], [0, 0, 1, 1], [], []>} : vector<256x48xbf16>, vector<48x8xbf16>, vector<256x8xf32> -> vector<256x8xf32>
    %c0_4 = arith.constant 0 : index
    %c0_5 = arith.constant 0 : index
    %4 = vector.load %arg3[%c0_4, %c0_5] : memref<1x8xf32, #tpu.memory_space<vmem>>, vector<1x8xf32>
    %5 = vector.broadcast %4 : vector<1x8xf32> to vector<256x8xf32>
    %6 = arith.addf %3, %5 : vector<256x8xf32>
    %cst_6 = arith.constant 0.000000e+00 : f32
    %7 = vector.broadcast %cst_6 : f32 to vector<256x8xf32>
    %8 = arith.cmpf oge, %6, %7 : vector<256x8xf32>
    %cst_7 = arith.constant 2.000000e-01 : f32
    %9 = vector.broadcast %cst_7 : f32 to vector<256x8xf32>
    %10 = arith.mulf %9, %6 : vector<256x8xf32>
    %11 = arith.select %8, %6, %10 : vector<256x8xi1>, vector<256x8xf32>
    %12 = arith.truncf %11 : vector<256x8xf32> to vector<256x8xbf16>
    %c0_8 = arith.constant 0 : index
    %c0_9 = arith.constant 0 : index
    %c0_10 = arith.constant 0 : index
    %13 = vector.load %arg4[%c0_8, %c0_9, %c0_10] : memref<1x256x8xbf16, #tpu.memory_space<vmem>>, vector<1x256x8xbf16>
    %14 = vector.shape_cast %13 : vector<1x256x8xbf16> to vector<256x8xbf16>
    %15 = vector.shape_cast %12 : vector<256x8xbf16> to vector<1x256x8xbf16>
    tpu.vector_store %arg4[%c0_8, %c0_9, %c0_10], %15 {strides = array<i32>} : memref<1x256x8xbf16, #tpu.memory_space<vmem>>, vector<1x256x8xbf16>,
    return
  }
  func.func @transform_0(%arg0: i32) -> (i32, i32, i32) {
    %c0_i32 = arith.constant 0 : i32
    %c0_i32_0 = arith.constant 0 : i32
    %c0_i32_1 = arith.constant 0 : i32
    return %arg0, %c0_i32, %c0_i32_0 : i32, i32, i32
  }
  func.func @transform_1(%arg0: i32) -> (i32, i32) {
    %c0_i32 = arith.constant 0 : i32
    %c0_i32_0 = arith.constant 0 : i32
    %c0_i32_1 = arith.constant 0 : i32
    return %c0_i32, %c0_i32_0 : i32, i32
  }
  func.func @transform_2(%arg0: i32) -> (i32, i32) {
    %c0_i32 = arith.constant 0 : i32
    %c0_i32_0 = arith.constant 0 : i32
    %c0_i32_1 = arith.constant 0 : i32
    return %c0_i32, %c0_i32_0 : i32, i32
  }
  func.func @transform_3(%arg0: i32) -> (i32, i32, i32) {
    %c0_i32 = arith.constant 0 : i32
    %c0_i32_0 = arith.constant 0 : i32
    %c0_i32_1 = arith.constant 0 : i32
    return %arg0, %c0_i32, %c0_i32_0 : i32, i32, i32
  }
}

module attributes {stable_mosaic.version = 11 : i64} {
  func.func @_layer_kernel(%arg0: i32, %arg1: memref<1x64x128xbf16, #tpu.memory_space<vmem>>, %arg2: memref<128x16xbf16, #tpu.memory_space<vmem>>, %arg3: memref<1x16xf32, #tpu.memory_space<vmem>>, %arg4: memref<1x64x16xbf16, #tpu.memory_space<vmem>>) attributes {dimension_semantics = [#tpu.dimension_semantics<parallel>], iteration_bounds = array<i64: 2>, scalar_prefetch = 0 : i64, scratch_operands = 0 : i64, tpu.core_type = #tpu.core_type<tc>, window_params = [{transform_indices = @transform_0, window_bounds = array<i64: 1, 64, 128>}, {pipeline_mode = #tpu.pipeline_mode<synchronous>, transform_indices = @transform_1, window_bounds = array<i64: 128, 16>}, {pipeline_mode = #tpu.pipeline_mode<synchronous>, transform_indices = @transform_2, window_bounds = array<i64: 1, 16>}, {transform_indices = @transform_3, window_bounds = array<i64: 1, 64, 16>}]} {
    %c0 = arith.constant 0 : index
    %c0_0 = arith.constant 0 : index
    %c0_1 = arith.constant 0 : index
    %0 = vector.load %arg1[%c0, %c0_0, %c0_1] : memref<1x64x128xbf16, #tpu.memory_space<vmem>>, vector<1x64x128xbf16>
    %1 = vector.shape_cast %0 : vector<1x64x128xbf16> to vector<64x128xbf16>
    %c0_2 = arith.constant 0 : index
    %c0_3 = arith.constant 0 : index
    %2 = vector.load %arg2[%c0_2, %c0_3] : memref<128x16xbf16, #tpu.memory_space<vmem>>, vector<128x16xbf16>
    %cst = arith.constant dense<0.000000e+00> : vector<64x16xf32>
    %3 = tpu.matmul %1, %2, %cst {dimension_numbers = #tpu.dot_dimension_numbers<[1], [0], [0], [1], [0, 0, 1, 1], [], []>} : vector<64x128xbf16>, vector<128x16xbf16>, vector<64x16xf32> -> vector<64x16xf32>
    %c0_4 = arith.constant 0 : index
    %c0_5 = arith.constant 0 : index
    %4 = vector.load %arg3[%c0_4, %c0_5] : memref<1x16xf32, #tpu.memory_space<vmem>>, vector<1x16xf32>
    %5 = vector.broadcast %4 : vector<1x16xf32> to vector<64x16xf32>
    %6 = arith.addf %3, %5 : vector<64x16xf32>
    %cst_6 = arith.constant dense<0.000000e+00> : vector<16xf32>
    %7 = vector.multi_reduction <add>, %6, %cst_6 [0] : vector<64x16xf32> to vector<16xf32>
    %8 = vector.shape_cast %7 : vector<16xf32> to vector<1x16xf32>
    %9 = arith.mulf %6, %6 : vector<64x16xf32>
    %cst_7 = arith.constant dense<0.000000e+00> : vector<16xf32>
    %10 = vector.multi_reduction <add>, %9, %cst_7 [0] : vector<64x16xf32> to vector<16xf32>
    %11 = vector.shape_cast %10 : vector<16xf32> to vector<1x16xf32>
    %cst_8 = arith.constant 1.562500e-02 : f32
    %12 = vector.broadcast %cst_8 : f32 to vector<1x16xf32>
    %13 = arith.mulf %8, %12 : vector<1x16xf32>
    %cst_9 = arith.constant 1.562500e-02 : f32
    %14 = vector.broadcast %cst_9 : f32 to vector<1x16xf32>
    %15 = arith.mulf %11, %14 : vector<1x16xf32>
    %16 = arith.mulf %13, %13 : vector<1x16xf32>
    %17 = arith.subf %15, %16 : vector<1x16xf32>
    %cst_10 = arith.constant 0.000000e+00 : f32
    %18 = vector.broadcast %cst_10 : f32 to vector<1x16xf32>
    %19 = arith.maximumf %17, %18 : vector<1x16xf32>
    %20 = vector.broadcast %13 : vector<1x16xf32> to vector<64x16xf32>
    %21 = arith.subf %6, %20 : vector<64x16xf32>
    %cst_11 = arith.constant 9.99999974E-6 : f32
    %22 = vector.broadcast %cst_11 : f32 to vector<1x16xf32>
    %23 = arith.addf %19, %22 : vector<1x16xf32>
    %24 = math.rsqrt %23 : vector<1x16xf32>
    %25 = vector.broadcast %24 : vector<1x16xf32> to vector<64x16xf32>
    %26 = arith.mulf %21, %25 : vector<64x16xf32>
    %cst_12 = arith.constant 0.000000e+00 : f32
    %27 = vector.broadcast %cst_12 : f32 to vector<64x16xf32>
    %28 = arith.cmpf oge, %26, %27 : vector<64x16xf32>
    %cst_13 = arith.constant 2.000000e-01 : f32
    %29 = vector.broadcast %cst_13 : f32 to vector<64x16xf32>
    %30 = arith.mulf %29, %26 : vector<64x16xf32>
    %31 = arith.select %28, %26, %30 : vector<64x16xi1>, vector<64x16xf32>
    %32 = arith.truncf %31 : vector<64x16xf32> to vector<64x16xbf16>
    %c0_14 = arith.constant 0 : index
    %c0_15 = arith.constant 0 : index
    %c0_16 = arith.constant 0 : index
    %33 = vector.load %arg4[%c0_14, %c0_15, %c0_16] : memref<1x64x16xbf16, #tpu.memory_space<vmem>>, vector<1x64x16xbf16>
    %34 = vector.shape_cast %33 : vector<1x64x16xbf16> to vector<64x16xbf16>
    %35 = vector.shape_cast %32 : vector<64x16xbf16> to vector<1x64x16xbf16>
    tpu.vector_store %arg4[%c0_14, %c0_15, %c0_16], %35 {strides = array<i32>} : memref<1x64x16xbf16, #tpu.memory_space<vmem>>, vector<1x64x16xbf16>,
    return
  }
  func.func @transform_0(%arg0: i32) -> (i32, i32, i32) {
    %c0_i32 = arith.constant 0 : i32
    %c0_i32_0 = arith.constant 0 : i32
    %c0_i32_1 = arith.constant 0 : i32
    return %arg0, %c0_i32, %c0_i32_0 : i32, i32, i32
  }
  func.func @transform_1(%arg0: i32) -> (i32, i32) {
    %c0_i32 = arith.constant 0 : i32
    %c0_i32_0 = arith.constant 0 : i32
    %c0_i32_1 = arith.constant 0 : i32
    return %c0_i32, %c0_i32_0 : i32, i32
  }
  func.func @transform_2(%arg0: i32) -> (i32, i32) {
    %c0_i32 = arith.constant 0 : i32
    %c0_i32_0 = arith.constant 0 : i32
    %c0_i32_1 = arith.constant 0 : i32
    return %c0_i32, %c0_i32_0 : i32, i32
  }
  func.func @transform_3(%arg0: i32) -> (i32, i32, i32) {
    %c0_i32 = arith.constant 0 : i32
    %c0_i32_0 = arith.constant 0 : i32
    %c0_i32_1 = arith.constant 0 : i32
    return %arg0, %c0_i32, %c0_i32_0 : i32, i32, i32
  }
}

module attributes {stable_mosaic.version = 11 : i64} {
  func.func @_layer_kernel(%arg0: i32, %arg1: memref<1x16x256xbf16, #tpu.memory_space<vmem>>, %arg2: memref<256x32xbf16, #tpu.memory_space<vmem>>, %arg3: memref<1x32xf32, #tpu.memory_space<vmem>>, %arg4: memref<1x16x32xbf16, #tpu.memory_space<vmem>>) attributes {dimension_semantics = [#tpu.dimension_semantics<parallel>], iteration_bounds = array<i64: 2>, scalar_prefetch = 0 : i64, scratch_operands = 0 : i64, tpu.core_type = #tpu.core_type<tc>, window_params = [{transform_indices = @transform_0, window_bounds = array<i64: 1, 16, 256>}, {pipeline_mode = #tpu.pipeline_mode<synchronous>, transform_indices = @transform_1, window_bounds = array<i64: 256, 32>}, {pipeline_mode = #tpu.pipeline_mode<synchronous>, transform_indices = @transform_2, window_bounds = array<i64: 1, 32>}, {transform_indices = @transform_3, window_bounds = array<i64: 1, 16, 32>}]} {
    %c0 = arith.constant 0 : index
    %c0_0 = arith.constant 0 : index
    %c0_1 = arith.constant 0 : index
    %0 = vector.load %arg1[%c0, %c0_0, %c0_1] : memref<1x16x256xbf16, #tpu.memory_space<vmem>>, vector<1x16x256xbf16>
    %1 = vector.shape_cast %0 : vector<1x16x256xbf16> to vector<16x256xbf16>
    %c0_2 = arith.constant 0 : index
    %c0_3 = arith.constant 0 : index
    %2 = vector.load %arg2[%c0_2, %c0_3] : memref<256x32xbf16, #tpu.memory_space<vmem>>, vector<256x32xbf16>
    %cst = arith.constant dense<0.000000e+00> : vector<16x32xf32>
    %3 = tpu.matmul %1, %2, %cst {dimension_numbers = #tpu.dot_dimension_numbers<[1], [0], [0], [1], [0, 0, 1, 1], [], []>} : vector<16x256xbf16>, vector<256x32xbf16>, vector<16x32xf32> -> vector<16x32xf32>
    %c0_4 = arith.constant 0 : index
    %c0_5 = arith.constant 0 : index
    %4 = vector.load %arg3[%c0_4, %c0_5] : memref<1x32xf32, #tpu.memory_space<vmem>>, vector<1x32xf32>
    %5 = vector.broadcast %4 : vector<1x32xf32> to vector<16x32xf32>
    %6 = arith.addf %3, %5 : vector<16x32xf32>
    %cst_6 = arith.constant dense<0.000000e+00> : vector<32xf32>
    %7 = vector.multi_reduction <add>, %6, %cst_6 [0] : vector<16x32xf32> to vector<32xf32>
    %8 = vector.shape_cast %7 : vector<32xf32> to vector<1x32xf32>
    %9 = arith.mulf %6, %6 : vector<16x32xf32>
    %cst_7 = arith.constant dense<0.000000e+00> : vector<32xf32>
    %10 = vector.multi_reduction <add>, %9, %cst_7 [0] : vector<16x32xf32> to vector<32xf32>
    %11 = vector.shape_cast %10 : vector<32xf32> to vector<1x32xf32>
    %cst_8 = arith.constant 6.250000e-02 : f32
    %12 = vector.broadcast %cst_8 : f32 to vector<1x32xf32>
    %13 = arith.mulf %8, %12 : vector<1x32xf32>
    %cst_9 = arith.constant 6.250000e-02 : f32
    %14 = vector.broadcast %cst_9 : f32 to vector<1x32xf32>
    %15 = arith.mulf %11, %14 : vector<1x32xf32>
    %16 = arith.mulf %13, %13 : vector<1x32xf32>
    %17 = arith.subf %15, %16 : vector<1x32xf32>
    %cst_10 = arith.constant 0.000000e+00 : f32
    %18 = vector.broadcast %cst_10 : f32 to vector<1x32xf32>
    %19 = arith.maximumf %17, %18 : vector<1x32xf32>
    %20 = vector.broadcast %13 : vector<1x32xf32> to vector<16x32xf32>
    %21 = arith.subf %6, %20 : vector<16x32xf32>
    %cst_11 = arith.constant 9.99999974E-6 : f32
    %22 = vector.broadcast %cst_11 : f32 to vector<1x32xf32>
    %23 = arith.addf %19, %22 : vector<1x32xf32>
    %24 = math.rsqrt %23 : vector<1x32xf32>
    %25 = vector.broadcast %24 : vector<1x32xf32> to vector<16x32xf32>
    %26 = arith.mulf %21, %25 : vector<16x32xf32>
    %cst_12 = arith.constant 0.000000e+00 : f32
    %27 = vector.broadcast %cst_12 : f32 to vector<16x32xf32>
    %28 = arith.cmpf oge, %26, %27 : vector<16x32xf32>
    %cst_13 = arith.constant 2.000000e-01 : f32
    %29 = vector.broadcast %cst_13 : f32 to vector<16x32xf32>
    %30 = arith.mulf %29, %26 : vector<16x32xf32>
    %31 = arith.select %28, %26, %30 : vector<16x32xi1>, vector<16x32xf32>
    %32 = arith.truncf %31 : vector<16x32xf32> to vector<16x32xbf16>
    %c0_14 = arith.constant 0 : index
    %c0_15 = arith.constant 0 : index
    %c0_16 = arith.constant 0 : index
    %33 = vector.load %arg4[%c0_14, %c0_15, %c0_16] : memref<1x16x32xbf16, #tpu.memory_space<vmem>>, vector<1x16x32xbf16>
    %34 = vector.shape_cast %33 : vector<1x16x32xbf16> to vector<16x32xbf16>
    %35 = vector.shape_cast %32 : vector<16x32xbf16> to vector<1x16x32xbf16>
    tpu.vector_store %arg4[%c0_14, %c0_15, %c0_16], %35 {strides = array<i32>} : memref<1x16x32xbf16, #tpu.memory_space<vmem>>, vector<1x16x32xbf16>,
    return
  }
  func.func @transform_0(%arg0: i32) -> (i32, i32, i32) {
    %c0_i32 = arith.constant 0 : i32
    %c0_i32_0 = arith.constant 0 : i32
    %c0_i32_1 = arith.constant 0 : i32
    return %arg0, %c0_i32, %c0_i32_0 : i32, i32, i32
  }
  func.func @transform_1(%arg0: i32) -> (i32, i32) {
    %c0_i32 = arith.constant 0 : i32
    %c0_i32_0 = arith.constant 0 : i32
    %c0_i32_1 = arith.constant 0 : i32
    return %c0_i32, %c0_i32_0 : i32, i32
  }
  func.func @transform_2(%arg0: i32) -> (i32, i32) {
    %c0_i32 = arith.constant 0 : i32
    %c0_i32_0 = arith.constant 0 : i32
    %c0_i32_1 = arith.constant 0 : i32
    return %c0_i32, %c0_i32_0 : i32, i32
  }
  func.func @transform_3(%arg0: i32) -> (i32, i32, i32) {
    %c0_i32 = arith.constant 0 : i32
    %c0_i32_0 = arith.constant 0 : i32
    %c0_i32_1 = arith.constant 0 : i32
    return %arg0, %c0_i32, %c0_i32_0 : i32, i32, i32
  }
}

module attributes {stable_mosaic.version = 11 : i64} {
  func.func @_layer_kernel(%arg0: i32, %arg1: memref<1x9x512xbf16, #tpu.memory_space<vmem>>, %arg2: memref<512x64xbf16, #tpu.memory_space<vmem>>, %arg3: memref<1x64xf32, #tpu.memory_space<vmem>>, %arg4: memref<1x9x64xbf16, #tpu.memory_space<vmem>>) attributes {dimension_semantics = [#tpu.dimension_semantics<parallel>], iteration_bounds = array<i64: 2>, scalar_prefetch = 0 : i64, scratch_operands = 0 : i64, tpu.core_type = #tpu.core_type<tc>, window_params = [{transform_indices = @transform_0, window_bounds = array<i64: 1, 9, 512>}, {pipeline_mode = #tpu.pipeline_mode<synchronous>, transform_indices = @transform_1, window_bounds = array<i64: 512, 64>}, {pipeline_mode = #tpu.pipeline_mode<synchronous>, transform_indices = @transform_2, window_bounds = array<i64: 1, 64>}, {transform_indices = @transform_3, window_bounds = array<i64: 1, 9, 64>}]} {
    %c0 = arith.constant 0 : index
    %c0_0 = arith.constant 0 : index
    %c0_1 = arith.constant 0 : index
    %0 = vector.load %arg1[%c0, %c0_0, %c0_1] : memref<1x9x512xbf16, #tpu.memory_space<vmem>>, vector<1x9x512xbf16>
    %1 = vector.shape_cast %0 : vector<1x9x512xbf16> to vector<9x512xbf16>
    %c0_2 = arith.constant 0 : index
    %c0_3 = arith.constant 0 : index
    %2 = vector.load %arg2[%c0_2, %c0_3] : memref<512x64xbf16, #tpu.memory_space<vmem>>, vector<512x64xbf16>
    %cst = arith.constant dense<0.000000e+00> : vector<9x64xf32>
    %3 = tpu.matmul %1, %2, %cst {dimension_numbers = #tpu.dot_dimension_numbers<[1], [0], [0], [1], [0, 0, 1, 1], [], []>} : vector<9x512xbf16>, vector<512x64xbf16>, vector<9x64xf32> -> vector<9x64xf32>
    %c0_4 = arith.constant 0 : index
    %c0_5 = arith.constant 0 : index
    %4 = vector.load %arg3[%c0_4, %c0_5] : memref<1x64xf32, #tpu.memory_space<vmem>>, vector<1x64xf32>
    %5 = vector.broadcast %4 : vector<1x64xf32> to vector<9x64xf32>
    %6 = arith.addf %3, %5 : vector<9x64xf32>
    %cst_6 = arith.constant dense<0.000000e+00> : vector<64xf32>
    %7 = vector.multi_reduction <add>, %6, %cst_6 [0] : vector<9x64xf32> to vector<64xf32>
    %8 = vector.shape_cast %7 : vector<64xf32> to vector<1x64xf32>
    %9 = arith.mulf %6, %6 : vector<9x64xf32>
    %cst_7 = arith.constant dense<0.000000e+00> : vector<64xf32>
    %10 = vector.multi_reduction <add>, %9, %cst_7 [0] : vector<9x64xf32> to vector<64xf32>
    %11 = vector.shape_cast %10 : vector<64xf32> to vector<1x64xf32>
    %cst_8 = arith.constant 0.111111112 : f32
    %12 = vector.broadcast %cst_8 : f32 to vector<1x64xf32>
    %13 = arith.mulf %8, %12 : vector<1x64xf32>
    %cst_9 = arith.constant 0.111111112 : f32
    %14 = vector.broadcast %cst_9 : f32 to vector<1x64xf32>
    %15 = arith.mulf %11, %14 : vector<1x64xf32>
    %16 = arith.mulf %13, %13 : vector<1x64xf32>
    %17 = arith.subf %15, %16 : vector<1x64xf32>
    %cst_10 = arith.constant 0.000000e+00 : f32
    %18 = vector.broadcast %cst_10 : f32 to vector<1x64xf32>
    %19 = arith.maximumf %17, %18 : vector<1x64xf32>
    %20 = vector.broadcast %13 : vector<1x64xf32> to vector<9x64xf32>
    %21 = arith.subf %6, %20 : vector<9x64xf32>
    %cst_11 = arith.constant 9.99999974E-6 : f32
    %22 = vector.broadcast %cst_11 : f32 to vector<1x64xf32>
    %23 = arith.addf %19, %22 : vector<1x64xf32>
    %24 = math.rsqrt %23 : vector<1x64xf32>
    %25 = vector.broadcast %24 : vector<1x64xf32> to vector<9x64xf32>
    %26 = arith.mulf %21, %25 : vector<9x64xf32>
    %cst_12 = arith.constant 0.000000e+00 : f32
    %27 = vector.broadcast %cst_12 : f32 to vector<9x64xf32>
    %28 = arith.cmpf oge, %26, %27 : vector<9x64xf32>
    %cst_13 = arith.constant 2.000000e-01 : f32
    %29 = vector.broadcast %cst_13 : f32 to vector<9x64xf32>
    %30 = arith.mulf %29, %26 : vector<9x64xf32>
    %31 = arith.select %28, %26, %30 : vector<9x64xi1>, vector<9x64xf32>
    %32 = arith.truncf %31 : vector<9x64xf32> to vector<9x64xbf16>
    %c0_14 = arith.constant 0 : index
    %c0_15 = arith.constant 0 : index
    %c0_16 = arith.constant 0 : index
    %33 = vector.load %arg4[%c0_14, %c0_15, %c0_16] : memref<1x9x64xbf16, #tpu.memory_space<vmem>>, vector<1x9x64xbf16>
    %34 = vector.shape_cast %33 : vector<1x9x64xbf16> to vector<9x64xbf16>
    %35 = vector.shape_cast %32 : vector<9x64xbf16> to vector<1x9x64xbf16>
    tpu.vector_store %arg4[%c0_14, %c0_15, %c0_16], %35 {strides = array<i32>} : memref<1x9x64xbf16, #tpu.memory_space<vmem>>, vector<1x9x64xbf16>,
    return
  }
  func.func @transform_0(%arg0: i32) -> (i32, i32, i32) {
    %c0_i32 = arith.constant 0 : i32
    %c0_i32_0 = arith.constant 0 : i32
    %c0_i32_1 = arith.constant 0 : i32
    return %arg0, %c0_i32, %c0_i32_0 : i32, i32, i32
  }
  func.func @transform_1(%arg0: i32) -> (i32, i32) {
    %c0_i32 = arith.constant 0 : i32
    %c0_i32_0 = arith.constant 0 : i32
    %c0_i32_1 = arith.constant 0 : i32
    return %c0_i32, %c0_i32_0 : i32, i32
  }
  func.func @transform_2(%arg0: i32) -> (i32, i32) {
    %c0_i32 = arith.constant 0 : i32
    %c0_i32_0 = arith.constant 0 : i32
    %c0_i32_1 = arith.constant 0 : i32
    return %c0_i32, %c0_i32_0 : i32, i32
  }
  func.func @transform_3(%arg0: i32) -> (i32, i32, i32) {
    %c0_i32 = arith.constant 0 : i32
    %c0_i32_0 = arith.constant 0 : i32
    %c0_i32_1 = arith.constant 0 : i32
    return %arg0, %c0_i32, %c0_i32_0 : i32, i32, i32
  }
}

module attributes {stable_mosaic.version = 11 : i64} {
  func.func @_final_kernel(%arg0: i32, %arg1: memref<1x1024x4xbf16, #tpu.memory_space<vmem>>, %arg2: memref<1x1024xbf16, #tpu.memory_space<vmem>>, %arg3: memref<1x1xf32, #tpu.memory_space<vmem>>, %arg4: memref<1x1x4xf32, #tpu.memory_space<vmem>>) attributes {dimension_semantics = [#tpu.dimension_semantics<parallel>], iteration_bounds = array<i64: 2>, scalar_prefetch = 0 : i64, scratch_operands = 0 : i64, tpu.core_type = #tpu.core_type<tc>, window_params = [{transform_indices = @transform_0, window_bounds = array<i64: 1, 1024, 4>}, {pipeline_mode = #tpu.pipeline_mode<synchronous>, transform_indices = @transform_1, window_bounds = array<i64: 1, 1024>}, {pipeline_mode = #tpu.pipeline_mode<synchronous>, transform_indices = @transform_2, window_bounds = array<i64: 1, 1>}, {transform_indices = @transform_3, window_bounds = array<i64: 1, 1, 4>}]} {
    %c0 = arith.constant 0 : index
    %c0_0 = arith.constant 0 : index
    %0 = vector.load %arg2[%c0, %c0_0] : memref<1x1024xbf16, #tpu.memory_space<vmem>>, vector<1x1024xbf16>
    %c0_1 = arith.constant 0 : index
    %c0_2 = arith.constant 0 : index
    %c0_3 = arith.constant 0 : index
    %1 = vector.load %arg1[%c0_1, %c0_2, %c0_3] : memref<1x1024x4xbf16, #tpu.memory_space<vmem>>, vector<1x1024x4xbf16>
    %2 = vector.shape_cast %1 : vector<1x1024x4xbf16> to vector<1024x4xbf16>
    %cst = arith.constant dense<0.000000e+00> : vector<1x4xf32>
    %3 = tpu.matmul %0, %2, %cst {dimension_numbers = #tpu.dot_dimension_numbers<[1], [0], [0], [1], [0, 0, 1, 1], [], []>} : vector<1x1024xbf16>, vector<1024x4xbf16>, vector<1x4xf32> -> vector<1x4xf32>
    %c0_4 = arith.constant 0 : index
    %c0_5 = arith.constant 0 : index
    %4 = vector.load %arg3[%c0_4, %c0_5] : memref<1x1xf32, #tpu.memory_space<vmem>>, vector<1x1xf32>
    %5 = vector.broadcast %4 : vector<1x1xf32> to vector<1x4xf32>
    %6 = arith.addf %3, %5 : vector<1x4xf32>
    %7 = arith.negf %6 : vector<1x4xf32>
    %8 = math.exp %7 : vector<1x4xf32>
    %cst_6 = arith.constant 1.000000e+00 : f32
    %9 = vector.broadcast %cst_6 : f32 to vector<1x4xf32>
    %10 = arith.addf %9, %8 : vector<1x4xf32>
    %11 = arith.divf %9, %10 : vector<1x4xf32>
    %c0_7 = arith.constant 0 : index
    %c0_8 = arith.constant 0 : index
    %c0_9 = arith.constant 0 : index
    %12 = vector.load %arg4[%c0_7, %c0_8, %c0_9] : memref<1x1x4xf32, #tpu.memory_space<vmem>>, vector<1x1x4xf32>
    %13 = vector.shape_cast %12 : vector<1x1x4xf32> to vector<1x4xf32>
    %14 = vector.shape_cast %11 : vector<1x4xf32> to vector<1x1x4xf32>
    tpu.vector_store %arg4[%c0_7, %c0_8, %c0_9], %14 {strides = array<i32>} : memref<1x1x4xf32, #tpu.memory_space<vmem>>, vector<1x1x4xf32>,
    return
  }
  func.func @transform_0(%arg0: i32) -> (i32, i32, i32) {
    %c0_i32 = arith.constant 0 : i32
    %c0_i32_0 = arith.constant 0 : i32
    %c0_i32_1 = arith.constant 0 : i32
    return %arg0, %c0_i32, %c0_i32_0 : i32, i32, i32
  }
  func.func @transform_1(%arg0: i32) -> (i32, i32) {
    %c0_i32 = arith.constant 0 : i32
    %c0_i32_0 = arith.constant 0 : i32
    %c0_i32_1 = arith.constant 0 : i32
    return %c0_i32, %c0_i32_0 : i32, i32
  }
  func.func @transform_2(%arg0: i32) -> (i32, i32) {
    %c0_i32 = arith.constant 0 : i32
    %c0_i32_0 = arith.constant 0 : i32
    %c0_i32_1 = arith.constant 0 : i32
    return %c0_i32, %c0_i32_0 : i32, i32
  }
  func.func @transform_3(%arg0: i32) -> (i32, i32, i32) {
    %c0_i32 = arith.constant 0 : i32
    %c0_i32_0 = arith.constant 0 : i32
    %c0_i32_1 = arith.constant 0 : i32
    return %arg0, %c0_i32, %c0_i32_0 : i32, i32, i32
  }
}

</mosaic_0001>

<llo_original>
// kernel: discriminator_forward.5
$region0: #{discriminator_forward.5}
  #allocation0 [shape = 'u32[]', space=smem, size = 0x4, offset = 0x4, fixed_abs, tag = 'smem constant byte address 0x4 - core index']
  #allocation1 [shape = 'u32[144,128]{1,0:T(1,128)}', space=vmem, size = 0x12000, scoped, tag = 'internal scratch']
  %s0 = inlined_call_operand.hbm [shape: bf16[2,256,48], index: 0, kind: input, shape index: {}]
  %s1 = inlined_call_operand.hbm [shape: bf16[48,8], index: 1, kind: input, shape index: {}]
  %s2 = inlined_call_operand.hbm [shape: f32[1,8], index: 2, kind: input, shape index: {}]
  %s3 = inlined_call_operand.hbm [shape: bf16[2,256,8], index: 3, kind: output, shape index: {}]
  %s4 = sld [smem:[#allocation0]]
  $region57: #{discriminator_forward.5} parent=0
    _
  %s6 = ssub.s32 1, %s4
  %s7 = scalar_select 0, %s6, %s4
  $region1: #{discriminator_forward.5} parent=0
    #allocation2 [shape = 'u8[131072]{0}', space=vmem, size = 0x20000, scoped, tag = 'input window, operand 0']
    #allocation3 [shape = 's32[2]{0}', space=sflag, size = 0x8, scoped, tag = 'scoped memory for discriminator_forward.5']
    #allocation4 [shape = 's32[2]{0}', space=sflag, size = 0x8, scoped, tag = 'scoped memory for discriminator_forward.5']
    #allocation5 [shape = 'u8[12288]{0}', space=vmem, size = 0x3000, scoped, tag = 'input window, operand 1, single buffered']
    #allocation6 [shape = 's32[1]{0}', space=sflag, size = 0x4, scoped, tag = 'scoped memory for discriminator_forward.5']
    #allocation7 [shape = 'u8[512]{0}', space=vmem, size = 0x400, scoped, tag = 'input window, operand 2, single buffered']
    #allocation8 [shape = 'u8[131072]{0}', space=vmem, size = 0x20000, scoped, tag = 'output window, operand 0']
    %8 = vsyncpa [#allocation3], 0
    %s9 = scalar_lea.sflag [#allocation3], 1
    %10 = vsyncpa %s9, 0
    %11 = vsyncpa [#allocation6], 0
    %12 = vsyncpa [#allocation4], 0
    %s13 = scalar_lea.sflag [#allocation4], 1
    %14 = vsyncpa %s13, 0
    loop: start=0, step=1, limit=4
    $region2: #{discriminator_forward.5} parent=1 // loop_pre_header
      _
    $region3: #{discriminator_forward.5} parent=1 // loop_header
      %s16 = sphi 0, %s20
      %p17 = scmp.ge.s32.totalorder %s16, 4
      %s26 = sphi 0, %s28
      %s29 = sphi 0, %s26
      %s30 = sphi 0, %s29
      %s46 = sphi 0, %s30
      %s50 = sphi 0, %s50
      %s52 = sphi 0, %s50
      %s53 = sphi 0, %s52
      %s67 = sphi 0, %s53
      %s71 = sphi 0, %s71
      %s73 = sphi 0, %s71
      %s74 = sphi 0, %s73
      %s88 = sphi 0, %s74
      %s94 = sphi 0, %s96
      %s97 = sphi 0, %s94
      %s98 = sphi 0, %s97
      %s114 = sphi 0, %s98
    $region4: #{discriminator_forward.5} parent=1 // loop_header_branch
      %19 = sbr.rel (%p17) target = $region8
    $region5: #{discriminator_forward.5} parent=1 // loop_body
      %s21 = ssub.s32 %s16, 1
      %s22 = ssub.s32 %s16, 2
      %s23 = sadd.s32 %s16, 1
      %s24 = ssub.s32 %s16, %s23
      %p25 = scmp.eq.s32.totalorder %s24, 0
      %s27 = sadd.s32 %s26, 1
      %s28 = scalar_select %p25, %s26, %s27
      %p31 = pneg %p25
      %p32 = scmp.eq.s32.totalorder %s16, 1
      %p33 = por %p31, %p32
      %p34 = scmp.ne.s32.totalorder %s26, %s29
      %p35 = scmp.eq.s32.totalorder %s16, 0
      %p36 = por %p34, %p35
      %p37 = scmp.ne.s32.totalorder %s26, %s29
      %p38 = scmp.eq.s32.totalorder %s21, 1
      %p39 = por %p37, %p38
      %p40 = scmp.ne.s32.totalorder %s29, %s30
      %p41 = scmp.eq.s32.totalorder %s21, 0
      %p42 = por %p40, %p41
      %p43 = scmp.ne.s32.totalorder %s29, %s30
      %p44 = scmp.eq.s32.totalorder %s22, 1
      %p45 = por %p43, %p44
      %p47 = scmp.ne.s32.totalorder %s30, %s46
      %p48 = scmp.eq.s32.totalorder %s22, 0
      %p49 = por %p47, %p48
      %s51 = sadd.s32 %s50, 1
      %p54 = scmp.eq.s32.totalorder %s16, 1
      %p55 = scmp.ne.s32.totalorder %s50, %s52
      %p56 = scmp.eq.s32.totalorder %s16, 0
      %p57 = por %p55, %p56
      %p58 = scmp.ne.s32.totalorder %s50, %s52
      %p59 = scmp.eq.s32.totalorder %s21, 1
      %p60 = por %p58, %p59
      %p61 = scmp.ne.s32.totalorder %s52, %s53
      %p62 = scmp.eq.s32.totalorder %s21, 0
      %p63 = por %p61, %p62
      %p64 = scmp.ne.s32.totalorder %s52, %s53
      %p65 = scmp.eq.s32.totalorder %s22, 1
      %p66 = por %p64, %p65
      %p68 = scmp.ne.s32.totalorder %s53, %s67
      %p69 = scmp.eq.s32.totalorder %s22, 0
      %p70 = por %p68, %p69
      %s72 = sadd.s32 %s71, 1
      %p75 = scmp.eq.s32.totalorder %s16, 1
      %p76 = scmp.ne.s32.totalorder %s71, %s73
      %p77 = scmp.eq.s32.totalorder %s16, 0
      %p78 = por %p76, %p77
      %p79 = scmp.ne.s32.totalorder %s71, %s73
      %p80 = scmp.eq.s32.totalorder %s21, 1
      %p81 = por %p79, %p80
      %p82 = scmp.ne.s32.totalorder %s73, %s74
      %p83 = scmp.eq.s32.totalorder %s21, 0
      %p84 = por %p82, %p83
      %p85 = scmp.ne.s32.totalorder %s73, %s74
      %p86 = scmp.eq.s32.totalorder %s22, 1
      %p87 = por %p85, %p86
      %p89 = scmp.ne.s32.totalorder %s74, %s88
      %p90 = scmp.eq.s32.totalorder %s22, 0
      %p91 = por %p89, %p90
      %s92 = ssub.s32 %s16, %s23
      %p93 = scmp.eq.s32.totalorder %s92, 0
      %s95 = sadd.s32 %s94, 1
      %s96 = scalar_select %p93, %s94, %s95
      %p99 = pneg %p93
      %p100 = scmp.eq.s32.totalorder %s16, 1
      %p101 = por %p99, %p100
      %p102 = scmp.ne.s32.totalorder %s94, %s97
      %p103 = scmp.eq.s32.totalorder %s16, 0
      %p104 = por %p102, %p103
      %p105 = scmp.ne.s32.totalorder %s94, %s97
      %p106 = scmp.eq.s32.totalorder %s21, 1
      %p107 = por %p105, %p106
      %p108 = scmp.ne.s32.totalorder %s97, %s98
      %p109 = scmp.eq.s32.totalorder %s21, 0
      %p110 = por %p108, %p109
      %p111 = scmp.ne.s32.totalorder %s97, %s98
      %p112 = scmp.eq.s32.totalorder %s22, 1
      %p113 = por %p111, %p112
      %p115 = scmp.ne.s32.totalorder %s98, %s114
      %p116 = scmp.eq.s32.totalorder %s22, 0
      %p117 = por %p115, %p116
      %p118 = scmp.le.s32.totalorder 1, %s16
      %p119 = scmp.lt.s32.totalorder %s16, 3
      %p120 = pnand %p118, %p119
      %p121 = pneg %p120
      // Predicated region
      $region9: #{discriminator_forward.5} parent=5 // pred_check
        _
      $region10: #{discriminator_forward.5} parent=5 // pred_check_branch
        %123 = sbr.rel (%p120) target = $region12
      $region11: #{discriminator_forward.5} parent=5 // pred_region
        %s124 = ssub.s32 %s16, 1
        // Predicated region
        $region13: #{discriminator_forward.5} parent=11 // pred_check
          %p125 = pneg %p63
        $region14: #{discriminator_forward.5} parent=11 // pred_check_branch
          %127 = sbr.rel (%p125) target = $region16
        $region15: #{discriminator_forward.5} parent=11 // pred_region
          %s129 = ssub.s32 384, 384
          %130 = vsyncadd [#allocation6], %s129
          %s131 = sshll.u32 [#allocation5], 4
          %s132 = int_to_ptr.vmem [resolvable:$true] %s131
          %137 = dma.hbm_to_vmem [thread:$0]  %s1, 384, %s132, [#allocation6], 64, 64, 4
        $region16: #{discriminator_forward.5} parent=11 // pred_fallthru
          _
        // Predicated region
        $region17: #{discriminator_forward.5} parent=11 // pred_check
          %p138 = pneg %p84
        $region18: #{discriminator_forward.5} parent=11 // pred_check_branch
          %140 = sbr.rel (%p138) target = $region20
        $region19: #{discriminator_forward.5} parent=11 // pred_region
          %s142 = ssub.s32 16, 16
          %143 = vsyncadd [#allocation6], %s142
          %s145 = sshll.u32 [#allocation7], 4
          %s146 = int_to_ptr.vmem [resolvable:$true] %s145
          %148 = dma.hbm_to_vmem [thread:$0]  %s2, 16, %s146, [#allocation6]
        $region20: #{discriminator_forward.5} parent=11 // pred_fallthru
          _
      $region12: #{discriminator_forward.5} parent=5 // pred_fallthru
        _
      %p149 = scmp.lt.s32.totalorder %s16, 2
      // Predicated region
      $region21: #{discriminator_forward.5} parent=5 // pred_check
        %p150 = pneg %p149
      $region22: #{discriminator_forward.5} parent=5 // pred_check_branch
        %152 = sbr.rel (%p150) target = $region24
      $region23: #{discriminator_forward.5} parent=5 // pred_region
        // Predicated region
        $region25: #{discriminator_forward.5} parent=23 // pred_check
          %p153 = pneg %p36
        $region26: #{discriminator_forward.5} parent=23 // pred_check_branch
          %155 = sbr.rel (%p153) target = $region28
        $region27: #{discriminator_forward.5} parent=23 // pred_region
          %s156 = sand.u32 %s26, 1
          %s157 = scalar_lea.sflag [#allocation3], %s156
          %s158 = sand.u32 %s26, 1
          %s159 = smul.addr %s158, 128
          %s160 = scalar_lea.vmem [#allocation2], %s159
          %s162 = ssub.s32 2048, 2048
          %163 = vsyncadd %s157, %s162
          %s164 = smul.addr %s16, 32
          %s165 = smul.addr %s164, 64
          %s166 = scalar_lea.hbm %s0, %s165
          %s167 = sshll.u32 %s160, 4
          %s168 = int_to_ptr.vmem [resolvable:$true] %s167
          %173 = dma.hbm_to_vmem [thread:$0]  %s166, 2048, %s168, %s157, 64, 64, 4
        $region28: #{discriminator_forward.5} parent=23 // pred_fallthru
          _
      $region24: #{discriminator_forward.5} parent=5 // pred_fallthru
        _
      %p174 = scmp.le.s32.totalorder 1, %s16
      %p175 = scmp.lt.s32.totalorder %s16, 3
      %p176 = pnand %p174, %p175
      %p177 = pneg %p176
      // Predicated region
      $region29: #{discriminator_forward.5} parent=5 // pred_check
        _
      $region30: #{discriminator_forward.5} parent=5 // pred_check_branch
        %179 = sbr.rel (%p176) target = $region32
      $region31: #{discriminator_forward.5} parent=5 // pred_region
        %s180 = ssub.s32 %s16, 1
        %s181 = sand.u32 %s29, 1
        %s182 = scalar_lea.sflag [#allocation3], %s181
        %s183 = sand.u32 %s29, 1
        %s184 = smul.addr %s183, 128
        %s185 = scalar_lea.vmem [#allocation2], %s184
        // Predicated region
        $region33: #{discriminator_forward.5} parent=31 // pred_check
          %p186 = pneg %p42
        $region34: #{discriminator_forward.5} parent=31 // pred_check_branch
          %188 = sbr.rel (%p186) target = $region36
        $region35: #{discriminator_forward.5} parent=31 // pred_region
          %189 = dma.done %s182, 2048
        $region36: #{discriminator_forward.5} parent=31 // pred_fallthru
          _
        // Predicated region
        $region37: #{discriminator_forward.5} parent=31 // pred_check
          %p190 = pneg %p63
        $region38: #{discriminator_forward.5} parent=31 // pred_check_branch
          %192 = sbr.rel (%p190) target = $region40
        $region39: #{discriminator_forward.5} parent=31 // pred_region
          %193 = dma.done [#allocation6], 384
        $region40: #{discriminator_forward.5} parent=31 // pred_fallthru
          _
        // Predicated region
        $region41: #{discriminator_forward.5} parent=31 // pred_check
          %p194 = pneg %p84
        $region42: #{discriminator_forward.5} parent=31 // pred_check_branch
          %196 = sbr.rel (%p194) target = $region44
        $region43: #{discriminator_forward.5} parent=31 // pred_region
          %197 = dma.done [#allocation6], 16
        $region44: #{discriminator_forward.5} parent=31 // pred_fallthru
          _
        %s198 = sand.u32 %s29, 1
        %s199 = scalar_lea.sflag [#allocation3], %s198
        %s200 = sand.u32 %s29, 1
        %s201 = smul.addr %s200, 128
        %s202 = scalar_lea.vmem [#allocation2], %s201
        %p203 = pneg %p42
        %p204 = pneg %p39
        %p205 = pneg %p63
        %p206 = pneg %p60
        %p207 = pneg %p84
        %p208 = pneg %p81
        %p209 = pneg %p110
        %p210 = pneg %p107
        %s211 = sand.u32 %s97, 1
        %s212 = scalar_lea.sflag [#allocation4], %s211
        %s213 = sand.u32 %s97, 1
        %s214 = smul.addr %s213, 128
        %s215 = scalar_lea.vmem [#allocation8], %s214
        %v217 = vld [vmem:[%s185] sm:$0xf]
        %v218 = vld [vmem:[%s185 + $0x4] sm:$0xf]
        %v219 = vld [vmem:[%s185 + $0x8] sm:$0xf]
        %v220 = vld [vmem:[%s185 + $0xc] sm:$0xf]
        %v221 = vld [vmem:[%s185 + $0x10] sm:$0xf]
        %v222 = vld [vmem:[%s185 + $0x14] sm:$0xf]
        %v223 = vld [vmem:[%s185 + $0x18] sm:$0xf]
        %v224 = vld [vmem:[%s185 + $0x1c] sm:$0xf]
        %v225 = vld [vmem:[%s185 + $0x20] sm:$0xf]
        %v226 = vld [vmem:[%s185 + $0x24] sm:$0xf]
        %v227 = vld [vmem:[%s185 + $0x28] sm:$0xf]
        %v228 = vld [vmem:[%s185 + $0x2c] sm:$0xf]
        %v229 = vld [vmem:[%s185 + $0x30] sm:$0xf]
        %v230 = vld [vmem:[%s185 + $0x34] sm:$0xf]
        %v231 = vld [vmem:[%s185 + $0x38] sm:$0xf]
        %v232 = vld [vmem:[%s185 + $0x3c] sm:$0xf]
        %v233 = vld [vmem:[%s185 + $0x40] sm:$0xf]
        %v234 = vld [vmem:[%s185 + $0x44] sm:$0xf]
        %v235 = vld [vmem:[%s185 + $0x48] sm:$0xf]
        %v236 = vld [vmem:[%s185 + $0x4c] sm:$0xf]
        %v237 = vld [vmem:[%s185 + $0x50] sm:$0xf]
        %v238 = vld [vmem:[%s185 + $0x54] sm:$0xf]
        %v239 = vld [vmem:[%s185 + $0x58] sm:$0xf]
        %v240 = vld [vmem:[%s185 + $0x5c] sm:$0xf]
        %v241 = vld [vmem:[%s185 + $0x60] sm:$0xf]
        %v242 = vld [vmem:[%s185 + $0x64] sm:$0xf]
        %v243 = vld [vmem:[%s185 + $0x68] sm:$0xf]
        %v244 = vld [vmem:[%s185 + $0x6c] sm:$0xf]
        %v245 = vld [vmem:[%s185 + $0x70] sm:$0xf]
        %v246 = vld [vmem:[%s185 + $0x74] sm:$0xf]
        %v247 = vld [vmem:[%s185 + $0x78] sm:$0xf]
        %v248 = vld [vmem:[%s185 + $0x7c] sm:$0xf]
        %v249 = vld [vmem:[#allocation5] sm:$0xf]
        %v250 = vld [vmem:[#allocation5 + $0x4] sm:$0xf]
        %v251 = vld [vmem:[#allocation5 + $0x8] sm:$0xf]
        %v252 = vld [vmem:[#allocation5 + $0xc] sm:$0xf]
        %v253 = vld [vmem:[#allocation5 + $0x10] sm:$0xf]
        %v254 = vld [vmem:[#allocation5 + $0x14] sm:$0xf]
        %v255 = vld [vmem:[#allocation7] sm:$0x1]
        %v257 = vlaneseq
        %v258 = vshrl.u32 %v257, 7
        %v259 = vsub.s32 0, %v258
        %v260 = vrot.slane %v255, %v259
        %v294 = vunpack.c.l.b16 %v217
        %v295 = vunpack.c.l.b16 %v218
        %v296 = vunpack.c.l.b16 %v219
        %v297 = vunpack.c.l.b16 %v220
        %v298 = vunpack.c.l.b16 %v221
        %v299 = vunpack.c.l.b16 %v222
        %v300 = vunpack.c.l.b16 %v223
        %v301 = vunpack.c.l.b16 %v224
        %v302 = vunpack.c.l.b16 %v225
        %v303 = vunpack.c.l.b16 %v226
        %v304 = vunpack.c.l.b16 %v227
        %v305 = vunpack.c.l.b16 %v228
        %v306 = vunpack.c.l.b16 %v229
        %v307 = vunpack.c.l.b16 %v230
        %v308 = vunpack.c.l.b16 %v231
        %v309 = vunpack.c.l.b16 %v232
        %v310 = vunpack.c.l.b16 %v233
        %v311 = vunpack.c.l.b16 %v234
        %v312 = vunpack.c.l.b16 %v235
        %v313 = vunpack.c.l.b16 %v236
        %v314 = vunpack.c.l.b16 %v237
        %v315 = vunpack.c.l.b16 %v238
        %v316 = vunpack.c.l.b16 %v239
        %v317 = vunpack.c.l.b16 %v240
        %v318 = vunpack.c.l.b16 %v241
        %v319 = vunpack.c.l.b16 %v242
        %v320 = vunpack.c.l.b16 %v243
        %v321 = vunpack.c.l.b16 %v244
        %v322 = vunpack.c.l.b16 %v245
        %v323 = vunpack.c.l.b16 %v246
        %v324 = vunpack.c.l.b16 %v247
        %v325 = vunpack.c.l.b16 %v248
        %v326 = vpack.c.b16 %v295, %v294
        %v327 = vpack.c.b16 %v297, %v296
        %v328 = vpack.c.b16 %v299, %v298
        %v329 = vpack.c.b16 %v301, %v300
        %v330 = vpack.c.b16 %v303, %v302
        %v331 = vpack.c.b16 %v305, %v304
        %v332 = vpack.c.b16 %v307, %v306
        %v333 = vpack.c.b16 %v309, %v308
        %v334 = vpack.c.b16 %v311, %v310
        %v335 = vpack.c.b16 %v313, %v312
        %v336 = vpack.c.b16 %v315, %v314
        %v337 = vpack.c.b16 %v317, %v316
        %v338 = vpack.c.b16 %v319, %v318
        %v339 = vpack.c.b16 %v321, %v320
        %v340 = vpack.c.b16 %v323, %v322
        %v341 = vpack.c.b16 %v325, %v324
        %v348 = vunpack.c.l.b16 %v249
        %v349 = vunpack.c.l.b16 %v250
        %v350 = vunpack.c.l.b16 %v251
        %v351 = vunpack.c.l.b16 %v252
        %v352 = vunpack.c.l.b16 %v253
        %v353 = vunpack.c.l.b16 %v254
        %v354 = vpack.c.b16 %v349, %v348
        %v355 = vpack.c.b16 %v351, %v350
        %v356 = vpack.c.b16 %v353, %v352
        %vm360 = vcmask 392192
        %v362 = vsel %vm360, %v326, 0
        %v365 = vsel %vm360, %v327, 0
        %v368 = vsel %vm360, %v328, 0
        %v371 = vsel %vm360, %v329, 0
        %v374 = vsel %vm360, %v330, 0
        %v377 = vsel %vm360, %v331, 0
        %v380 = vsel %vm360, %v332, 0
        %v383 = vsel %vm360, %v333, 0
        %v386 = vsel %vm360, %v334, 0
        %v389 = vsel %vm360, %v335, 0
        %v392 = vsel %vm360, %v336, 0
        %v395 = vsel %vm360, %v337, 0
        %v398 = vsel %vm360, %v338, 0
        %v401 = vsel %vm360, %v339, 0
        %v404 = vsel %vm360, %v340, 0
        %v407 = vsel %vm360, %v341, 0
        %409 = vmatprep.subr.bf16.mxu0 0
        %410 = vmatpush1.bf16.msra.mxu0 %v354
        %411 = vmatprep.subr.bf16.mxu0 0
        %412 = vmatpush1.bf16.msra.mxu0 %v355
        %413 = vmatprep.subr.bf16.mxu0 0
        %414 = vmatpush1.bf16.msra.mxu0 %v356
        %415 = vmatprep.subr.bf16.mxu0 0
        %416 = vmatpush1.bf16.msra.mxu0 0
        %417 = vmatprep.subr.bf16.mxu0 0
        %418 = vmatpush1.bf16.msra.mxu0 0
        %419 = vmatprep.subr.bf16.mxu0 0
        %420 = vmatpush1.bf16.msra.mxu0 0
        %421 = vmatprep.subr.bf16.mxu0 0
        %422 = vmatpush1.bf16.msra.mxu0 0
        %423 = vmatprep.subr.bf16.mxu0 0
        %424 = vmatpush1.bf16.msra.mxu0 0
        %425 = vmatprep.subr.bf16.mxu0 0
        %426 = vmatpush1.bf16.msra.mxu0 0
        %427 = vmatprep.subr.bf16.mxu0 0
        %428 = vmatpush1.bf16.msra.mxu0 0
        %429 = vmatprep.subr.bf16.mxu0 0
        %430 = vmatpush1.bf16.msra.mxu0 0
        %431 = vmatprep.subr.bf16.mxu0 0
        %432 = vmatpush1.bf16.msra.mxu0 0
        %433 = vmatprep.subr.bf16.mxu0 0
        %434 = vmatpush1.bf16.msra.mxu0 0
        %435 = vmatprep.subr.bf16.mxu0 0
        %436 = vmatpush1.bf16.msra.mxu0 0
        %437 = vmatprep.subr.bf16.mxu0 0
        %438 = vmatpush1.bf16.msra.mxu0 0
        %439 = vmatprep.subr.bf16.mxu0 0
        %440 = vmatpush1.bf16.msra.mxu0 0
        %441 = vmatprep.mubr.bf16.mxu0 0
        %442 = vmatmul.mubr.bf16.gmra.mrb[0].mxu0 %v362
        %v443 = vpop.f32.mrb[0].mxu0
        %v444 = vadd.f32 %v260, %v443
        %v445 = vpop.f32.mrb[0].mxu0
        %v446 = vpop.f32.mrb[0].mxu0
        %v447 = vadd.f32 %v260, %v446
        %v448 = vpop.f32.mrb[0].mxu0
        %449 = vmatprep.mubr.bf16.mxu0 0
        %450 = vmatmul.mubr.bf16.gmra.mrb[0].mxu0 %v365
        %v451 = vpop.f32.mrb[0].mxu0
        %v452 = vadd.f32 %v260, %v451
        %v453 = vpop.f32.mrb[0].mxu0
        %v454 = vpop.f32.mrb[0].mxu0
        %v455 = vadd.f32 %v260, %v454
        %v456 = vpop.f32.mrb[0].mxu0
        %457 = vmatprep.mubr.bf16.mxu0 0
        %458 = vmatmul.mubr.bf16.gmra.mrb[0].mxu0 %v368
        %v459 = vpop.f32.mrb[0].mxu0
        %v460 = vadd.f32 %v260, %v459
        %v461 = vpop.f32.mrb[0].mxu0
        %v462 = vpop.f32.mrb[0].mxu0
        %v463 = vadd.f32 %v260, %v462
        %v464 = vpop.f32.mrb[0].mxu0
        %465 = vmatprep.mubr.bf16.mxu0 0
        %466 = vmatmul.mubr.bf16.gmra.mrb[0].mxu0 %v371
        %v467 = vpop.f32.mrb[0].mxu0
        %v468 = vadd.f32 %v260, %v467
        %v469 = vpop.f32.mrb[0].mxu0
        %v470 = vpop.f32.mrb[0].mxu0
        %v471 = vadd.f32 %v260, %v470
        %v472 = vpop.f32.mrb[0].mxu0
        %473 = vmatprep.mubr.bf16.mxu0 0
        %474 = vmatmul.mubr.bf16.gmra.mrb[0].mxu0 %v374
        %v475 = vpop.f32.mrb[0].mxu0
        %v476 = vadd.f32 %v260, %v475
        %v477 = vpop.f32.mrb[0].mxu0
        %v478 = vpop.f32.mrb[0].mxu0
        %v479 = vadd.f32 %v260, %v478
        %v480 = vpop.f32.mrb[0].mxu0
        %481 = vmatprep.mubr.bf16.mxu0 0
        %482 = vmatmul.mubr.bf16.gmra.mrb[0].mxu0 %v377
        %v483 = vpop.f32.mrb[0].mxu0
        %v484 = vadd.f32 %v260, %v483
        %v485 = vpop.f32.mrb[0].mxu0
        %v486 = vpop.f32.mrb[0].mxu0
        %v487 = vadd.f32 %v260, %v486
        %v488 = vpop.f32.mrb[0].mxu0
        %489 = vmatprep.mubr.bf16.mxu0 0
        %490 = vmatmul.mubr.bf16.gmra.mrb[0].mxu0 %v380
        %v491 = vpop.f32.mrb[0].mxu0
        %v492 = vadd.f32 %v260, %v491
        %v493 = vpop.f32.mrb[0].mxu0
        %v494 = vpop.f32.mrb[0].mxu0
        %v495 = vadd.f32 %v260, %v494
        %v496 = vpop.f32.mrb[0].mxu0
        %497 = vmatprep.mubr.bf16.mxu0 0
        %498 = vmatmul.mubr.bf16.gmra.mrb[0].mxu0 %v383
        %v499 = vpop.f32.mrb[0].mxu0
        %v500 = vadd.f32 %v260, %v499
        %v501 = vpop.f32.mrb[0].mxu0
        %v502 = vpop.f32.mrb[0].mxu0
        %v503 = vadd.f32 %v260, %v502
        %v504 = vpop.f32.mrb[0].mxu0
        %505 = vmatprep.mubr.bf16.mxu0 0
        %506 = vmatmul.mubr.bf16.gmra.mrb[0].mxu0 %v386
        %v507 = vpop.f32.mrb[0].mxu0
        %v508 = vadd.f32 %v260, %v507
        %v509 = vpop.f32.mrb[0].mxu0
        %v510 = vpop.f32.mrb[0].mxu0
        %v511 = vadd.f32 %v260, %v510
        %v512 = vpop.f32.mrb[0].mxu0
        %513 = vmatprep.mubr.bf16.mxu0 0
        %514 = vmatmul.mubr.bf16.gmra.mrb[0].mxu0 %v389
        %v515 = vpop.f32.mrb[0].mxu0
        %v516 = vadd.f32 %v260, %v515
        %v517 = vpop.f32.mrb[0].mxu0
        %v518 = vpop.f32.mrb[0].mxu0
        %v519 = vadd.f32 %v260, %v518
        %v520 = vpop.f32.mrb[0].mxu0
        %521 = vmatprep.mubr.bf16.mxu0 0
        %522 = vmatmul.mubr.bf16.gmra.mrb[0].mxu0 %v392
        %v523 = vpop.f32.mrb[0].mxu0
        %v524 = vadd.f32 %v260, %v523
        %v525 = vpop.f32.mrb[0].mxu0
        %v526 = vpop.f32.mrb[0].mxu0
        %v527 = vadd.f32 %v260, %v526
        %v528 = vpop.f32.mrb[0].mxu0
        %529 = vmatprep.mubr.bf16.mxu0 0
        %530 = vmatmul.mubr.bf16.gmra.mrb[0].mxu0 %v395
        %v531 = vpop.f32.mrb[0].mxu0
        %v532 = vadd.f32 %v260, %v531
        %v533 = vpop.f32.mrb[0].mxu0
        %v534 = vpop.f32.mrb[0].mxu0
        %v535 = vadd.f32 %v260, %v534
        %v536 = vpop.f32.mrb[0].mxu0
        %537 = vmatprep.mubr.bf16.mxu0 0
        %538 = vmatmul.mubr.bf16.gmra.mrb[0].mxu0 %v398
        %v539 = vpop.f32.mrb[0].mxu0
        %v540 = vadd.f32 %v260, %v539
        %v541 = vpop.f32.mrb[0].mxu0
        %v542 = vpop.f32.mrb[0].mxu0
        %v543 = vadd.f32 %v260, %v542
        %v544 = vpop.f32.mrb[0].mxu0
        %545 = vmatprep.mubr.bf16.mxu0 0
        %546 = vmatmul.mubr.bf16.gmra.mrb[0].mxu0 %v401
        %v547 = vpop.f32.mrb[0].mxu0
        %v548 = vadd.f32 %v260, %v547
        %v549 = vpop.f32.mrb[0].mxu0
        %v550 = vpop.f32.mrb[0].mxu0
        %v551 = vadd.f32 %v260, %v550
        %v552 = vpop.f32.mrb[0].mxu0
        %553 = vmatprep.mubr.bf16.mxu0 0
        %554 = vmatmul.mubr.bf16.gmra.mrb[0].mxu0 %v404
        %v555 = vpop.f32.mrb[0].mxu0
        %v556 = vadd.f32 %v260, %v555
        %v557 = vpop.f32.mrb[0].mxu0
        %v558 = vpop.f32.mrb[0].mxu0
        %v559 = vadd.f32 %v260, %v558
        %v560 = vpop.f32.mrb[0].mxu0
        %561 = vmatprep.mubr.bf16.mxu0 0
        %562 = vmatmul.mubr.bf16.gmra.mrb[0].mxu0 %v407
        %v563 = vpop.f32.mrb[0].mxu0
        %v564 = vadd.f32 %v260, %v563
        %v565 = vpop.f32.mrb[0].mxu0
        %v566 = vpop.f32.mrb[0].mxu0
        %v567 = vadd.f32 %v260, %v566
        %v568 = vpop.f32.mrb[0].mxu0
        %569 = vdwg.mxu0
        %vm570 = vcmp.ge.f32.partialorder %v444, 0.0
        %vm571 = vcmp.ge.f32.partialorder %v447, 0.0
        %vm572 = vcmp.ge.f32.partialorder %v452, 0.0
        %vm573 = vcmp.ge.f32.partialorder %v455, 0.0
        %vm574 = vcmp.ge.f32.partialorder %v460, 0.0
        %vm575 = vcmp.ge.f32.partialorder %v463, 0.0
        %vm576 = vcmp.ge.f32.partialorder %v468, 0.0
        %vm577 = vcmp.ge.f32.partialorder %v471, 0.0
        %vm578 = vcmp.ge.f32.partialorder %v476, 0.0
        %vm579 = vcmp.ge.f32.partialorder %v479, 0.0
        %vm580 = vcmp.ge.f32.partialorder %v484, 0.0
        %vm581 = vcmp.ge.f32.partialorder %v487, 0.0
        %vm582 = vcmp.ge.f32.partialorder %v492, 0.0
        %vm583 = vcmp.ge.f32.partialorder %v495, 0.0
        %vm584 = vcmp.ge.f32.partialorder %v500, 0.0
        %vm585 = vcmp.ge.f32.partialorder %v503, 0.0
        %vm586 = vcmp.ge.f32.partialorder %v508, 0.0
        %vm587 = vcmp.ge.f32.partialorder %v511, 0.0
        %vm588 = vcmp.ge.f32.partialorder %v516, 0.0
        %vm589 = vcmp.ge.f32.partialorder %v519, 0.0
        %vm590 = vcmp.ge.f32.partialorder %v524, 0.0
        %vm591 = vcmp.ge.f32.partialorder %v527, 0.0
        %vm592 = vcmp.ge.f32.partialorder %v532, 0.0
        %vm593 = vcmp.ge.f32.partialorder %v535, 0.0
        %vm594 = vcmp.ge.f32.partialorder %v540, 0.0
        %vm595 = vcmp.ge.f32.partialorder %v543, 0.0
        %vm596 = vcmp.ge.f32.partialorder %v548, 0.0
        %vm597 = vcmp.ge.f32.partialorder %v551, 0.0
        %vm598 = vcmp.ge.f32.partialorder %v556, 0.0
        %vm599 = vcmp.ge.f32.partialorder %v559, 0.0
        %vm600 = vcmp.ge.f32.partialorder %v564, 0.0
        %vm601 = vcmp.ge.f32.partialorder %v567, 0.0
        %v602 = vmul.f32 %v444, 0.2
        %v603 = vmul.f32 %v447, 0.2
        %v604 = vmul.f32 %v452, 0.2
        %v605 = vmul.f32 %v455, 0.2
        %v606 = vmul.f32 %v460, 0.2
        %v607 = vmul.f32 %v463, 0.2
        %v608 = vmul.f32 %v468, 0.2
        %v609 = vmul.f32 %v471, 0.2
        %v610 = vmul.f32 %v476, 0.2
        %v611 = vmul.f32 %v479, 0.2
        %v612 = vmul.f32 %v484, 0.2
        %v613 = vmul.f32 %v487, 0.2
        %v614 = vmul.f32 %v492, 0.2
        %v615 = vmul.f32 %v495, 0.2
        %v616 = vmul.f32 %v500, 0.2
        %v617 = vmul.f32 %v503, 0.2
        %v618 = vmul.f32 %v508, 0.2
        %v619 = vmul.f32 %v511, 0.2
        %v620 = vmul.f32 %v516, 0.2
        %v621 = vmul.f32 %v519, 0.2
        %v622 = vmul.f32 %v524, 0.2
        %v623 = vmul.f32 %v527, 0.2
        %v624 = vmul.f32 %v532, 0.2
        %v625 = vmul.f32 %v535, 0.2
        %v626 = vmul.f32 %v540, 0.2
        %v627 = vmul.f32 %v543, 0.2
        %v628 = vmul.f32 %v548, 0.2
        %v629 = vmul.f32 %v551, 0.2
        %v630 = vmul.f32 %v556, 0.2
        %v631 = vmul.f32 %v559, 0.2
        %v632 = vmul.f32 %v564, 0.2
        %v633 = vmul.f32 %v567, 0.2
        %v634 = vsel %vm570, %v444, %v602
        %v635 = vsel %vm571, %v447, %v603
        %v636 = vsel %vm572, %v452, %v604
        %v637 = vsel %vm573, %v455, %v605
        %v638 = vsel %vm574, %v460, %v606
        %v639 = vsel %vm575, %v463, %v607
        %v640 = vsel %vm576, %v468, %v608
        %v641 = vsel %vm577, %v471, %v609
        %v642 = vsel %vm578, %v476, %v610
        %v643 = vsel %vm579, %v479, %v611
        %v644 = vsel %vm580, %v484, %v612
        %v645 = vsel %vm581, %v487, %v613
        %v646 = vsel %vm582, %v492, %v614
        %v647 = vsel %vm583, %v495, %v615
        %v648 = vsel %vm584, %v500, %v616
        %v649 = vsel %vm585, %v503, %v617
        %v650 = vsel %vm586, %v508, %v618
        %v651 = vsel %vm587, %v511, %v619
        %v652 = vsel %vm588, %v516, %v620
        %v653 = vsel %vm589, %v519, %v621
        %v654 = vsel %vm590, %v524, %v622
        %v655 = vsel %vm591, %v527, %v623
        %v656 = vsel %vm592, %v532, %v624
        %v657 = vsel %vm593, %v535, %v625
        %v658 = vsel %vm594, %v540, %v626
        %v659 = vsel %vm595, %v543, %v627
        %v660 = vsel %vm596, %v548, %v628
        %v661 = vsel %vm597, %v551, %v629
        %v662 = vsel %vm598, %v556, %v630
        %v663 = vsel %vm599, %v559, %v631
        %v664 = vsel %vm600, %v564, %v632
        %v665 = vsel %vm601, %v567, %v633
        %v666 = vpack.c.bf16 %v635, %v634
        %v667 = vpack.c.bf16 %v637, %v636
        %v668 = vpack.c.bf16 %v639, %v638
        %v669 = vpack.c.bf16 %v641, %v640
        %v670 = vpack.c.bf16 %v643, %v642
        %v671 = vpack.c.bf16 %v645, %v644
        %v672 = vpack.c.bf16 %v647, %v646
        %v673 = vpack.c.bf16 %v649, %v648
        %v674 = vpack.c.bf16 %v651, %v650
        %v675 = vpack.c.bf16 %v653, %v652
        %v676 = vpack.c.bf16 %v655, %v654
        %v677 = vpack.c.bf16 %v657, %v656
        %v678 = vpack.c.bf16 %v659, %v658
        %v679 = vpack.c.bf16 %v661, %v660
        %v680 = vpack.c.bf16 %v663, %v662
        %v681 = vpack.c.bf16 %v665, %v664
        %v698 = vunpack.c.l.b16 %v666
        %v699 = vunpack.c.h.b16 %v666
        %v700 = vunpack.c.l.b16 %v667
        %v701 = vunpack.c.h.b16 %v667
        %v702 = vunpack.c.l.b16 %v668
        %v703 = vunpack.c.h.b16 %v668
        %v704 = vunpack.c.l.b16 %v669
        %v705 = vunpack.c.h.b16 %v669
        %v706 = vunpack.c.l.b16 %v670
        %v707 = vunpack.c.h.b16 %v670
        %v708 = vunpack.c.l.b16 %v671
        %v709 = vunpack.c.h.b16 %v671
        %v710 = vunpack.c.l.b16 %v672
        %v711 = vunpack.c.h.b16 %v672
        %v712 = vunpack.c.l.b16 %v673
        %v713 = vunpack.c.h.b16 %v673
        %v714 = vunpack.c.l.b16 %v674
        %v715 = vunpack.c.h.b16 %v674
        %v716 = vunpack.c.l.b16 %v675
        %v717 = vunpack.c.h.b16 %v675
        %v718 = vunpack.c.l.b16 %v676
        %v719 = vunpack.c.h.b16 %v676
        %v720 = vunpack.c.l.b16 %v677
        %v721 = vunpack.c.h.b16 %v677
        %v722 = vunpack.c.l.b16 %v678
        %v723 = vunpack.c.h.b16 %v678
        %v724 = vunpack.c.l.b16 %v679
        %v725 = vunpack.c.h.b16 %v679
        %v726 = vunpack.c.l.b16 %v680
        %v727 = vunpack.c.h.b16 %v680
        %v728 = vunpack.c.l.b16 %v681
        %v729 = vunpack.c.h.b16 %v681
        %v730 = vpack.c.b16 %v698, %v698
        %v731 = vpack.c.b16 %v699, %v699
        %v732 = vpack.c.b16 %v700, %v700
        %v733 = vpack.c.b16 %v701, %v701
        %v734 = vpack.c.b16 %v702, %v702
        %v735 = vpack.c.b16 %v703, %v703
        %v736 = vpack.c.b16 %v704, %v704
        %v737 = vpack.c.b16 %v705, %v705
        %v738 = vpack.c.b16 %v706, %v706
        %v739 = vpack.c.b16 %v707, %v707
        %v740 = vpack.c.b16 %v708, %v708
        %v741 = vpack.c.b16 %v709, %v709
        %v742 = vpack.c.b16 %v710, %v710
        %v743 = vpack.c.b16 %v711, %v711
        %v744 = vpack.c.b16 %v712, %v712
        %v745 = vpack.c.b16 %v713, %v713
        %v746 = vpack.c.b16 %v714, %v714
        %v747 = vpack.c.b16 %v715, %v715
        %v748 = vpack.c.b16 %v716, %v716
        %v749 = vpack.c.b16 %v717, %v717
        %v750 = vpack.c.b16 %v718, %v718
        %v751 = vpack.c.b16 %v719, %v719
        %v752 = vpack.c.b16 %v720, %v720
        %v753 = vpack.c.b16 %v721, %v721
        %v754 = vpack.c.b16 %v722, %v722
        %v755 = vpack.c.b16 %v723, %v723
        %v756 = vpack.c.b16 %v724, %v724
        %v757 = vpack.c.b16 %v725, %v725
        %v758 = vpack.c.b16 %v726, %v726
        %v759 = vpack.c.b16 %v727, %v727
        %v760 = vpack.c.b16 %v728, %v728
        %v761 = vpack.c.b16 %v729, %v729
        %vm794 = vcmask 60416
        %795 = vst.msk [vmem:[%s215] sm:$0xf] %vm794, %v730
        %796 = vst.msk [vmem:[%s215 + $0x4] sm:$0xf] %vm794, %v731
        %797 = vst.msk [vmem:[%s215 + $0x8] sm:$0xf] %vm794, %v732
        %798 = vst.msk [vmem:[%s215 + $0xc] sm:$0xf] %vm794, %v733
        %799 = vst.msk [vmem:[%s215 + $0x10] sm:$0xf] %vm794, %v734
        %800 = vst.msk [vmem:[%s215 + $0x14] sm:$0xf] %vm794, %v735
        %801 = vst.msk [vmem:[%s215 + $0x18] sm:$0xf] %vm794, %v736
        %802 = vst.msk [vmem:[%s215 + $0x1c] sm:$0xf] %vm794, %v737
        %803 = vst.msk [vmem:[%s215 + $0x20] sm:$0xf] %vm794, %v738
        %804 = vst.msk [vmem:[%s215 + $0x24] sm:$0xf] %vm794, %v739
        %805 = vst.msk [vmem:[%s215 + $0x28] sm:$0xf] %vm794, %v740
        %806 = vst.msk [vmem:[%s215 + $0x2c] sm:$0xf] %vm794, %v741
        %807 = vst.msk [vmem:[%s215 + $0x30] sm:$0xf] %vm794, %v742
        %808 = vst.msk [vmem:[%s215 + $0x34] sm:$0xf] %vm794, %v743
        %809 = vst.msk [vmem:[%s215 + $0x38] sm:$0xf] %vm794, %v744
        %810 = vst.msk [vmem:[%s215 + $0x3c] sm:$0xf] %vm794, %v745
        %811 = vst.msk [vmem:[%s215 + $0x40] sm:$0xf] %vm794, %v746
        %812 = vst.msk [vmem:[%s215 + $0x44] sm:$0xf] %vm794, %v747
        %813 = vst.msk [vmem:[%s215 + $0x48] sm:$0xf] %vm794, %v748
        %814 = vst.msk [vmem:[%s215 + $0x4c] sm:$0xf] %vm794, %v749
        %815 = vst.msk [vmem:[%s215 + $0x50] sm:$0xf] %vm794, %v750
        %816 = vst.msk [vmem:[%s215 + $0x54] sm:$0xf] %vm794, %v751
        %817 = vst.msk [vmem:[%s215 + $0x58] sm:$0xf] %vm794, %v752
        %818 = vst.msk [vmem:[%s215 + $0x5c] sm:$0xf] %vm794, %v753
        %819 = vst.msk [vmem:[%s215 + $0x60] sm:$0xf] %vm794, %v754
        %820 = vst.msk [vmem:[%s215 + $0x64] sm:$0xf] %vm794, %v755
        %821 = vst.msk [vmem:[%s215 + $0x68] sm:$0xf] %vm794, %v756
        %822 = vst.msk [vmem:[%s215 + $0x6c] sm:$0xf] %vm794, %v757
        %823 = vst.msk [vmem:[%s215 + $0x70] sm:$0xf] %vm794, %v758
        %824 = vst.msk [vmem:[%s215 + $0x74] sm:$0xf] %vm794, %v759
        %825 = vst.msk [vmem:[%s215 + $0x78] sm:$0xf] %vm794, %v760
        %826 = vst.msk [vmem:[%s215 + $0x7c] sm:$0xf] %vm794, %v761
        %s827 = sand.u32 %s97, 1
        %s828 = scalar_lea.sflag [#allocation4], %s827
        %s829 = sand.u32 %s97, 1
        %s830 = smul.addr %s829, 128
        %s831 = scalar_lea.vmem [#allocation8], %s830
        // Predicated region
        $region45: #{discriminator_forward.5} parent=31 // pred_check
          %p832 = pneg %p107
        $region46: #{discriminator_forward.5} parent=31 // pred_check_branch
          %834 = sbr.rel (%p832) target = $region48
        $region47: #{discriminator_forward.5} parent=31 // pred_region
          %s836 = ssub.s32 2048, 2048
          %837 = vsyncadd %s828, %s836
          %s838 = smul.addr %s21, 32
          %s839 = smul.addr %s838, 64
          %s840 = scalar_lea.hbm %s3, %s839
          %s841 = sshll.u32 %s831, 4
          %s842 = int_to_ptr.vmem [resolvable:$true] %s841
          %847 = dma.vmem_to_hbm [thread:$0]  %s842, 2048, %s840, %s828, 64, 64, 4
        $region48: #{discriminator_forward.5} parent=31 // pred_fallthru
          _
      $region32: #{discriminator_forward.5} parent=5 // pred_fallthru
        _
      %p848 = scmp.le.s32.totalorder 2, %s16
      // Predicated region
      $region49: #{discriminator_forward.5} parent=5 // pred_check
        %p849 = pneg %p848
      $region50: #{discriminator_forward.5} parent=5 // pred_check_branch
        %851 = sbr.rel (%p849) target = $region52
      $region51: #{discriminator_forward.5} parent=5 // pred_region
        %s852 = ssub.s32 %s16, 2
        // Predicated region
        $region53: #{discriminator_forward.5} parent=51 // pred_check
          %p853 = pneg %p113
        $region54: #{discriminator_forward.5} parent=51 // pred_check_branch
          %855 = sbr.rel (%p853) target = $region56
        $region55: #{discriminator_forward.5} parent=51 // pred_region
          %s856 = sand.u32 %s98, 1
          %s857 = scalar_lea.sflag [#allocation4], %s856
          %s858 = sand.u32 %s98, 1
          %s859 = smul.addr %s858, 128
          %s860 = scalar_lea.vmem [#allocation8], %s859
          %861 = dma.done %s857, 2048
        $region56: #{discriminator_forward.5} parent=51 // pred_fallthru
          _
      $region52: #{discriminator_forward.5} parent=5 // pred_fallthru
        _
    $region6: #{discriminator_forward.5} parent=1 // loop_footer
      %s20 = sadd.s32 1, %s16
    $region7: #{discriminator_forward.5} parent=1 // loop_footer_branch
      %15 = sbr.rel target = $region3
    $region8: #{discriminator_forward.5} parent=1 // loop_exit
      _
    %862 = vsyncpa [#allocation3], 1
    %s863 = scalar_lea.sflag [#allocation3], 1
    %864 = vsyncpa %s863, 1
    %865 = vsyncpa [#allocation6], 1
    %866 = vsyncpa [#allocation4], 1
    %s867 = scalar_lea.sflag [#allocation4], 1
    %868 = vsyncpa %s867, 1

// kernel: discriminator_forward.6
$region0: #{discriminator_forward.6}
  #allocation0 [shape = 'u32[]', space=smem, size = 0x4, offset = 0x4, fixed_abs, tag = 'smem constant byte address 0x4 - core index']
  #allocation1 [shape = 'u32[144,128]{1,0:T(1,128)}', space=vmem, size = 0x12000, scoped, tag = 'internal scratch']
  %s0 = inlined_call_operand.hbm [shape: bf16[2,64,128], index: 0, kind: input, shape index: {}]
  %s1 = inlined_call_operand.hbm [shape: bf16[128,16], index: 1, kind: input, shape index: {}]
  %s2 = inlined_call_operand.hbm [shape: f32[1,16], index: 2, kind: input, shape index: {}]
  %s3 = inlined_call_operand.hbm [shape: bf16[2,64,16], index: 3, kind: output, shape index: {}]
  %s4 = sld [smem:[#allocation0]]
  $region57: #{discriminator_forward.6} parent=0
    _
  %s6 = ssub.s32 1, %s4
  %s7 = scalar_select 0, %s6, %s4
  $region1: #{discriminator_forward.6} parent=0
    #allocation2 [shape = 'u8[32768]{0}', space=vmem, size = 0x8000, scoped, tag = 'input window, operand 0']
    #allocation3 [shape = 's32[2]{0}', space=sflag, size = 0x8, scoped, tag = 'scoped memory for discriminator_forward.6']
    #allocation4 [shape = 's32[2]{0}', space=sflag, size = 0x8, scoped, tag = 'scoped memory for discriminator_forward.6']
    #allocation5 [shape = 'u8[32768]{0}', space=vmem, size = 0x8000, scoped, tag = 'input window, operand 1, single buffered']
    #allocation6 [shape = 's32[1]{0}', space=sflag, size = 0x4, scoped, tag = 'scoped memory for discriminator_forward.6']
    #allocation7 [shape = 'u8[512]{0}', space=vmem, size = 0x400, scoped, tag = 'input window, operand 2, single buffered']
    #allocation8 [shape = 'u8[32768]{0}', space=vmem, size = 0x8000, scoped, tag = 'output window, operand 0']
    %8 = vsyncpa [#allocation3], 0
    %s9 = scalar_lea.sflag [#allocation3], 1
    %10 = vsyncpa %s9, 0
    %11 = vsyncpa [#allocation6], 0
    %12 = vsyncpa [#allocation4], 0
    %s13 = scalar_lea.sflag [#allocation4], 1
    %14 = vsyncpa %s13, 0
    loop: start=0, step=1, limit=4
    $region2: #{discriminator_forward.6} parent=1 // loop_pre_header
      _
    $region3: #{discriminator_forward.6} parent=1 // loop_header
      %s16 = sphi 0, %s20
      %p17 = scmp.ge.s32.totalorder %s16, 4
      %s26 = sphi 0, %s28
      %s29 = sphi 0, %s26
      %s30 = sphi 0, %s29
      %s46 = sphi 0, %s30
      %s50 = sphi 0, %s50
      %s52 = sphi 0, %s50
      %s53 = sphi 0, %s52
      %s67 = sphi 0, %s53
      %s71 = sphi 0, %s71
      %s73 = sphi 0, %s71
      %s74 = sphi 0, %s73
      %s88 = sphi 0, %s74
      %s94 = sphi 0, %s96
      %s97 = sphi 0, %s94
      %s98 = sphi 0, %s97
      %s114 = sphi 0, %s98
    $region4: #{discriminator_forward.6} parent=1 // loop_header_branch
      %19 = sbr.rel (%p17) target = $region8
    $region5: #{discriminator_forward.6} parent=1 // loop_body
      %s21 = ssub.s32 %s16, 1
      %s22 = ssub.s32 %s16, 2
      %s23 = sadd.s32 %s16, 1
      %s24 = ssub.s32 %s16, %s23
      %p25 = scmp.eq.s32.totalorder %s24, 0
      %s27 = sadd.s32 %s26, 1
      %s28 = scalar_select %p25, %s26, %s27
      %p31 = pneg %p25
      %p32 = scmp.eq.s32.totalorder %s16, 1
      %p33 = por %p31, %p32
      %p34 = scmp.ne.s32.totalorder %s26, %s29
      %p35 = scmp.eq.s32.totalorder %s16, 0
      %p36 = por %p34, %p35
      %p37 = scmp.ne.s32.totalorder %s26, %s29
      %p38 = scmp.eq.s32.totalorder %s21, 1
      %p39 = por %p37, %p38
      %p40 = scmp.ne.s32.totalorder %s29, %s30
      %p41 = scmp.eq.s32.totalorder %s21, 0
      %p42 = por %p40, %p41
      %p43 = scmp.ne.s32.totalorder %s29, %s30
      %p44 = scmp.eq.s32.totalorder %s22, 1
      %p45 = por %p43, %p44
      %p47 = scmp.ne.s32.totalorder %s30, %s46
      %p48 = scmp.eq.s32.totalorder %s22, 0
      %p49 = por %p47, %p48
      %s51 = sadd.s32 %s50, 1
      %p54 = scmp.eq.s32.totalorder %s16, 1
      %p55 = scmp.ne.s32.totalorder %s50, %s52
      %p56 = scmp.eq.s32.totalorder %s16, 0
      %p57 = por %p55, %p56
      %p58 = scmp.ne.s32.totalorder %s50, %s52
      %p59 = scmp.eq.s32.totalorder %s21, 1
      %p60 = por %p58, %p59
      %p61 = scmp.ne.s32.totalorder %s52, %s53
      %p62 = scmp.eq.s32.totalorder %s21, 0
      %p63 = por %p61, %p62
      %p64 = scmp.ne.s32.totalorder %s52, %s53
      %p65 = scmp.eq.s32.totalorder %s22, 1
      %p66 = por %p64, %p65
      %p68 = scmp.ne.s32.totalorder %s53, %s67
      %p69 = scmp.eq.s32.totalorder %s22, 0
      %p70 = por %p68, %p69
      %s72 = sadd.s32 %s71, 1
      %p75 = scmp.eq.s32.totalorder %s16, 1
      %p76 = scmp.ne.s32.totalorder %s71, %s73
      %p77 = scmp.eq.s32.totalorder %s16, 0
      %p78 = por %p76, %p77
      %p79 = scmp.ne.s32.totalorder %s71, %s73
      %p80 = scmp.eq.s32.totalorder %s21, 1
      %p81 = por %p79, %p80
      %p82 = scmp.ne.s32.totalorder %s73, %s74
      %p83 = scmp.eq.s32.totalorder %s21, 0
      %p84 = por %p82, %p83
      %p85 = scmp.ne.s32.totalorder %s73, %s74
      %p86 = scmp.eq.s32.totalorder %s22, 1
      %p87 = por %p85, %p86
      %p89 = scmp.ne.s32.totalorder %s74, %s88
      %p90 = scmp.eq.s32.totalorder %s22, 0
      %p91 = por %p89, %p90
      %s92 = ssub.s32 %s16, %s23
      %p93 = scmp.eq.s32.totalorder %s92, 0
      %s95 = sadd.s32 %s94, 1
      %s96 = scalar_select %p93, %s94, %s95
      %p99 = pneg %p93
      %p100 = scmp.eq.s32.totalorder %s16, 1
      %p101 = por %p99, %p100
      %p102 = scmp.ne.s32.totalorder %s94, %s97
      %p103 = scmp.eq.s32.totalorder %s16, 0
      %p104 = por %p102, %p103
      %p105 = scmp.ne.s32.totalorder %s94, %s97
      %p106 = scmp.eq.s32.totalorder %s21, 1
      %p107 = por %p105, %p106
      %p108 = scmp.ne.s32.totalorder %s97, %s98
      %p109 = scmp.eq.s32.totalorder %s21, 0
      %p110 = por %p108, %p109
      %p111 = scmp.ne.s32.totalorder %s97, %s98
      %p112 = scmp.eq.s32.totalorder %s22, 1
      %p113 = por %p111, %p112
      %p115 = scmp.ne.s32.totalorder %s98, %s114
      %p116 = scmp.eq.s32.totalorder %s22, 0
      %p117 = por %p115, %p116
      %p118 = scmp.le.s32.totalorder 1, %s16
      %p119 = scmp.lt.s32.totalorder %s16, 3
      %p120 = pnand %p118, %p119
      %p121 = pneg %p120
      // Predicated region
      $region9: #{discriminator_forward.6} parent=5 // pred_check
        _
      $region10: #{discriminator_forward.6} parent=5 // pred_check_branch
        %123 = sbr.rel (%p120) target = $region12
      $region11: #{discriminator_forward.6} parent=5 // pred_region
        %s124 = ssub.s32 %s16, 1
        // Predicated region
        $region13: #{discriminator_forward.6} parent=11 // pred_check
          %p125 = pneg %p63
        $region14: #{discriminator_forward.6} parent=11 // pred_check_branch
          %127 = sbr.rel (%p125) target = $region16
        $region15: #{discriminator_forward.6} parent=11 // pred_region
          %s129 = ssub.s32 1024, 1024
          %130 = vsyncadd [#allocation6], %s129
          %s131 = sshll.u32 [#allocation5], 4
          %s132 = int_to_ptr.vmem [resolvable:$true] %s131
          %137 = dma.hbm_to_vmem [thread:$0]  %s1, 1024, %s132, [#allocation6], 64, 64, 4
        $region16: #{discriminator_forward.6} parent=11 // pred_fallthru
          _
        // Predicated region
        $region17: #{discriminator_forward.6} parent=11 // pred_check
          %p138 = pneg %p84
        $region18: #{discriminator_forward.6} parent=11 // pred_check_branch
          %140 = sbr.rel (%p138) target = $region20
        $region19: #{discriminator_forward.6} parent=11 // pred_region
          %s142 = ssub.s32 16, 16
          %143 = vsyncadd [#allocation6], %s142
          %s145 = sshll.u32 [#allocation7], 4
          %s146 = int_to_ptr.vmem [resolvable:$true] %s145
          %148 = dma.hbm_to_vmem [thread:$0]  %s2, 16, %s146, [#allocation6]
        $region20: #{discriminator_forward.6} parent=11 // pred_fallthru
          _
      $region12: #{discriminator_forward.6} parent=5 // pred_fallthru
        _
      %p149 = scmp.lt.s32.totalorder %s16, 2
      // Predicated region
      $region21: #{discriminator_forward.6} parent=5 // pred_check
        %p150 = pneg %p149
      $region22: #{discriminator_forward.6} parent=5 // pred_check_branch
        %152 = sbr.rel (%p150) target = $region24
      $region23: #{discriminator_forward.6} parent=5 // pred_region
        // Predicated region
        $region25: #{discriminator_forward.6} parent=23 // pred_check
          %p153 = pneg %p36
        $region26: #{discriminator_forward.6} parent=23 // pred_check_branch
          %155 = sbr.rel (%p153) target = $region28
        $region27: #{discriminator_forward.6} parent=23 // pred_region
          %s156 = sand.u32 %s26, 1
          %s157 = scalar_lea.sflag [#allocation3], %s156
          %s158 = sand.u32 %s26, 1
          %s159 = smul.addr %s158, 32
          %s160 = scalar_lea.vmem [#allocation2], %s159
          %s162 = ssub.s32 512, 512
          %163 = vsyncadd %s157, %s162
          %s164 = smul.addr %s16, 8
          %s165 = smul.addr %s164, 64
          %s166 = scalar_lea.hbm %s0, %s165
          %s167 = sshll.u32 %s160, 4
          %s168 = int_to_ptr.vmem [resolvable:$true] %s167
          %173 = dma.hbm_to_vmem [thread:$0]  %s166, 512, %s168, %s157, 64, 64, 4
        $region28: #{discriminator_forward.6} parent=23 // pred_fallthru
          _
      $region24: #{discriminator_forward.6} parent=5 // pred_fallthru
        _
      %p174 = scmp.le.s32.totalorder 1, %s16
      %p175 = scmp.lt.s32.totalorder %s16, 3
      %p176 = pnand %p174, %p175
      %p177 = pneg %p176
      // Predicated region
      $region29: #{discriminator_forward.6} parent=5 // pred_check
        _
      $region30: #{discriminator_forward.6} parent=5 // pred_check_branch
        %179 = sbr.rel (%p176) target = $region32
      $region31: #{discriminator_forward.6} parent=5 // pred_region
        %s180 = ssub.s32 %s16, 1
        %s181 = sand.u32 %s29, 1
        %s182 = scalar_lea.sflag [#allocation3], %s181
        %s183 = sand.u32 %s29, 1
        %s184 = smul.addr %s183, 32
        %s185 = scalar_lea.vmem [#allocation2], %s184
        // Predicated region
        $region33: #{discriminator_forward.6} parent=31 // pred_check
          %p186 = pneg %p42
        $region34: #{discriminator_forward.6} parent=31 // pred_check_branch
          %188 = sbr.rel (%p186) target = $region36
        $region35: #{discriminator_forward.6} parent=31 // pred_region
          %189 = dma.done %s182, 512
        $region36: #{discriminator_forward.6} parent=31 // pred_fallthru
          _
        // Predicated region
        $region37: #{discriminator_forward.6} parent=31 // pred_check
          %p190 = pneg %p63
        $region38: #{discriminator_forward.6} parent=31 // pred_check_branch
          %192 = sbr.rel (%p190) target = $region40
        $region39: #{discriminator_forward.6} parent=31 // pred_region
          %193 = dma.done [#allocation6], 1024
        $region40: #{discriminator_forward.6} parent=31 // pred_fallthru
          _
        // Predicated region
        $region41: #{discriminator_forward.6} parent=31 // pred_check
          %p194 = pneg %p84
        $region42: #{discriminator_forward.6} parent=31 // pred_check_branch
          %196 = sbr.rel (%p194) target = $region44
        $region43: #{discriminator_forward.6} parent=31 // pred_region
          %197 = dma.done [#allocation6], 16
        $region44: #{discriminator_forward.6} parent=31 // pred_fallthru
          _
        %s198 = sand.u32 %s29, 1
        %s199 = scalar_lea.sflag [#allocation3], %s198
        %s200 = sand.u32 %s29, 1
        %s201 = smul.addr %s200, 32
        %s202 = scalar_lea.vmem [#allocation2], %s201
        %p203 = pneg %p42
        %p204 = pneg %p39
        %p205 = pneg %p63
        %p206 = pneg %p60
        %p207 = pneg %p84
        %p208 = pneg %p81
        %p209 = pneg %p110
        %p210 = pneg %p107
        %s211 = sand.u32 %s97, 1
        %s212 = scalar_lea.sflag [#allocation4], %s211
        %s213 = sand.u32 %s97, 1
        %s214 = smul.addr %s213, 32
        %s215 = scalar_lea.vmem [#allocation8], %s214
        %v217 = vld [vmem:[%s185] sm:$0xf]
        %v218 = vld [vmem:[%s185 + $0x4] sm:$0xf]
        %v219 = vld [vmem:[%s185 + $0x8] sm:$0xf]
        %v220 = vld [vmem:[%s185 + $0xc] sm:$0xf]
        %v221 = vld [vmem:[%s185 + $0x10] sm:$0xf]
        %v222 = vld [vmem:[%s185 + $0x14] sm:$0xf]
        %v223 = vld [vmem:[%s185 + $0x18] sm:$0xf]
        %v224 = vld [vmem:[%s185 + $0x1c] sm:$0xf]
        %v225 = vld [vmem:[#allocation5] sm:$0xf]
        %v226 = vld [vmem:[#allocation5 + $0x4] sm:$0xf]
        %v227 = vld [vmem:[#allocation5 + $0x8] sm:$0xf]
        %v228 = vld [vmem:[#allocation5 + $0xc] sm:$0xf]
        %v229 = vld [vmem:[#allocation5 + $0x10] sm:$0xf]
        %v230 = vld [vmem:[#allocation5 + $0x14] sm:$0xf]
        %v231 = vld [vmem:[#allocation5 + $0x18] sm:$0xf]
        %v232 = vld [vmem:[#allocation5 + $0x1c] sm:$0xf]
        %v233 = vld [vmem:[#allocation5 + $0x20] sm:$0xf]
        %v234 = vld [vmem:[#allocation5 + $0x24] sm:$0xf]
        %v235 = vld [vmem:[#allocation5 + $0x28] sm:$0xf]
        %v236 = vld [vmem:[#allocation5 + $0x2c] sm:$0xf]
        %v237 = vld [vmem:[#allocation5 + $0x30] sm:$0xf]
        %v238 = vld [vmem:[#allocation5 + $0x34] sm:$0xf]
        %v239 = vld [vmem:[#allocation5 + $0x38] sm:$0xf]
        %v240 = vld [vmem:[#allocation5 + $0x3c] sm:$0xf]
        %v241 = vld [vmem:[#allocation7] sm:$0x1]
        %v243 = vlaneseq
        %v244 = vshrl.u32 %v243, 7
        %v245 = vsub.s32 0, %v244
        %v246 = vrot.slane %v241, %v245
        %v256 = vunpack.c.l.b16 %v217
        %v257 = vunpack.c.l.b16 %v218
        %v258 = vunpack.c.l.b16 %v219
        %v259 = vunpack.c.l.b16 %v220
        %v260 = vunpack.c.l.b16 %v221
        %v261 = vunpack.c.l.b16 %v222
        %v262 = vunpack.c.l.b16 %v223
        %v263 = vunpack.c.l.b16 %v224
        %v264 = vpack.c.b16 %v257, %v256
        %v265 = vpack.c.b16 %v259, %v258
        %v266 = vpack.c.b16 %v261, %v260
        %v267 = vpack.c.b16 %v263, %v262
        %v288 = vunpack.c.l.b16 %v225
        %v289 = vunpack.c.l.b16 %v226
        %v290 = vunpack.c.l.b16 %v227
        %v291 = vunpack.c.l.b16 %v228
        %v292 = vunpack.c.l.b16 %v229
        %v293 = vunpack.c.l.b16 %v230
        %v294 = vunpack.c.l.b16 %v231
        %v295 = vunpack.c.l.b16 %v232
        %v296 = vunpack.c.l.b16 %v233
        %v297 = vunpack.c.l.b16 %v234
        %v298 = vunpack.c.l.b16 %v235
        %v299 = vunpack.c.l.b16 %v236
        %v300 = vunpack.c.l.b16 %v237
        %v301 = vunpack.c.l.b16 %v238
        %v302 = vunpack.c.l.b16 %v239
        %v303 = vunpack.c.l.b16 %v240
        %v304 = vpack.c.b16 %v289, %v288
        %v305 = vpack.c.b16 %v291, %v290
        %v306 = vpack.c.b16 %v293, %v292
        %v307 = vpack.c.b16 %v295, %v294
        %v308 = vpack.c.b16 %v297, %v296
        %v309 = vpack.c.b16 %v299, %v298
        %v310 = vpack.c.b16 %v301, %v300
        %v311 = vpack.c.b16 %v303, %v302
        %320 = vmatprep.subr.bf16.mxu0 0
        %321 = vmatpush1.bf16.msra.mxu0 %v304
        %322 = vmatprep.subr.bf16.mxu0 0
        %323 = vmatpush1.bf16.msra.mxu0 %v305
        %324 = vmatprep.subr.bf16.mxu0 0
        %325 = vmatpush1.bf16.msra.mxu0 %v306
        %326 = vmatprep.subr.bf16.mxu0 0
        %327 = vmatpush1.bf16.msra.mxu0 %v307
        %328 = vmatprep.subr.bf16.mxu0 0
        %329 = vmatpush1.bf16.msra.mxu0 %v308
        %330 = vmatprep.subr.bf16.mxu0 0
        %331 = vmatpush1.bf16.msra.mxu0 %v309
        %332 = vmatprep.subr.bf16.mxu0 0
        %333 = vmatpush1.bf16.msra.mxu0 %v310
        %334 = vmatprep.subr.bf16.mxu0 0
        %335 = vmatpush1.bf16.msra.mxu0 %v311
        %336 = vmatprep.subr.bf16.mxu0 0
        %337 = vmatpush1.bf16.msra.mxu0 0
        %338 = vmatprep.subr.bf16.mxu0 0
        %339 = vmatpush1.bf16.msra.mxu0 0
        %340 = vmatprep.subr.bf16.mxu0 0
        %341 = vmatpush1.bf16.msra.mxu0 0
        %342 = vmatprep.subr.bf16.mxu0 0
        %343 = vmatpush1.bf16.msra.mxu0 0
        %344 = vmatprep.subr.bf16.mxu0 0
        %345 = vmatpush1.bf16.msra.mxu0 0
        %346 = vmatprep.subr.bf16.mxu0 0
        %347 = vmatpush1.bf16.msra.mxu0 0
        %348 = vmatprep.subr.bf16.mxu0 0
        %349 = vmatpush1.bf16.msra.mxu0 0
        %350 = vmatprep.subr.bf16.mxu0 0
        %351 = vmatpush1.bf16.msra.mxu0 0
        %352 = vmatprep.mubr.bf16.mxu0 0
        %353 = vmatmul.mubr.bf16.gmra.mrb[0].mxu0 %v264
        %v354 = vpop.f32.mrb[0].mxu0
        %v355 = vadd.f32 %v246, %v354
        %v356 = vpop.f32.mrb[0].mxu0
        %v357 = vpop.f32.mrb[0].mxu0
        %v358 = vadd.f32 %v246, %v357
        %v359 = vpop.f32.mrb[0].mxu0
        %360 = vmatprep.mubr.bf16.mxu0 0
        %361 = vmatmul.mubr.bf16.gmra.mrb[0].mxu0 %v265
        %v362 = vpop.f32.mrb[0].mxu0
        %v363 = vadd.f32 %v246, %v362
        %v364 = vpop.f32.mrb[0].mxu0
        %v365 = vpop.f32.mrb[0].mxu0
        %v366 = vadd.f32 %v246, %v365
        %v367 = vpop.f32.mrb[0].mxu0
        %368 = vmatprep.mubr.bf16.mxu0 0
        %369 = vmatmul.mubr.bf16.gmra.mrb[0].mxu0 %v266
        %v370 = vpop.f32.mrb[0].mxu0
        %v371 = vadd.f32 %v246, %v370
        %v372 = vpop.f32.mrb[0].mxu0
        %v373 = vpop.f32.mrb[0].mxu0
        %v374 = vadd.f32 %v246, %v373
        %v375 = vpop.f32.mrb[0].mxu0
        %376 = vmatprep.mubr.bf16.mxu0 0
        %377 = vmatmul.mubr.bf16.gmra.mrb[0].mxu0 %v267
        %v378 = vpop.f32.mrb[0].mxu0
        %v379 = vadd.f32 %v246, %v378
        %v380 = vpop.f32.mrb[0].mxu0
        %v381 = vpop.f32.mrb[0].mxu0
        %v382 = vadd.f32 %v246, %v381
        %v383 = vpop.f32.mrb[0].mxu0
        %384 = vdwg.mxu0
        %vm385 = vcmask 130048
        %v386 = vsel %vm385, %v355, 0.0
        %v387 = vsel %vm385, %v358, 0.0
        %v388 = vadd.f32 %v386, %v387
        %v389 = vsel %vm385, %v363, 0.0
        %v390 = vadd.f32 %v388, %v389
        %v391 = vsel %vm385, %v366, 0.0
        %v392 = vadd.f32 %v390, %v391
        %v393 = vsel %vm385, %v371, 0.0
        %v394 = vadd.f32 %v392, %v393
        %v395 = vsel %vm385, %v374, 0.0
        %v396 = vadd.f32 %v394, %v395
        %v397 = vsel %vm385, %v379, 0.0
        %v398 = vadd.f32 %v396, %v397
        %v399 = vsel %vm385, %v382, 0.0
        %v400 = vadd.f32 %v398, %v399
        %v401 = vrot.slane %v400, 4
        %v402 = vadd.f32 %v400, %v401
        %v403 = vrot.slane %v402, 2
        %v404 = vadd.f32 %v402, %v403
        %v405 = vrot.slane %v404, 1
        %v406 = vadd.f32 %v404, %v405
        %v407 = vmul.f32 %v355, %v355
        %v408 = vmul.f32 %v358, %v358
        %v409 = vmul.f32 %v363, %v363
        %v410 = vmul.f32 %v366, %v366
        %v411 = vmul.f32 %v371, %v371
        %v412 = vmul.f32 %v374, %v374
        %v413 = vmul.f32 %v379, %v379
        %v414 = vmul.f32 %v382, %v382
        %v415 = vsel %vm385, %v407, 0.0
        %v416 = vsel %vm385, %v408, 0.0
        %v417 = vadd.f32 %v415, %v416
        %v418 = vsel %vm385, %v409, 0.0
        %v419 = vadd.f32 %v417, %v418
        %v420 = vsel %vm385, %v410, 0.0
        %v421 = vadd.f32 %v419, %v420
        %v422 = vsel %vm385, %v411, 0.0
        %v423 = vadd.f32 %v421, %v422
        %v424 = vsel %vm385, %v412, 0.0
        %v425 = vadd.f32 %v423, %v424
        %v426 = vsel %vm385, %v413, 0.0
        %v427 = vadd.f32 %v425, %v426
        %v428 = vsel %vm385, %v414, 0.0
        %v429 = vadd.f32 %v427, %v428
        %v430 = vrot.slane %v429, 4
        %v431 = vadd.f32 %v429, %v430
        %v432 = vrot.slane %v431, 2
        %v433 = vadd.f32 %v431, %v432
        %v434 = vrot.slane %v433, 1
        %v435 = vadd.f32 %v433, %v434
        %v436 = vmul.f32 %v406, 0.015625
        %v437 = vmul.f32 %v435, 0.015625
        %v438 = vmul.f32 %v436, %v436
        %v439 = vsub.f32 %v437, %v438
        %v440 = vmax.f32 %v439, 0.0
        %v441 = vsub.f32 %v355, %v436
        %v442 = vsub.f32 %v358, %v436
        %v443 = vsub.f32 %v363, %v436
        %v444 = vsub.f32 %v366, %v436
        %v445 = vsub.f32 %v371, %v436
        %v446 = vsub.f32 %v374, %v436
        %v447 = vsub.f32 %v379, %v436
        %v448 = vsub.f32 %v382, %v436
        %v449 = vadd.f32 %v440, 1e-05
        %v450 = vrsqrt.pop %v449
        %v451 = vmul.f32 %v441, %v450
        %v452 = vmul.f32 %v442, %v450
        %v453 = vmul.f32 %v443, %v450
        %v454 = vmul.f32 %v444, %v450
        %v455 = vmul.f32 %v445, %v450
        %v456 = vmul.f32 %v446, %v450
        %v457 = vmul.f32 %v447, %v450
        %v458 = vmul.f32 %v448, %v450
        %vm459 = vcmp.ge.f32.partialorder %v451, 0.0
        %vm460 = vcmp.ge.f32.partialorder %v452, 0.0
        %vm461 = vcmp.ge.f32.partialorder %v453, 0.0
        %vm462 = vcmp.ge.f32.partialorder %v454, 0.0
        %vm463 = vcmp.ge.f32.partialorder %v455, 0.0
        %vm464 = vcmp.ge.f32.partialorder %v456, 0.0
        %vm465 = vcmp.ge.f32.partialorder %v457, 0.0
        %vm466 = vcmp.ge.f32.partialorder %v458, 0.0
        %v467 = vmul.f32 %v451, 0.2
        %v468 = vmul.f32 %v452, 0.2
        %v469 = vmul.f32 %v453, 0.2
        %v470 = vmul.f32 %v454, 0.2
        %v471 = vmul.f32 %v455, 0.2
        %v472 = vmul.f32 %v456, 0.2
        %v473 = vmul.f32 %v457, 0.2
        %v474 = vmul.f32 %v458, 0.2
        %v475 = vsel %vm459, %v451, %v467
        %v476 = vsel %vm460, %v452, %v468
        %v477 = vsel %vm461, %v453, %v469
        %v478 = vsel %vm462, %v454, %v470
        %v479 = vsel %vm463, %v455, %v471
        %v480 = vsel %vm464, %v456, %v472
        %v481 = vsel %vm465, %v457, %v473
        %v482 = vsel %vm466, %v458, %v474
        %v483 = vpack.c.bf16 %v476, %v475
        %v484 = vpack.c.bf16 %v478, %v477
        %v485 = vpack.c.bf16 %v480, %v479
        %v486 = vpack.c.bf16 %v482, %v481
        %v491 = vunpack.c.l.b16 %v483
        %v492 = vunpack.c.h.b16 %v483
        %v493 = vunpack.c.l.b16 %v484
        %v494 = vunpack.c.h.b16 %v484
        %v495 = vunpack.c.l.b16 %v485
        %v496 = vunpack.c.h.b16 %v485
        %v497 = vunpack.c.l.b16 %v486
        %v498 = vunpack.c.h.b16 %v486
        %v499 = vpack.c.b16 %v491, %v491
        %v500 = vpack.c.b16 %v492, %v492
        %v501 = vpack.c.b16 %v493, %v493
        %v502 = vpack.c.b16 %v494, %v494
        %v503 = vpack.c.b16 %v495, %v495
        %v504 = vpack.c.b16 %v496, %v496
        %v505 = vpack.c.b16 %v497, %v497
        %v506 = vpack.c.b16 %v498, %v498
        %vm515 = vcmask 125952
        %516 = vst.msk [vmem:[%s215] sm:$0xf] %vm515, %v499
        %517 = vst.msk [vmem:[%s215 + $0x4] sm:$0xf] %vm515, %v500
        %518 = vst.msk [vmem:[%s215 + $0x8] sm:$0xf] %vm515, %v501
        %519 = vst.msk [vmem:[%s215 + $0xc] sm:$0xf] %vm515, %v502
        %520 = vst.msk [vmem:[%s215 + $0x10] sm:$0xf] %vm515, %v503
        %521 = vst.msk [vmem:[%s215 + $0x14] sm:$0xf] %vm515, %v504
        %522 = vst.msk [vmem:[%s215 + $0x18] sm:$0xf] %vm515, %v505
        %523 = vst.msk [vmem:[%s215 + $0x1c] sm:$0xf] %vm515, %v506
        %s524 = sand.u32 %s97, 1
        %s525 = scalar_lea.sflag [#allocation4], %s524
        %s526 = sand.u32 %s97, 1
        %s527 = smul.addr %s526, 32
        %s528 = scalar_lea.vmem [#allocation8], %s527
        // Predicated region
        $region45: #{discriminator_forward.6} parent=31 // pred_check
          %p529 = pneg %p107
        $region46: #{discriminator_forward.6} parent=31 // pred_check_branch
          %531 = sbr.rel (%p529) target = $region48
        $region47: #{discriminator_forward.6} parent=31 // pred_region
          %s533 = ssub.s32 512, 512
          %534 = vsyncadd %s525, %s533
          %s535 = smul.addr %s21, 8
          %s536 = smul.addr %s535, 64
          %s537 = scalar_lea.hbm %s3, %s536
          %s538 = sshll.u32 %s528, 4
          %s539 = int_to_ptr.vmem [resolvable:$true] %s538
          %544 = dma.vmem_to_hbm [thread:$0]  %s539, 512, %s537, %s525, 64, 64, 4
        $region48: #{discriminator_forward.6} parent=31 // pred_fallthru
          _
      $region32: #{discriminator_forward.6} parent=5 // pred_fallthru
        _
      %p545 = scmp.le.s32.totalorder 2, %s16
      // Predicated region
      $region49: #{discriminator_forward.6} parent=5 // pred_check
        %p546 = pneg %p545
      $region50: #{discriminator_forward.6} parent=5 // pred_check_branch
        %548 = sbr.rel (%p546) target = $region52
      $region51: #{discriminator_forward.6} parent=5 // pred_region
        %s549 = ssub.s32 %s16, 2
        // Predicated region
        $region53: #{discriminator_forward.6} parent=51 // pred_check
          %p550 = pneg %p113
        $region54: #{discriminator_forward.6} parent=51 // pred_check_branch
          %552 = sbr.rel (%p550) target = $region56
        $region55: #{discriminator_forward.6} parent=51 // pred_region
          %s553 = sand.u32 %s98, 1
          %s554 = scalar_lea.sflag [#allocation4], %s553
          %s555 = sand.u32 %s98, 1
          %s556 = smul.addr %s555, 32
          %s557 = scalar_lea.vmem [#allocation8], %s556
          %558 = dma.done %s554, 512
        $region56: #{discriminator_forward.6} parent=51 // pred_fallthru
          _
      $region52: #{discriminator_forward.6} parent=5 // pred_fallthru
        _
    $region6: #{discriminator_forward.6} parent=1 // loop_footer
      %s20 = sadd.s32 1, %s16
    $region7: #{discriminator_forward.6} parent=1 // loop_footer_branch
      %15 = sbr.rel target = $region3
    $region8: #{discriminator_forward.6} parent=1 // loop_exit
      _
    %559 = vsyncpa [#allocation3], 1
    %s560 = scalar_lea.sflag [#allocation3], 1
    %561 = vsyncpa %s560, 1
    %562 = vsyncpa [#allocation6], 1
    %563 = vsyncpa [#allocation4], 1
    %s564 = scalar_lea.sflag [#allocation4], 1
    %565 = vsyncpa %s564, 1

// kernel: discriminator_forward.7
$region0: #{discriminator_forward.7}
  #allocation0 [shape = 'u32[]', space=smem, size = 0x4, offset = 0x4, fixed_abs, tag = 'smem constant byte address 0x4 - core index']
  #allocation1 [shape = 'u32[144,128]{1,0:T(1,128)}', space=vmem, size = 0x12000, scoped, tag = 'internal scratch']
  %s0 = inlined_call_operand.hbm [shape: bf16[2,16,256], index: 0, kind: input, shape index: {}]
  %s1 = inlined_call_operand.hbm [shape: bf16[256,32], index: 1, kind: input, shape index: {}]
  %s2 = inlined_call_operand.hbm [shape: f32[1,32], index: 2, kind: input, shape index: {}]
  %s3 = inlined_call_operand.hbm [shape: bf16[2,16,32], index: 3, kind: output, shape index: {}]
  %s4 = sld [smem:[#allocation0]]
  $region57: #{discriminator_forward.7} parent=0
    _
  %s6 = ssub.s32 1, %s4
  %s7 = scalar_select 0, %s6, %s4
  $region1: #{discriminator_forward.7} parent=0
    #allocation2 [shape = 'u8[16384]{0}', space=vmem, size = 0x4000, scoped, tag = 'input window, operand 0']
    #allocation3 [shape = 's32[2]{0}', space=sflag, size = 0x8, scoped, tag = 'scoped memory for discriminator_forward.7']
    #allocation4 [shape = 's32[2]{0}', space=sflag, size = 0x8, scoped, tag = 'scoped memory for discriminator_forward.7']
    #allocation5 [shape = 'u8[65536]{0}', space=vmem, size = 0x10000, scoped, tag = 'input window, operand 1, single buffered']
    #allocation6 [shape = 's32[1]{0}', space=sflag, size = 0x4, scoped, tag = 'scoped memory for discriminator_forward.7']
    #allocation7 [shape = 'u8[512]{0}', space=vmem, size = 0x400, scoped, tag = 'input window, operand 2, single buffered']
    #allocation8 [shape = 'u8[8192]{0}', space=vmem, size = 0x2000, scoped, tag = 'output window, operand 0']
    %8 = vsyncpa [#allocation3], 0
    %s9 = scalar_lea.sflag [#allocation3], 1
    %10 = vsyncpa %s9, 0
    %11 = vsyncpa [#allocation6], 0
    %12 = vsyncpa [#allocation4], 0
    %s13 = scalar_lea.sflag [#allocation4], 1
    %14 = vsyncpa %s13, 0
    loop: start=0, step=1, limit=4
    $region2: #{discriminator_forward.7} parent=1 // loop_pre_header
      _
    $region3: #{discriminator_forward.7} parent=1 // loop_header
      %s16 = sphi 0, %s20
      %p17 = scmp.ge.s32.totalorder %s16, 4
      %s26 = sphi 0, %s28
      %s29 = sphi 0, %s26
      %s30 = sphi 0, %s29
      %s46 = sphi 0, %s30
      %s50 = sphi 0, %s50
      %s52 = sphi 0, %s50
      %s53 = sphi 0, %s52
      %s67 = sphi 0, %s53
      %s71 = sphi 0, %s71
      %s73 = sphi 0, %s71
      %s74 = sphi 0, %s73
      %s88 = sphi 0, %s74
      %s94 = sphi 0, %s96
      %s97 = sphi 0, %s94
      %s98 = sphi 0, %s97
      %s114 = sphi 0, %s98
    $region4: #{discriminator_forward.7} parent=1 // loop_header_branch
      %19 = sbr.rel (%p17) target = $region8
    $region5: #{discriminator_forward.7} parent=1 // loop_body
      %s21 = ssub.s32 %s16, 1
      %s22 = ssub.s32 %s16, 2
      %s23 = sadd.s32 %s16, 1
      %s24 = ssub.s32 %s16, %s23
      %p25 = scmp.eq.s32.totalorder %s24, 0
      %s27 = sadd.s32 %s26, 1
      %s28 = scalar_select %p25, %s26, %s27
      %p31 = pneg %p25
      %p32 = scmp.eq.s32.totalorder %s16, 1
      %p33 = por %p31, %p32
      %p34 = scmp.ne.s32.totalorder %s26, %s29
      %p35 = scmp.eq.s32.totalorder %s16, 0
      %p36 = por %p34, %p35
      %p37 = scmp.ne.s32.totalorder %s26, %s29
      %p38 = scmp.eq.s32.totalorder %s21, 1
      %p39 = por %p37, %p38
      %p40 = scmp.ne.s32.totalorder %s29, %s30
      %p41 = scmp.eq.s32.totalorder %s21, 0
      %p42 = por %p40, %p41
      %p43 = scmp.ne.s32.totalorder %s29, %s30
      %p44 = scmp.eq.s32.totalorder %s22, 1
      %p45 = por %p43, %p44
      %p47 = scmp.ne.s32.totalorder %s30, %s46
      %p48 = scmp.eq.s32.totalorder %s22, 0
      %p49 = por %p47, %p48
      %s51 = sadd.s32 %s50, 1
      %p54 = scmp.eq.s32.totalorder %s16, 1
      %p55 = scmp.ne.s32.totalorder %s50, %s52
      %p56 = scmp.eq.s32.totalorder %s16, 0
      %p57 = por %p55, %p56
      %p58 = scmp.ne.s32.totalorder %s50, %s52
      %p59 = scmp.eq.s32.totalorder %s21, 1
      %p60 = por %p58, %p59
      %p61 = scmp.ne.s32.totalorder %s52, %s53
      %p62 = scmp.eq.s32.totalorder %s21, 0
      %p63 = por %p61, %p62
      %p64 = scmp.ne.s32.totalorder %s52, %s53
      %p65 = scmp.eq.s32.totalorder %s22, 1
      %p66 = por %p64, %p65
      %p68 = scmp.ne.s32.totalorder %s53, %s67
      %p69 = scmp.eq.s32.totalorder %s22, 0
      %p70 = por %p68, %p69
      %s72 = sadd.s32 %s71, 1
      %p75 = scmp.eq.s32.totalorder %s16, 1
      %p76 = scmp.ne.s32.totalorder %s71, %s73
      %p77 = scmp.eq.s32.totalorder %s16, 0
      %p78 = por %p76, %p77
      %p79 = scmp.ne.s32.totalorder %s71, %s73
      %p80 = scmp.eq.s32.totalorder %s21, 1
      %p81 = por %p79, %p80
      %p82 = scmp.ne.s32.totalorder %s73, %s74
      %p83 = scmp.eq.s32.totalorder %s21, 0
      %p84 = por %p82, %p83
      %p85 = scmp.ne.s32.totalorder %s73, %s74
      %p86 = scmp.eq.s32.totalorder %s22, 1
      %p87 = por %p85, %p86
      %p89 = scmp.ne.s32.totalorder %s74, %s88
      %p90 = scmp.eq.s32.totalorder %s22, 0
      %p91 = por %p89, %p90
      %s92 = ssub.s32 %s16, %s23
      %p93 = scmp.eq.s32.totalorder %s92, 0
      %s95 = sadd.s32 %s94, 1
      %s96 = scalar_select %p93, %s94, %s95
      %p99 = pneg %p93
      %p100 = scmp.eq.s32.totalorder %s16, 1
      %p101 = por %p99, %p100
      %p102 = scmp.ne.s32.totalorder %s94, %s97
      %p103 = scmp.eq.s32.totalorder %s16, 0
      %p104 = por %p102, %p103
      %p105 = scmp.ne.s32.totalorder %s94, %s97
      %p106 = scmp.eq.s32.totalorder %s21, 1
      %p107 = por %p105, %p106
      %p108 = scmp.ne.s32.totalorder %s97, %s98
      %p109 = scmp.eq.s32.totalorder %s21, 0
      %p110 = por %p108, %p109
      %p111 = scmp.ne.s32.totalorder %s97, %s98
      %p112 = scmp.eq.s32.totalorder %s22, 1
      %p113 = por %p111, %p112
      %p115 = scmp.ne.s32.totalorder %s98, %s114
      %p116 = scmp.eq.s32.totalorder %s22, 0
      %p117 = por %p115, %p116
      %p118 = scmp.le.s32.totalorder 1, %s16
      %p119 = scmp.lt.s32.totalorder %s16, 3
      %p120 = pnand %p118, %p119
      %p121 = pneg %p120
      // Predicated region
      $region9: #{discriminator_forward.7} parent=5 // pred_check
        _
      $region10: #{discriminator_forward.7} parent=5 // pred_check_branch
        %123 = sbr.rel (%p120) target = $region12
      $region11: #{discriminator_forward.7} parent=5 // pred_region
        %s124 = ssub.s32 %s16, 1
        // Predicated region
        $region13: #{discriminator_forward.7} parent=11 // pred_check
          %p125 = pneg %p63
        $region14: #{discriminator_forward.7} parent=11 // pred_check_branch
          %127 = sbr.rel (%p125) target = $region16
        $region15: #{discriminator_forward.7} parent=11 // pred_region
          %s129 = ssub.s32 2048, 2048
          %130 = vsyncadd [#allocation6], %s129
          %s131 = sshll.u32 [#allocation5], 4
          %s132 = int_to_ptr.vmem [resolvable:$true] %s131
          %137 = dma.hbm_to_vmem [thread:$0]  %s1, 2048, %s132, [#allocation6], 64, 64, 4
        $region16: #{discriminator_forward.7} parent=11 // pred_fallthru
          _
        // Predicated region
        $region17: #{discriminator_forward.7} parent=11 // pred_check
          %p138 = pneg %p84
        $region18: #{discriminator_forward.7} parent=11 // pred_check_branch
          %140 = sbr.rel (%p138) target = $region20
        $region19: #{discriminator_forward.7} parent=11 // pred_region
          %s142 = ssub.s32 16, 16
          %143 = vsyncadd [#allocation6], %s142
          %s145 = sshll.u32 [#allocation7], 4
          %s146 = int_to_ptr.vmem [resolvable:$true] %s145
          %148 = dma.hbm_to_vmem [thread:$0]  %s2, 16, %s146, [#allocation6]
        $region20: #{discriminator_forward.7} parent=11 // pred_fallthru
          _
      $region12: #{discriminator_forward.7} parent=5 // pred_fallthru
        _
      %p149 = scmp.lt.s32.totalorder %s16, 2
      // Predicated region
      $region21: #{discriminator_forward.7} parent=5 // pred_check
        %p150 = pneg %p149
      $region22: #{discriminator_forward.7} parent=5 // pred_check_branch
        %152 = sbr.rel (%p150) target = $region24
      $region23: #{discriminator_forward.7} parent=5 // pred_region
        // Predicated region
        $region25: #{discriminator_forward.7} parent=23 // pred_check
          %p153 = pneg %p36
        $region26: #{discriminator_forward.7} parent=23 // pred_check_branch
          %155 = sbr.rel (%p153) target = $region28
        $region27: #{discriminator_forward.7} parent=23 // pred_region
          %s156 = sand.u32 %s26, 1
          %s157 = scalar_lea.sflag [#allocation3], %s156
          %s158 = sand.u32 %s26, 1
          %s159 = smul.addr %s158, 16
          %s160 = scalar_lea.vmem [#allocation2], %s159
          %s162 = ssub.s32 256, 256
          %163 = vsyncadd %s157, %s162
          %s164 = smul.addr %s16, 4
          %s165 = smul.addr %s164, 64
          %s166 = scalar_lea.hbm %s0, %s165
          %s167 = sshll.u32 %s160, 4
          %s168 = int_to_ptr.vmem [resolvable:$true] %s167
          %173 = dma.hbm_to_vmem [thread:$0]  %s166, 256, %s168, %s157, 128, 128, 8
        $region28: #{discriminator_forward.7} parent=23 // pred_fallthru
          _
      $region24: #{discriminator_forward.7} parent=5 // pred_fallthru
        _
      %p174 = scmp.le.s32.totalorder 1, %s16
      %p175 = scmp.lt.s32.totalorder %s16, 3
      %p176 = pnand %p174, %p175
      %p177 = pneg %p176
      // Predicated region
      $region29: #{discriminator_forward.7} parent=5 // pred_check
        _
      $region30: #{discriminator_forward.7} parent=5 // pred_check_branch
        %179 = sbr.rel (%p176) target = $region32
      $region31: #{discriminator_forward.7} parent=5 // pred_region
        %s180 = ssub.s32 %s16, 1
        %s181 = sand.u32 %s29, 1
        %s182 = scalar_lea.sflag [#allocation3], %s181
        %s183 = sand.u32 %s29, 1
        %s184 = smul.addr %s183, 16
        %s185 = scalar_lea.vmem [#allocation2], %s184
        // Predicated region
        $region33: #{discriminator_forward.7} parent=31 // pred_check
          %p186 = pneg %p42
        $region34: #{discriminator_forward.7} parent=31 // pred_check_branch
          %188 = sbr.rel (%p186) target = $region36
        $region35: #{discriminator_forward.7} parent=31 // pred_region
          %189 = dma.done %s182, 256
        $region36: #{discriminator_forward.7} parent=31 // pred_fallthru
          _
        // Predicated region
        $region37: #{discriminator_forward.7} parent=31 // pred_check
          %p190 = pneg %p63
        $region38: #{discriminator_forward.7} parent=31 // pred_check_branch
          %192 = sbr.rel (%p190) target = $region40
        $region39: #{discriminator_forward.7} parent=31 // pred_region
          %193 = dma.done [#allocation6], 2048
        $region40: #{discriminator_forward.7} parent=31 // pred_fallthru
          _
        // Predicated region
        $region41: #{discriminator_forward.7} parent=31 // pred_check
          %p194 = pneg %p84
        $region42: #{discriminator_forward.7} parent=31 // pred_check_branch
          %196 = sbr.rel (%p194) target = $region44
        $region43: #{discriminator_forward.7} parent=31 // pred_region
          %197 = dma.done [#allocation6], 16
        $region44: #{discriminator_forward.7} parent=31 // pred_fallthru
          _
        %s198 = sand.u32 %s29, 1
        %s199 = scalar_lea.sflag [#allocation3], %s198
        %s200 = sand.u32 %s29, 1
        %s201 = smul.addr %s200, 16
        %s202 = scalar_lea.vmem [#allocation2], %s201
        %p203 = pneg %p42
        %p204 = pneg %p39
        %p205 = pneg %p63
        %p206 = pneg %p60
        %p207 = pneg %p84
        %p208 = pneg %p81
        %p209 = pneg %p110
        %p210 = pneg %p107
        %s211 = sand.u32 %s97, 1
        %s212 = scalar_lea.sflag [#allocation4], %s211
        %s213 = sand.u32 %s97, 1
        %s214 = smul.addr %s213, 8
        %s215 = scalar_lea.vmem [#allocation8], %s214
        %v217 = vld [vmem:[%s185] sm:$0xff]
        %v218 = vld [vmem:[%s185 + $0x8] sm:$0xff]
        %v219 = vld [vmem:[#allocation5] sm:$0xf]
        %v220 = vld [vmem:[#allocation5 + $0x4] sm:$0xf]
        %v221 = vld [vmem:[#allocation5 + $0x8] sm:$0xf]
        %v222 = vld [vmem:[#allocation5 + $0xc] sm:$0xf]
        %v223 = vld [vmem:[#allocation5 + $0x10] sm:$0xf]
        %v224 = vld [vmem:[#allocation5 + $0x14] sm:$0xf]
        %v225 = vld [vmem:[#allocation5 + $0x18] sm:$0xf]
        %v226 = vld [vmem:[#allocation5 + $0x1c] sm:$0xf]
        %v227 = vld [vmem:[#allocation5 + $0x20] sm:$0xf]
        %v228 = vld [vmem:[#allocation5 + $0x24] sm:$0xf]
        %v229 = vld [vmem:[#allocation5 + $0x28] sm:$0xf]
        %v230 = vld [vmem:[#allocation5 + $0x2c] sm:$0xf]
        %v231 = vld [vmem:[#allocation5 + $0x30] sm:$0xf]
        %v232 = vld [vmem:[#allocation5 + $0x34] sm:$0xf]
        %v233 = vld [vmem:[#allocation5 + $0x38] sm:$0xf]
        %v234 = vld [vmem:[#allocation5 + $0x3c] sm:$0xf]
        %v235 = vld [vmem:[#allocation5 + $0x40] sm:$0xf]
        %v236 = vld [vmem:[#allocation5 + $0x44] sm:$0xf]
        %v237 = vld [vmem:[#allocation5 + $0x48] sm:$0xf]
        %v238 = vld [vmem:[#allocation5 + $0x4c] sm:$0xf]
        %v239 = vld [vmem:[#allocation5 + $0x50] sm:$0xf]
        %v240 = vld [vmem:[#allocation5 + $0x54] sm:$0xf]
        %v241 = vld [vmem:[#allocation5 + $0x58] sm:$0xf]
        %v242 = vld [vmem:[#allocation5 + $0x5c] sm:$0xf]
        %v243 = vld [vmem:[#allocation5 + $0x60] sm:$0xf]
        %v244 = vld [vmem:[#allocation5 + $0x64] sm:$0xf]
        %v245 = vld [vmem:[#allocation5 + $0x68] sm:$0xf]
        %v246 = vld [vmem:[#allocation5 + $0x6c] sm:$0xf]
        %v247 = vld [vmem:[#allocation5 + $0x70] sm:$0xf]
        %v248 = vld [vmem:[#allocation5 + $0x74] sm:$0xf]
        %v249 = vld [vmem:[#allocation5 + $0x78] sm:$0xf]
        %v250 = vld [vmem:[#allocation5 + $0x7c] sm:$0xf]
        %v251 = vld [vmem:[#allocation7] sm:$0x1]
        %v253 = vlaneseq
        %v254 = vshrl.u32 %v253, 7
        %v255 = vsub.s32 0, %v254
        %v256 = vrot.slane %v251, %v255
        %v260 = vunpack.c.l.b16 %v217
        %v261 = vunpack.c.h.b16 %v217
        %v262 = vunpack.c.l.b16 %v218
        %v263 = vunpack.c.h.b16 %v218
        %v264 = vpack.c.b16 %v262, %v260
        %v265 = vpack.c.b16 %v263, %v261
        %v300 = vunpack.c.l.b16 %v219
        %v301 = vunpack.c.l.b16 %v220
        %v302 = vunpack.c.l.b16 %v221
        %v303 = vunpack.c.l.b16 %v222
        %v304 = vunpack.c.l.b16 %v223
        %v305 = vunpack.c.l.b16 %v224
        %v306 = vunpack.c.l.b16 %v225
        %v307 = vunpack.c.l.b16 %v226
        %v308 = vunpack.c.l.b16 %v227
        %v309 = vunpack.c.l.b16 %v228
        %v310 = vunpack.c.l.b16 %v229
        %v311 = vunpack.c.l.b16 %v230
        %v312 = vunpack.c.l.b16 %v231
        %v313 = vunpack.c.l.b16 %v232
        %v314 = vunpack.c.l.b16 %v233
        %v315 = vunpack.c.l.b16 %v234
        %v316 = vunpack.c.l.b16 %v235
        %v317 = vunpack.c.l.b16 %v236
        %v318 = vunpack.c.l.b16 %v237
        %v319 = vunpack.c.l.b16 %v238
        %v320 = vunpack.c.l.b16 %v239
        %v321 = vunpack.c.l.b16 %v240
        %v322 = vunpack.c.l.b16 %v241
        %v323 = vunpack.c.l.b16 %v242
        %v324 = vunpack.c.l.b16 %v243
        %v325 = vunpack.c.l.b16 %v244
        %v326 = vunpack.c.l.b16 %v245
        %v327 = vunpack.c.l.b16 %v246
        %v328 = vunpack.c.l.b16 %v247
        %v329 = vunpack.c.l.b16 %v248
        %v330 = vunpack.c.l.b16 %v249
        %v331 = vunpack.c.l.b16 %v250
        %v332 = vpack.c.b16 %v301, %v300
        %v333 = vpack.c.b16 %v303, %v302
        %v334 = vpack.c.b16 %v305, %v304
        %v335 = vpack.c.b16 %v307, %v306
        %v336 = vpack.c.b16 %v309, %v308
        %v337 = vpack.c.b16 %v311, %v310
        %v338 = vpack.c.b16 %v313, %v312
        %v339 = vpack.c.b16 %v315, %v314
        %v340 = vpack.c.b16 %v317, %v316
        %v341 = vpack.c.b16 %v319, %v318
        %v342 = vpack.c.b16 %v321, %v320
        %v343 = vpack.c.b16 %v323, %v322
        %v344 = vpack.c.b16 %v325, %v324
        %v345 = vpack.c.b16 %v327, %v326
        %v346 = vpack.c.b16 %v329, %v328
        %v347 = vpack.c.b16 %v331, %v330
        %364 = vmatprep.subr.bf16.mxu0 0
        %365 = vmatpush1.bf16.msra.mxu0 %v332
        %366 = vmatprep.subr.bf16.mxu0 0
        %367 = vmatpush1.bf16.msra.mxu0 %v333
        %368 = vmatprep.subr.bf16.mxu0 0
        %369 = vmatpush1.bf16.msra.mxu0 %v334
        %370 = vmatprep.subr.bf16.mxu0 0
        %371 = vmatpush1.bf16.msra.mxu0 %v335
        %372 = vmatprep.subr.bf16.mxu0 0
        %373 = vmatpush1.bf16.msra.mxu0 %v336
        %374 = vmatprep.subr.bf16.mxu0 0
        %375 = vmatpush1.bf16.msra.mxu0 %v337
        %376 = vmatprep.subr.bf16.mxu0 0
        %377 = vmatpush1.bf16.msra.mxu0 %v338
        %378 = vmatprep.subr.bf16.mxu0 0
        %379 = vmatpush1.bf16.msra.mxu0 %v339
        %380 = vmatprep.subr.bf16.mxu0 0
        %381 = vmatpush1.bf16.msra.mxu0 %v340
        %382 = vmatprep.subr.bf16.mxu0 0
        %383 = vmatpush1.bf16.msra.mxu0 %v341
        %384 = vmatprep.subr.bf16.mxu0 0
        %385 = vmatpush1.bf16.msra.mxu0 %v342
        %386 = vmatprep.subr.bf16.mxu0 0
        %387 = vmatpush1.bf16.msra.mxu0 %v343
        %388 = vmatprep.subr.bf16.mxu0 0
        %389 = vmatpush1.bf16.msra.mxu0 %v344
        %390 = vmatprep.subr.bf16.mxu0 0
        %391 = vmatpush1.bf16.msra.mxu0 %v345
        %392 = vmatprep.subr.bf16.mxu0 0
        %393 = vmatpush1.bf16.msra.mxu0 %v346
        %394 = vmatprep.subr.bf16.mxu0 0
        %395 = vmatpush1.bf16.msra.mxu0 %v347
        %396 = vmatprep.mubr.bf16.mxu0 %v265
        %397 = vmatmul.mubr.bf16.gmra.mrb[0].mxu0 %v264
        %v398 = vpop.f32.mrb[0].mxu0
        %v399 = vadd.f32 %v256, %v398
        %v400 = vpop.f32.mrb[0].mxu0
        %v401 = vpop.f32.mrb[0].mxu0
        %v402 = vadd.f32 %v256, %v401
        %v403 = vpop.f32.mrb[0].mxu0
        %404 = vdwg.mxu0
        %vm405 = vcmask 261120
        %v406 = vsel %vm405, %v399, 0.0
        %v407 = vsel %vm405, %v402, 0.0
        %v408 = vadd.f32 %v406, %v407
        %v409 = vrot.slane %v408, 4
        %v410 = vadd.f32 %v408, %v409
        %v411 = vrot.slane %v410, 2
        %v412 = vadd.f32 %v410, %v411
        %v413 = vrot.slane %v412, 1
        %v414 = vadd.f32 %v412, %v413
        %v415 = vmul.f32 %v399, %v399
        %v416 = vmul.f32 %v402, %v402
        %v417 = vsel %vm405, %v415, 0.0
        %v418 = vsel %vm405, %v416, 0.0
        %v419 = vadd.f32 %v417, %v418
        %v420 = vrot.slane %v419, 4
        %v421 = vadd.f32 %v419, %v420
        %v422 = vrot.slane %v421, 2
        %v423 = vadd.f32 %v421, %v422
        %v424 = vrot.slane %v423, 1
        %v425 = vadd.f32 %v423, %v424
        %v426 = vmul.f32 %v414, 0.0625
        %v427 = vmul.f32 %v425, 0.0625
        %v428 = vmul.f32 %v426, %v426
        %v429 = vsub.f32 %v427, %v428
        %v430 = vmax.f32 %v429, 0.0
        %v431 = vsub.f32 %v399, %v426
        %v432 = vsub.f32 %v402, %v426
        %v433 = vadd.f32 %v430, 1e-05
        %v434 = vrsqrt.pop %v433
        %v435 = vmul.f32 %v431, %v434
        %v436 = vmul.f32 %v432, %v434
        %vm437 = vcmp.ge.f32.partialorder %v435, 0.0
        %vm438 = vcmp.ge.f32.partialorder %v436, 0.0
        %v439 = vmul.f32 %v435, 0.2
        %v440 = vmul.f32 %v436, 0.2
        %v441 = vsel %vm437, %v435, %v439
        %v442 = vsel %vm438, %v436, %v440
        %v443 = vpack.c.bf16 %v442, %v441
        %v445 = vunpack.c.l.b16 %v443
        %v446 = vunpack.c.h.b16 %v443
        %v447 = vpack.c.b16 %v445, %v445
        %v448 = vpack.c.b16 %v446, %v446
        %vm451 = vcmask 257024
        %452 = vst.msk [vmem:[%s215] sm:$0xf] %vm451, %v447
        %453 = vst.msk [vmem:[%s215 + $0x4] sm:$0xf] %vm451, %v448
        %s454 = sand.u32 %s97, 1
        %s455 = scalar_lea.sflag [#allocation4], %s454
        %s456 = sand.u32 %s97, 1
        %s457 = smul.addr %s456, 8
        %s458 = scalar_lea.vmem [#allocation8], %s457
        // Predicated region
        $region45: #{discriminator_forward.7} parent=31 // pred_check
          %p459 = pneg %p107
        $region46: #{discriminator_forward.7} parent=31 // pred_check_branch
          %461 = sbr.rel (%p459) target = $region48
        $region47: #{discriminator_forward.7} parent=31 // pred_region
          %s463 = ssub.s32 128, 128
          %464 = vsyncadd %s455, %s463
          %s465 = smul.addr %s21, 2
          %s466 = smul.addr %s465, 64
          %s467 = scalar_lea.hbm %s3, %s466
          %s468 = sshll.u32 %s458, 4
          %s469 = int_to_ptr.vmem [resolvable:$true] %s468
          %474 = dma.vmem_to_hbm [thread:$0]  %s469, 128, %s467, %s455, 64, 64, 4
        $region48: #{discriminator_forward.7} parent=31 // pred_fallthru
          _
      $region32: #{discriminator_forward.7} parent=5 // pred_fallthru
        _
      %p475 = scmp.le.s32.totalorder 2, %s16
      // Predicated region
      $region49: #{discriminator_forward.7} parent=5 // pred_check
        %p476 = pneg %p475
      $region50: #{discriminator_forward.7} parent=5 // pred_check_branch
        %478 = sbr.rel (%p476) target = $region52
      $region51: #{discriminator_forward.7} parent=5 // pred_region
        %s479 = ssub.s32 %s16, 2
        // Predicated region
        $region53: #{discriminator_forward.7} parent=51 // pred_check
          %p480 = pneg %p113
        $region54: #{discriminator_forward.7} parent=51 // pred_check_branch
          %482 = sbr.rel (%p480) target = $region56
        $region55: #{discriminator_forward.7} parent=51 // pred_region
          %s483 = sand.u32 %s98, 1
          %s484 = scalar_lea.sflag [#allocation4], %s483
          %s485 = sand.u32 %s98, 1
          %s486 = smul.addr %s485, 8
          %s487 = scalar_lea.vmem [#allocation8], %s486
          %488 = dma.done %s484, 128
        $region56: #{discriminator_forward.7} parent=51 // pred_fallthru
          _
      $region52: #{discriminator_forward.7} parent=5 // pred_fallthru
        _
    $region6: #{discriminator_forward.7} parent=1 // loop_footer
      %s20 = sadd.s32 1, %s16
    $region7: #{discriminator_forward.7} parent=1 // loop_footer_branch
      %15 = sbr.rel target = $region3
    $region8: #{discriminator_forward.7} parent=1 // loop_exit
      _
    %489 = vsyncpa [#allocation3], 1
    %s490 = scalar_lea.sflag [#allocation3], 1
    %491 = vsyncpa %s490, 1
    %492 = vsyncpa [#allocation6], 1
    %493 = vsyncpa [#allocation4], 1
    %s494 = scalar_lea.sflag [#allocation4], 1
    %495 = vsyncpa %s494, 1

// kernel: discriminator_forward.8
$region0: #{discriminator_forward.8}
  #allocation0 [shape = 'u32[]', space=smem, size = 0x4, offset = 0x4, fixed_abs, tag = 'smem constant byte address 0x4 - core index']
  #allocation1 [shape = 'u32[144,128]{1,0:T(1,128)}', space=vmem, size = 0x12000, scoped, tag = 'internal scratch']
  %s0 = inlined_call_operand.hbm [shape: bf16[2,9,512], index: 0, kind: input, shape index: {}]
  %s1 = inlined_call_operand.hbm [shape: bf16[512,64], index: 1, kind: input, shape index: {}]
  %s2 = inlined_call_operand.hbm [shape: f32[1,64], index: 2, kind: input, shape index: {}]
  %s3 = inlined_call_operand.hbm [shape: bf16[2,9,64], index: 3, kind: output, shape index: {}]
  %s4 = sld [smem:[#allocation0]]
  $region57: #{discriminator_forward.8} parent=0
    _
  %s6 = ssub.s32 1, %s4
  %s7 = scalar_select 0, %s6, %s4
  $region1: #{discriminator_forward.8} parent=0
    #allocation2 [shape = 'u8[32768]{0}', space=vmem, size = 0x8000, scoped, tag = 'input window, operand 0']
    #allocation3 [shape = 's32[2]{0}', space=sflag, size = 0x8, scoped, tag = 'scoped memory for discriminator_forward.8']
    #allocation4 [shape = 's32[2]{0}', space=sflag, size = 0x8, scoped, tag = 'scoped memory for discriminator_forward.8']
    #allocation5 [shape = 'u8[131072]{0}', space=vmem, size = 0x20000, scoped, tag = 'input window, operand 1, single buffered']
    #allocation6 [shape = 's32[1]{0}', space=sflag, size = 0x4, scoped, tag = 'scoped memory for discriminator_forward.8']
    #allocation7 [shape = 'u8[512]{0}', space=vmem, size = 0x400, scoped, tag = 'input window, operand 2, single buffered']
    #allocation8 [shape = 'u8[8192]{0}', space=vmem, size = 0x2000, scoped, tag = 'output window, operand 0']
    %8 = vsyncpa [#allocation3], 0
    %s9 = scalar_lea.sflag [#allocation3], 1
    %10 = vsyncpa %s9, 0
    %11 = vsyncpa [#allocation6], 0
    %12 = vsyncpa [#allocation4], 0
    %s13 = scalar_lea.sflag [#allocation4], 1
    %14 = vsyncpa %s13, 0
    loop: start=0, step=1, limit=4
    $region2: #{discriminator_forward.8} parent=1 // loop_pre_header
      _
    $region3: #{discriminator_forward.8} parent=1 // loop_header
      %s16 = sphi 0, %s20
      %p17 = scmp.ge.s32.totalorder %s16, 4
      %s26 = sphi 0, %s28
      %s29 = sphi 0, %s26
      %s30 = sphi 0, %s29
      %s46 = sphi 0, %s30
      %s50 = sphi 0, %s50
      %s52 = sphi 0, %s50
      %s53 = sphi 0, %s52
      %s67 = sphi 0, %s53
      %s71 = sphi 0, %s71
      %s73 = sphi 0, %s71
      %s74 = sphi 0, %s73
      %s88 = sphi 0, %s74
      %s94 = sphi 0, %s96
      %s97 = sphi 0, %s94
      %s98 = sphi 0, %s97
      %s114 = sphi 0, %s98
    $region4: #{discriminator_forward.8} parent=1 // loop_header_branch
      %19 = sbr.rel (%p17) target = $region8
    $region5: #{discriminator_forward.8} parent=1 // loop_body
      %s21 = ssub.s32 %s16, 1
      %s22 = ssub.s32 %s16, 2
      %s23 = sadd.s32 %s16, 1
      %s24 = ssub.s32 %s16, %s23
      %p25 = scmp.eq.s32.totalorder %s24, 0
      %s27 = sadd.s32 %s26, 1
      %s28 = scalar_select %p25, %s26, %s27
      %p31 = pneg %p25
      %p32 = scmp.eq.s32.totalorder %s16, 1
      %p33 = por %p31, %p32
      %p34 = scmp.ne.s32.totalorder %s26, %s29
      %p35 = scmp.eq.s32.totalorder %s16, 0
      %p36 = por %p34, %p35
      %p37 = scmp.ne.s32.totalorder %s26, %s29
      %p38 = scmp.eq.s32.totalorder %s21, 1
      %p39 = por %p37, %p38
      %p40 = scmp.ne.s32.totalorder %s29, %s30
      %p41 = scmp.eq.s32.totalorder %s21, 0
      %p42 = por %p40, %p41
      %p43 = scmp.ne.s32.totalorder %s29, %s30
      %p44 = scmp.eq.s32.totalorder %s22, 1
      %p45 = por %p43, %p44
      %p47 = scmp.ne.s32.totalorder %s30, %s46
      %p48 = scmp.eq.s32.totalorder %s22, 0
      %p49 = por %p47, %p48
      %s51 = sadd.s32 %s50, 1
      %p54 = scmp.eq.s32.totalorder %s16, 1
      %p55 = scmp.ne.s32.totalorder %s50, %s52
      %p56 = scmp.eq.s32.totalorder %s16, 0
      %p57 = por %p55, %p56
      %p58 = scmp.ne.s32.totalorder %s50, %s52
      %p59 = scmp.eq.s32.totalorder %s21, 1
      %p60 = por %p58, %p59
      %p61 = scmp.ne.s32.totalorder %s52, %s53
      %p62 = scmp.eq.s32.totalorder %s21, 0
      %p63 = por %p61, %p62
      %p64 = scmp.ne.s32.totalorder %s52, %s53
      %p65 = scmp.eq.s32.totalorder %s22, 1
      %p66 = por %p64, %p65
      %p68 = scmp.ne.s32.totalorder %s53, %s67
      %p69 = scmp.eq.s32.totalorder %s22, 0
      %p70 = por %p68, %p69
      %s72 = sadd.s32 %s71, 1
      %p75 = scmp.eq.s32.totalorder %s16, 1
      %p76 = scmp.ne.s32.totalorder %s71, %s73
      %p77 = scmp.eq.s32.totalorder %s16, 0
      %p78 = por %p76, %p77
      %p79 = scmp.ne.s32.totalorder %s71, %s73
      %p80 = scmp.eq.s32.totalorder %s21, 1
      %p81 = por %p79, %p80
      %p82 = scmp.ne.s32.totalorder %s73, %s74
      %p83 = scmp.eq.s32.totalorder %s21, 0
      %p84 = por %p82, %p83
      %p85 = scmp.ne.s32.totalorder %s73, %s74
      %p86 = scmp.eq.s32.totalorder %s22, 1
      %p87 = por %p85, %p86
      %p89 = scmp.ne.s32.totalorder %s74, %s88
      %p90 = scmp.eq.s32.totalorder %s22, 0
      %p91 = por %p89, %p90
      %s92 = ssub.s32 %s16, %s23
      %p93 = scmp.eq.s32.totalorder %s92, 0
      %s95 = sadd.s32 %s94, 1
      %s96 = scalar_select %p93, %s94, %s95
      %p99 = pneg %p93
      %p100 = scmp.eq.s32.totalorder %s16, 1
      %p101 = por %p99, %p100
      %p102 = scmp.ne.s32.totalorder %s94, %s97
      %p103 = scmp.eq.s32.totalorder %s16, 0
      %p104 = por %p102, %p103
      %p105 = scmp.ne.s32.totalorder %s94, %s97
      %p106 = scmp.eq.s32.totalorder %s21, 1
      %p107 = por %p105, %p106
      %p108 = scmp.ne.s32.totalorder %s97, %s98
      %p109 = scmp.eq.s32.totalorder %s21, 0
      %p110 = por %p108, %p109
      %p111 = scmp.ne.s32.totalorder %s97, %s98
      %p112 = scmp.eq.s32.totalorder %s22, 1
      %p113 = por %p111, %p112
      %p115 = scmp.ne.s32.totalorder %s98, %s114
      %p116 = scmp.eq.s32.totalorder %s22, 0
      %p117 = por %p115, %p116
      %p118 = scmp.le.s32.totalorder 1, %s16
      %p119 = scmp.lt.s32.totalorder %s16, 3
      %p120 = pnand %p118, %p119
      %p121 = pneg %p120
      // Predicated region
      $region9: #{discriminator_forward.8} parent=5 // pred_check
        _
      $region10: #{discriminator_forward.8} parent=5 // pred_check_branch
        %123 = sbr.rel (%p120) target = $region12
      $region11: #{discriminator_forward.8} parent=5 // pred_region
        %s124 = ssub.s32 %s16, 1
        // Predicated region
        $region13: #{discriminator_forward.8} parent=11 // pred_check
          %p125 = pneg %p63
        $region14: #{discriminator_forward.8} parent=11 // pred_check_branch
          %127 = sbr.rel (%p125) target = $region16
        $region15: #{discriminator_forward.8} parent=11 // pred_region
          %s129 = ssub.s32 4096, 4096
          %130 = vsyncadd [#allocation6], %s129
          %s131 = sshll.u32 [#allocation5], 4
          %s132 = int_to_ptr.vmem [resolvable:$true] %s131
          %137 = dma.hbm_to_vmem [thread:$0]  %s1, 4096, %s132, [#allocation6], 64, 64, 4
        $region16: #{discriminator_forward.8} parent=11 // pred_fallthru
          _
        // Predicated region
        $region17: #{discriminator_forward.8} parent=11 // pred_check
          %p138 = pneg %p84
        $region18: #{discriminator_forward.8} parent=11 // pred_check_branch
          %140 = sbr.rel (%p138) target = $region20
        $region19: #{discriminator_forward.8} parent=11 // pred_region
          %s142 = ssub.s32 16, 16
          %143 = vsyncadd [#allocation6], %s142
          %s145 = sshll.u32 [#allocation7], 4
          %s146 = int_to_ptr.vmem [resolvable:$true] %s145
          %148 = dma.hbm_to_vmem [thread:$0]  %s2, 16, %s146, [#allocation6]
        $region20: #{discriminator_forward.8} parent=11 // pred_fallthru
          _
      $region12: #{discriminator_forward.8} parent=5 // pred_fallthru
        _
      %p149 = scmp.lt.s32.totalorder %s16, 2
      // Predicated region
      $region21: #{discriminator_forward.8} parent=5 // pred_check
        %p150 = pneg %p149
      $region22: #{discriminator_forward.8} parent=5 // pred_check_branch
        %152 = sbr.rel (%p150) target = $region24
      $region23: #{discriminator_forward.8} parent=5 // pred_region
        // Predicated region
        $region25: #{discriminator_forward.8} parent=23 // pred_check
          %p153 = pneg %p36
        $region26: #{discriminator_forward.8} parent=23 // pred_check_branch
          %155 = sbr.rel (%p153) target = $region28
        $region27: #{discriminator_forward.8} parent=23 // pred_region
          %s156 = sand.u32 %s26, 1
          %s157 = scalar_lea.sflag [#allocation3], %s156
          %s158 = sand.u32 %s26, 1
          %s159 = smul.addr %s158, 32
          %s160 = scalar_lea.vmem [#allocation2], %s159
          %s162 = ssub.s32 512, 512
          %163 = vsyncadd %s157, %s162
          %s164 = smul.addr %s16, 8
          %s165 = smul.addr %s164, 64
          %s166 = scalar_lea.hbm %s0, %s165
          %s167 = sshll.u32 %s160, 4
          %s168 = int_to_ptr.vmem [resolvable:$true] %s167
          %173 = dma.hbm_to_vmem [thread:$0]  %s166, 512, %s168, %s157, 256, 256, 16
        $region28: #{discriminator_forward.8} parent=23 // pred_fallthru
          _
      $region24: #{discriminator_forward.8} parent=5 // pred_fallthru
        _
      %p174 = scmp.le.s32.totalorder 1, %s16
      %p175 = scmp.lt.s32.totalorder %s16, 3
      %p176 = pnand %p174, %p175
      %p177 = pneg %p176
      // Predicated region
      $region29: #{discriminator_forward.8} parent=5 // pred_check
        _
      $region30: #{discriminator_forward.8} parent=5 // pred_check_branch
        %179 = sbr.rel (%p176) target = $region32
      $region31: #{discriminator_forward.8} parent=5 // pred_region
        %s180 = ssub.s32 %s16, 1
        %s181 = sand.u32 %s29, 1
        %s182 = scalar_lea.sflag [#allocation3], %s181
        %s183 = sand.u32 %s29, 1
        %s184 = smul.addr %s183, 32
        %s185 = scalar_lea.vmem [#allocation2], %s184
        // Predicated region
        $region33: #{discriminator_forward.8} parent=31 // pred_check
          %p186 = pneg %p42
        $region34: #{discriminator_forward.8} parent=31 // pred_check_branch
          %188 = sbr.rel (%p186) target = $region36
        $region35: #{discriminator_forward.8} parent=31 // pred_region
          %189 = dma.done %s182, 512
        $region36: #{discriminator_forward.8} parent=31 // pred_fallthru
          _
        // Predicated region
        $region37: #{discriminator_forward.8} parent=31 // pred_check
          %p190 = pneg %p63
        $region38: #{discriminator_forward.8} parent=31 // pred_check_branch
          %192 = sbr.rel (%p190) target = $region40
        $region39: #{discriminator_forward.8} parent=31 // pred_region
          %193 = dma.done [#allocation6], 4096
        $region40: #{discriminator_forward.8} parent=31 // pred_fallthru
          _
        // Predicated region
        $region41: #{discriminator_forward.8} parent=31 // pred_check
          %p194 = pneg %p84
        $region42: #{discriminator_forward.8} parent=31 // pred_check_branch
          %196 = sbr.rel (%p194) target = $region44
        $region43: #{discriminator_forward.8} parent=31 // pred_region
          %197 = dma.done [#allocation6], 16
        $region44: #{discriminator_forward.8} parent=31 // pred_fallthru
          _
        %s198 = sand.u32 %s29, 1
        %s199 = scalar_lea.sflag [#allocation3], %s198
        %s200 = sand.u32 %s29, 1
        %s201 = smul.addr %s200, 32
        %s202 = scalar_lea.vmem [#allocation2], %s201
        %p203 = pneg %p42
        %p204 = pneg %p39
        %p205 = pneg %p63
        %p206 = pneg %p60
        %p207 = pneg %p84
        %p208 = pneg %p81
        %p209 = pneg %p110
        %p210 = pneg %p107
        %s211 = sand.u32 %s97, 1
        %s212 = scalar_lea.sflag [#allocation4], %s211
        %s213 = sand.u32 %s97, 1
        %s214 = smul.addr %s213, 8
        %s215 = scalar_lea.vmem [#allocation8], %s214
        %v217 = vld [vmem:[%s185] sm:$0xff]
        %v218 = vld [vmem:[%s185 + $0x8] sm:$0xff]
        %v219 = vld [vmem:[%s185 + $0x10] sm:$0x11]
        %v220 = vld [vmem:[%s185 + $0x18] sm:$0x11]
        %v221 = vld [vmem:[#allocation5] sm:$0xf]
        %v222 = vld [vmem:[#allocation5 + $0x4] sm:$0xf]
        %v223 = vld [vmem:[#allocation5 + $0x8] sm:$0xf]
        %v224 = vld [vmem:[#allocation5 + $0xc] sm:$0xf]
        %v225 = vld [vmem:[#allocation5 + $0x10] sm:$0xf]
        %v226 = vld [vmem:[#allocation5 + $0x14] sm:$0xf]
        %v227 = vld [vmem:[#allocation5 + $0x18] sm:$0xf]
        %v228 = vld [vmem:[#allocation5 + $0x1c] sm:$0xf]
        %v229 = vld [vmem:[#allocation5 + $0x20] sm:$0xf]
        %v230 = vld [vmem:[#allocation5 + $0x24] sm:$0xf]
        %v231 = vld [vmem:[#allocation5 + $0x28] sm:$0xf]
        %v232 = vld [vmem:[#allocation5 + $0x2c] sm:$0xf]
        %v233 = vld [vmem:[#allocation5 + $0x30] sm:$0xf]
        %v234 = vld [vmem:[#allocation5 + $0x34] sm:$0xf]
        %v235 = vld [vmem:[#allocation5 + $0x38] sm:$0xf]
        %v236 = vld [vmem:[#allocation5 + $0x3c] sm:$0xf]
        %v237 = vld [vmem:[#allocation5 + $0x40] sm:$0xf]
        %v238 = vld [vmem:[#allocation5 + $0x44] sm:$0xf]
        %v239 = vld [vmem:[#allocation5 + $0x48] sm:$0xf]
        %v240 = vld [vmem:[#allocation5 + $0x4c] sm:$0xf]
        %v241 = vld [vmem:[#allocation5 + $0x50] sm:$0xf]
        %v242 = vld [vmem:[#allocation5 + $0x54] sm:$0xf]
        %v243 = vld [vmem:[#allocation5 + $0x58] sm:$0xf]
        %v244 = vld [vmem:[#allocation5 + $0x5c] sm:$0xf]
        %v245 = vld [vmem:[#allocation5 + $0x60] sm:$0xf]
        %v246 = vld [vmem:[#allocation5 + $0x64] sm:$0xf]
        %v247 = vld [vmem:[#allocation5 + $0x68] sm:$0xf]
        %v248 = vld [vmem:[#allocation5 + $0x6c] sm:$0xf]
        %v249 = vld [vmem:[#allocation5 + $0x70] sm:$0xf]
        %v250 = vld [vmem:[#allocation5 + $0x74] sm:$0xf]
        %v251 = vld [vmem:[#allocation5 + $0x78] sm:$0xf]
        %v252 = vld [vmem:[#allocation5 + $0x7c] sm:$0xf]
        %v253 = vld [vmem:[#allocation5 + $0x80] sm:$0xf]
        %v254 = vld [vmem:[#allocation5 + $0x84] sm:$0xf]
        %v255 = vld [vmem:[#allocation5 + $0x88] sm:$0xf]
        %v256 = vld [vmem:[#allocation5 + $0x8c] sm:$0xf]
        %v257 = vld [vmem:[#allocation5 + $0x90] sm:$0xf]
        %v258 = vld [vmem:[#allocation5 + $0x94] sm:$0xf]
        %v259 = vld [vmem:[#allocation5 + $0x98] sm:$0xf]
        %v260 = vld [vmem:[#allocation5 + $0x9c] sm:$0xf]
        %v261 = vld [vmem:[#allocation5 + $0xa0] sm:$0xf]
        %v262 = vld [vmem:[#allocation5 + $0xa4] sm:$0xf]
        %v263 = vld [vmem:[#allocation5 + $0xa8] sm:$0xf]
        %v264 = vld [vmem:[#allocation5 + $0xac] sm:$0xf]
        %v265 = vld [vmem:[#allocation5 + $0xb0] sm:$0xf]
        %v266 = vld [vmem:[#allocation5 + $0xb4] sm:$0xf]
        %v267 = vld [vmem:[#allocation5 + $0xb8] sm:$0xf]
        %v268 = vld [vmem:[#allocation5 + $0xbc] sm:$0xf]
        %v269 = vld [vmem:[#allocation5 + $0xc0] sm:$0xf]
        %v270 = vld [vmem:[#allocation5 + $0xc4] sm:$0xf]
        %v271 = vld [vmem:[#allocation5 + $0xc8] sm:$0xf]
        %v272 = vld [vmem:[#allocation5 + $0xcc] sm:$0xf]
        %v273 = vld [vmem:[#allocation5 + $0xd0] sm:$0xf]
        %v274 = vld [vmem:[#allocation5 + $0xd4] sm:$0xf]
        %v275 = vld [vmem:[#allocation5 + $0xd8] sm:$0xf]
        %v276 = vld [vmem:[#allocation5 + $0xdc] sm:$0xf]
        %v277 = vld [vmem:[#allocation5 + $0xe0] sm:$0xf]
        %v278 = vld [vmem:[#allocation5 + $0xe4] sm:$0xf]
        %v279 = vld [vmem:[#allocation5 + $0xe8] sm:$0xf]
        %v280 = vld [vmem:[#allocation5 + $0xec] sm:$0xf]
        %v281 = vld [vmem:[#allocation5 + $0xf0] sm:$0xf]
        %v282 = vld [vmem:[#allocation5 + $0xf4] sm:$0xf]
        %v283 = vld [vmem:[#allocation5 + $0xf8] sm:$0xf]
        %v284 = vld [vmem:[#allocation5 + $0xfc] sm:$0xf]
        %v285 = vld [vmem:[#allocation7] sm:$0x1]
        %v287 = vlaneseq
        %v288 = vshrl.u32 %v287, 7
        %v289 = vsub.s32 0, %v288
        %v290 = vrot.slane %v285, %v289
        %v296 = vunpack.c.l.b16 %v217
        %v297 = vunpack.c.h.b16 %v217
        %v298 = vunpack.c.l.b16 %v218
        %v299 = vunpack.c.h.b16 %v218
        %v300 = vunpack.c.l.b16 %v219
        %v301 = vunpack.c.h.b16 %v219
        %v302 = vunpack.c.l.b16 %v220
        %v303 = vunpack.c.h.b16 %v220
        %v304 = vpack.c.b16 %v300, %v296
        %v305 = vpack.c.b16 %v301, %v297
        %v306 = vpack.c.b16 %v302, %v298
        %v307 = vpack.c.b16 %v303, %v299
        %v376 = vunpack.c.l.b16 %v221
        %v377 = vunpack.c.l.b16 %v222
        %v378 = vunpack.c.l.b16 %v223
        %v379 = vunpack.c.l.b16 %v224
        %v380 = vunpack.c.l.b16 %v225
        %v381 = vunpack.c.l.b16 %v226
        %v382 = vunpack.c.l.b16 %v227
        %v383 = vunpack.c.l.b16 %v228
        %v384 = vunpack.c.l.b16 %v229
        %v385 = vunpack.c.l.b16 %v230
        %v386 = vunpack.c.l.b16 %v231
        %v387 = vunpack.c.l.b16 %v232
        %v388 = vunpack.c.l.b16 %v233
        %v389 = vunpack.c.l.b16 %v234
        %v390 = vunpack.c.l.b16 %v235
        %v391 = vunpack.c.l.b16 %v236
        %v392 = vunpack.c.l.b16 %v237
        %v393 = vunpack.c.l.b16 %v238
        %v394 = vunpack.c.l.b16 %v239
        %v395 = vunpack.c.l.b16 %v240
        %v396 = vunpack.c.l.b16 %v241
        %v397 = vunpack.c.l.b16 %v242
        %v398 = vunpack.c.l.b16 %v243
        %v399 = vunpack.c.l.b16 %v244
        %v400 = vunpack.c.l.b16 %v245
        %v401 = vunpack.c.l.b16 %v246
        %v402 = vunpack.c.l.b16 %v247
        %v403 = vunpack.c.l.b16 %v248
        %v404 = vunpack.c.l.b16 %v249
        %v405 = vunpack.c.l.b16 %v250
        %v406 = vunpack.c.l.b16 %v251
        %v407 = vunpack.c.l.b16 %v252
        %v408 = vunpack.c.l.b16 %v253
        %v409 = vunpack.c.l.b16 %v254
        %v410 = vunpack.c.l.b16 %v255
        %v411 = vunpack.c.l.b16 %v256
        %v412 = vunpack.c.l.b16 %v257
        %v413 = vunpack.c.l.b16 %v258
        %v414 = vunpack.c.l.b16 %v259
        %v415 = vunpack.c.l.b16 %v260
        %v416 = vunpack.c.l.b16 %v261
        %v417 = vunpack.c.l.b16 %v262
        %v418 = vunpack.c.l.b16 %v263
        %v419 = vunpack.c.l.b16 %v264
        %v420 = vunpack.c.l.b16 %v265
        %v421 = vunpack.c.l.b16 %v266
        %v422 = vunpack.c.l.b16 %v267
        %v423 = vunpack.c.l.b16 %v268
        %v424 = vunpack.c.l.b16 %v269
        %v425 = vunpack.c.l.b16 %v270
        %v426 = vunpack.c.l.b16 %v271
        %v427 = vunpack.c.l.b16 %v272
        %v428 = vunpack.c.l.b16 %v273
        %v429 = vunpack.c.l.b16 %v274
        %v430 = vunpack.c.l.b16 %v275
        %v431 = vunpack.c.l.b16 %v276
        %v432 = vunpack.c.l.b16 %v277
        %v433 = vunpack.c.l.b16 %v278
        %v434 = vunpack.c.l.b16 %v279
        %v435 = vunpack.c.l.b16 %v280
        %v436 = vunpack.c.l.b16 %v281
        %v437 = vunpack.c.l.b16 %v282
        %v438 = vunpack.c.l.b16 %v283
        %v439 = vunpack.c.l.b16 %v284
        %v440 = vpack.c.b16 %v377, %v376
        %v441 = vpack.c.b16 %v379, %v378
        %v442 = vpack.c.b16 %v381, %v380
        %v443 = vpack.c.b16 %v383, %v382
        %v444 = vpack.c.b16 %v385, %v384
        %v445 = vpack.c.b16 %v387, %v386
        %v446 = vpack.c.b16 %v389, %v388
        %v447 = vpack.c.b16 %v391, %v390
        %v448 = vpack.c.b16 %v393, %v392
        %v449 = vpack.c.b16 %v395, %v394
        %v450 = vpack.c.b16 %v397, %v396
        %v451 = vpack.c.b16 %v399, %v398
        %v452 = vpack.c.b16 %v401, %v400
        %v453 = vpack.c.b16 %v403, %v402
        %v454 = vpack.c.b16 %v405, %v404
        %v455 = vpack.c.b16 %v407, %v406
        %v456 = vpack.c.b16 %v409, %v408
        %v457 = vpack.c.b16 %v411, %v410
        %v458 = vpack.c.b16 %v413, %v412
        %v459 = vpack.c.b16 %v415, %v414
        %v460 = vpack.c.b16 %v417, %v416
        %v461 = vpack.c.b16 %v419, %v418
        %v462 = vpack.c.b16 %v421, %v420
        %v463 = vpack.c.b16 %v423, %v422
        %v464 = vpack.c.b16 %v425, %v424
        %v465 = vpack.c.b16 %v427, %v426
        %v466 = vpack.c.b16 %v429, %v428
        %v467 = vpack.c.b16 %v431, %v430
        %v468 = vpack.c.b16 %v433, %v432
        %v469 = vpack.c.b16 %v435, %v434
        %v470 = vpack.c.b16 %v437, %v436
        %v471 = vpack.c.b16 %v439, %v438
        %504 = vmatprep.subr.bf16.mxu0 0
        %505 = vmatpush1.bf16.msra.mxu0 %v440
        %506 = vmatprep.subr.bf16.mxu0 0
        %507 = vmatpush1.bf16.msra.mxu0 %v441
        %508 = vmatprep.subr.bf16.mxu0 0
        %509 = vmatpush1.bf16.msra.mxu0 %v442
        %510 = vmatprep.subr.bf16.mxu0 0
        %511 = vmatpush1.bf16.msra.mxu0 %v443
        %512 = vmatprep.subr.bf16.mxu0 0
        %513 = vmatpush1.bf16.msra.mxu0 %v444
        %514 = vmatprep.subr.bf16.mxu0 0
        %515 = vmatpush1.bf16.msra.mxu0 %v445
        %516 = vmatprep.subr.bf16.mxu0 0
        %517 = vmatpush1.bf16.msra.mxu0 %v446
        %518 = vmatprep.subr.bf16.mxu0 0
        %519 = vmatpush1.bf16.msra.mxu0 %v447
        %520 = vmatprep.subr.bf16.mxu0 0
        %521 = vmatpush1.bf16.msra.mxu0 %v448
        %522 = vmatprep.subr.bf16.mxu0 0
        %523 = vmatpush1.bf16.msra.mxu0 %v449
        %524 = vmatprep.subr.bf16.mxu0 0
        %525 = vmatpush1.bf16.msra.mxu0 %v450
        %526 = vmatprep.subr.bf16.mxu0 0
        %527 = vmatpush1.bf16.msra.mxu0 %v451
        %528 = vmatprep.subr.bf16.mxu0 0
        %529 = vmatpush1.bf16.msra.mxu0 %v452
        %530 = vmatprep.subr.bf16.mxu0 0
        %531 = vmatpush1.bf16.msra.mxu0 %v453
        %532 = vmatprep.subr.bf16.mxu0 0
        %533 = vmatpush1.bf16.msra.mxu0 %v454
        %534 = vmatprep.subr.bf16.mxu0 0
        %535 = vmatpush1.bf16.msra.mxu0 %v455
        %536 = vmatprep.mubr.bf16.mxu0 %v305
        %537 = vmatmul.mubr.bf16.gmra.mrb[0].mxu0 %v304
        %v538 = vpop.f32.mrb[0].mxu0
        %v539 = vadd.f32 %v290, %v538
        %v540 = vpop.f32.mrb[0].mxu0
        %v541 = vpop.f32.mrb[0].mxu0
        %v542 = vadd.f32 %v290, %v541
        %v543 = vpop.f32.mrb[0].mxu0
        %544 = vdwg.mxu0
        %545 = vmatprep.subr.bf16.mxu0 0
        %546 = vmatpush1.bf16.msra.mxu0 %v456
        %547 = vmatprep.subr.bf16.mxu0 0
        %548 = vmatpush1.bf16.msra.mxu0 %v457
        %549 = vmatprep.subr.bf16.mxu0 0
        %550 = vmatpush1.bf16.msra.mxu0 %v458
        %551 = vmatprep.subr.bf16.mxu0 0
        %552 = vmatpush1.bf16.msra.mxu0 %v459
        %553 = vmatprep.subr.bf16.mxu0 0
        %554 = vmatpush1.bf16.msra.mxu0 %v460
        %555 = vmatprep.subr.bf16.mxu0 0
        %556 = vmatpush1.bf16.msra.mxu0 %v461
        %557 = vmatprep.subr.bf16.mxu0 0
        %558 = vmatpush1.bf16.msra.mxu0 %v462
        %559 = vmatprep.subr.bf16.mxu0 0
        %560 = vmatpush1.bf16.msra.mxu0 %v463
        %561 = vmatprep.subr.bf16.mxu0 0
        %562 = vmatpush1.bf16.msra.mxu0 %v464
        %563 = vmatprep.subr.bf16.mxu0 0
        %564 = vmatpush1.bf16.msra.mxu0 %v465
        %565 = vmatprep.subr.bf16.mxu0 0
        %566 = vmatpush1.bf16.msra.mxu0 %v466
        %567 = vmatprep.subr.bf16.mxu0 0
        %568 = vmatpush1.bf16.msra.mxu0 %v467
        %569 = vmatprep.subr.bf16.mxu0 0
        %570 = vmatpush1.bf16.msra.mxu0 %v468
        %571 = vmatprep.subr.bf16.mxu0 0
        %572 = vmatpush1.bf16.msra.mxu0 %v469
        %573 = vmatprep.subr.bf16.mxu0 0
        %574 = vmatpush1.bf16.msra.mxu0 %v470
        %575 = vmatprep.subr.bf16.mxu0 0
        %576 = vmatpush1.bf16.msra.mxu0 %v471
        %577 = vmatprep.mubr.bf16.mxu0 %v307
        %578 = vmatmul.mubr.bf16.gmra.mrb[0].mxu0 %v306
        %v579 = vpop.f32.mrb[0].mxu0
        %v580 = vadd.f32 %v539, %v579
        %v581 = vpop.f32.mrb[0].mxu0
        %v582 = vpop.f32.mrb[0].mxu0
        %v583 = vadd.f32 %v542, %v582
        %v584 = vpop.f32.mrb[0].mxu0
        %585 = vdwg.mxu0
        %vm586 = vcmask 523264
        %v587 = vsel %vm586, %v580, 0.0
        %vm588 = vcmask 516096
        %v589 = vsel %vm588, %v583, 0.0
        %v590 = vadd.f32 %v587, %v589
        %v591 = vrot.slane %v590, 4
        %v592 = vadd.f32 %v590, %v591
        %v593 = vrot.slane %v592, 2
        %v594 = vadd.f32 %v592, %v593
        %v595 = vrot.slane %v594, 1
        %v596 = vadd.f32 %v594, %v595
        %v597 = vmul.f32 %v580, %v580
        %v598 = vmul.f32 %v583, %v583
        %v599 = vsel %vm586, %v597, 0.0
        %v600 = vsel %vm588, %v598, 0.0
        %v601 = vadd.f32 %v599, %v600
        %v602 = vrot.slane %v601, 4
        %v603 = vadd.f32 %v601, %v602
        %v604 = vrot.slane %v603, 2
        %v605 = vadd.f32 %v603, %v604
        %v606 = vrot.slane %v605, 1
        %v607 = vadd.f32 %v605, %v606
        %v608 = vmul.f32 %v596, 0.11111111
        %v609 = vmul.f32 %v607, 0.11111111
        %v610 = vmul.f32 %v608, %v608
        %v611 = vsub.f32 %v609, %v610
        %v612 = vmax.f32 %v611, 0.0
        %v613 = vsub.f32 %v580, %v608
        %v614 = vsub.f32 %v583, %v608
        %v615 = vadd.f32 %v612, 1e-05
        %v616 = vrsqrt.pop %v615
        %v617 = vmul.f32 %v613, %v616
        %v618 = vmul.f32 %v614, %v616
        %vm619 = vcmp.ge.f32.partialorder %v617, 0.0
        %vm620 = vcmp.ge.f32.partialorder %v618, 0.0
        %v621 = vmul.f32 %v617, 0.2
        %v622 = vmul.f32 %v618, 0.2
        %v623 = vsel %vm619, %v617, %v621
        %v624 = vsel %vm620, %v618, %v622
        %v625 = vpack.c.bf16 %v624, %v623
        %v627 = vunpack.c.l.b16 %v625
        %v628 = vunpack.c.h.b16 %v625
        %v629 = vpack.c.b16 %v627, %v627
        %v630 = vpack.c.b16 %v628, %v628
        %vm633 = vcmask 519168
        %634 = vst.msk [vmem:[%s215] sm:$0xf] %vm633, %v629
        %vm635 = vcmask 516096
        %vm636 = vsmask.f32 256
        %vm637 = vmand %vm635, %vm636
        %v638 = vld [vmem:[%s215 + $0x4] sm:$0x1]
        %v639 = vsel %vm637, %v630, %v638
        %640 = vst [vmem:[%s215 + $0x4] sm:$0x1] %v639
        %s641 = sand.u32 %s97, 1
        %s642 = scalar_lea.sflag [#allocation4], %s641
        %s643 = sand.u32 %s97, 1
        %s644 = smul.addr %s643, 8
        %s645 = scalar_lea.vmem [#allocation8], %s644
        // Predicated region
        $region45: #{discriminator_forward.8} parent=31 // pred_check
          %p646 = pneg %p107
        $region46: #{discriminator_forward.8} parent=31 // pred_check_branch
          %648 = sbr.rel (%p646) target = $region48
        $region47: #{discriminator_forward.8} parent=31 // pred_region
          %s650 = ssub.s32 128, 128
          %651 = vsyncadd %s642, %s650
          %s652 = smul.addr %s21, 2
          %s653 = smul.addr %s652, 64
          %s654 = scalar_lea.hbm %s3, %s653
          %s655 = sshll.u32 %s645, 4
          %s656 = int_to_ptr.vmem [resolvable:$true] %s655
          %661 = dma.vmem_to_hbm [thread:$0]  %s656, 128, %s654, %s642, 64, 64, 4
        $region48: #{discriminator_forward.8} parent=31 // pred_fallthru
          _
      $region32: #{discriminator_forward.8} parent=5 // pred_fallthru
        _
      %p662 = scmp.le.s32.totalorder 2, %s16
      // Predicated region
      $region49: #{discriminator_forward.8} parent=5 // pred_check
        %p663 = pneg %p662
      $region50: #{discriminator_forward.8} parent=5 // pred_check_branch
        %665 = sbr.rel (%p663) target = $region52
      $region51: #{discriminator_forward.8} parent=5 // pred_region
        %s666 = ssub.s32 %s16, 2
        // Predicated region
        $region53: #{discriminator_forward.8} parent=51 // pred_check
          %p667 = pneg %p113
        $region54: #{discriminator_forward.8} parent=51 // pred_check_branch
          %669 = sbr.rel (%p667) target = $region56
        $region55: #{discriminator_forward.8} parent=51 // pred_region
          %s670 = sand.u32 %s98, 1
          %s671 = scalar_lea.sflag [#allocation4], %s670
          %s672 = sand.u32 %s98, 1
          %s673 = smul.addr %s672, 8
          %s674 = scalar_lea.vmem [#allocation8], %s673
          %675 = dma.done %s671, 128
        $region56: #{discriminator_forward.8} parent=51 // pred_fallthru
          _
      $region52: #{discriminator_forward.8} parent=5 // pred_fallthru
        _
    $region6: #{discriminator_forward.8} parent=1 // loop_footer
      %s20 = sadd.s32 1, %s16
    $region7: #{discriminator_forward.8} parent=1 // loop_footer_branch
      %15 = sbr.rel target = $region3
    $region8: #{discriminator_forward.8} parent=1 // loop_exit
      _
    %676 = vsyncpa [#allocation3], 1
    %s677 = scalar_lea.sflag [#allocation3], 1
    %678 = vsyncpa %s677, 1
    %679 = vsyncpa [#allocation6], 1
    %680 = vsyncpa [#allocation4], 1
    %s681 = scalar_lea.sflag [#allocation4], 1
    %682 = vsyncpa %s681, 1

// kernel: discriminator_forward.9
$region0: #{discriminator_forward.9}
  #allocation0 [shape = 'u32[]', space=smem, size = 0x4, offset = 0x4, fixed_abs, tag = 'smem constant byte address 0x4 - core index']
  #allocation1 [shape = 'u32[144,128]{1,0:T(1,128)}', space=vmem, size = 0x12000, scoped, tag = 'internal scratch']
  #allocation2 [shape = 'f32[1,1]{1,0:T(1,128)S(1)}', space=vmem, size = 0x200, scoped, tag = 'scoped memory for discriminator_forward.9']
  %s0 = inlined_call_operand.hbm [shape: bf16[2,1024,4], index: 0, kind: input, shape index: {}]
  %s1 = inlined_call_operand.hbm [shape: bf16[1,1024], index: 1, kind: input, shape index: {}]
  %s2 = inlined_call_operand.<no memory space> [shape: f32[1,1], index: 2, kind: input, shape index: {}]
  %s3 = inlined_call_operand.hbm [shape: f32[2,1,4], index: 3, kind: output, shape index: {}]
  %s4 = sld [smem:[#allocation0]]
  $region53: #{discriminator_forward.9} parent=0
    _
  %s6 = ssub.s32 1, %s4
  %s7 = scalar_select 0, %s6, %s4
  %v8 = vstv %s2
  %9 = vst [vmem:[#allocation2] sm:$0x1] %v8
  $region1: #{discriminator_forward.9} parent=0
    #allocation3 [shape = 'u8[524288]{0}', space=vmem, size = 0x80000, scoped, tag = 'input window, operand 0']
    #allocation4 [shape = 's32[2]{0}', space=sflag, size = 0x8, scoped, tag = 'scoped memory for discriminator_forward.9']
    #allocation5 [shape = 's32[2]{0}', space=sflag, size = 0x8, scoped, tag = 'scoped memory for discriminator_forward.9']
    #allocation6 [shape = 'u8[4096]{0}', space=vmem, size = 0x1000, scoped, tag = 'input window, operand 1, single buffered']
    #allocation7 [shape = 's32[1]{0}', space=sflag, size = 0x4, scoped, tag = 'scoped memory for discriminator_forward.9']
    #allocation8 [shape = 'u8[1024]{0}', space=vmem, size = 0x400, scoped, tag = 'output window, operand 0']
    %10 = vsyncpa [#allocation4], 0
    %s11 = scalar_lea.sflag [#allocation4], 1
    %12 = vsyncpa %s11, 0
    %13 = vsyncpa [#allocation7], 0
    %14 = vsyncpa [#allocation5], 0
    %s15 = scalar_lea.sflag [#allocation5], 1
    %16 = vsyncpa %s15, 0
    loop: start=0, step=1, limit=4
    $region2: #{discriminator_forward.9} parent=1 // loop_pre_header
      _
    $region3: #{discriminator_forward.9} parent=1 // loop_header
      %s18 = sphi 0, %s22
      %p19 = scmp.ge.s32.totalorder %s18, 4
      %s28 = sphi 0, %s30
      %s31 = sphi 0, %s28
      %s32 = sphi 0, %s31
      %s48 = sphi 0, %s32
      %s52 = sphi 0, %s52
      %s54 = sphi 0, %s52
      %s55 = sphi 0, %s54
      %s69 = sphi 0, %s55
      %s73 = sphi 0, %s73
      %s75 = sphi 0, %s73
      %s76 = sphi 0, %s75
      %s90 = sphi 0, %s76
      %s96 = sphi 0, %s98
      %s99 = sphi 0, %s96
      %s100 = sphi 0, %s99
      %s116 = sphi 0, %s100
    $region4: #{discriminator_forward.9} parent=1 // loop_header_branch
      %21 = sbr.rel (%p19) target = $region8
    $region5: #{discriminator_forward.9} parent=1 // loop_body
      %s23 = ssub.s32 %s18, 1
      %s24 = ssub.s32 %s18, 2
      %s25 = sadd.s32 %s18, 1
      %s26 = ssub.s32 %s18, %s25
      %p27 = scmp.eq.s32.totalorder %s26, 0
      %s29 = sadd.s32 %s28, 1
      %s30 = scalar_select %p27, %s28, %s29
      %p33 = pneg %p27
      %p34 = scmp.eq.s32.totalorder %s18, 1
      %p35 = por %p33, %p34
      %p36 = scmp.ne.s32.totalorder %s28, %s31
      %p37 = scmp.eq.s32.totalorder %s18, 0
      %p38 = por %p36, %p37
      %p39 = scmp.ne.s32.totalorder %s28, %s31
      %p40 = scmp.eq.s32.totalorder %s23, 1
      %p41 = por %p39, %p40
      %p42 = scmp.ne.s32.totalorder %s31, %s32
      %p43 = scmp.eq.s32.totalorder %s23, 0
      %p44 = por %p42, %p43
      %p45 = scmp.ne.s32.totalorder %s31, %s32
      %p46 = scmp.eq.s32.totalorder %s24, 1
      %p47 = por %p45, %p46
      %p49 = scmp.ne.s32.totalorder %s32, %s48
      %p50 = scmp.eq.s32.totalorder %s24, 0
      %p51 = por %p49, %p50
      %s53 = sadd.s32 %s52, 1
      %p56 = scmp.eq.s32.totalorder %s18, 1
      %p57 = scmp.ne.s32.totalorder %s52, %s54
      %p58 = scmp.eq.s32.totalorder %s18, 0
      %p59 = por %p57, %p58
      %p60 = scmp.ne.s32.totalorder %s52, %s54
      %p61 = scmp.eq.s32.totalorder %s23, 1
      %p62 = por %p60, %p61
      %p63 = scmp.ne.s32.totalorder %s54, %s55
      %p64 = scmp.eq.s32.totalorder %s23, 0
      %p65 = por %p63, %p64
      %p66 = scmp.ne.s32.totalorder %s54, %s55
      %p67 = scmp.eq.s32.totalorder %s24, 1
      %p68 = por %p66, %p67
      %p70 = scmp.ne.s32.totalorder %s55, %s69
      %p71 = scmp.eq.s32.totalorder %s24, 0
      %p72 = por %p70, %p71
      %s74 = sadd.s32 %s73, 1
      %p77 = scmp.eq.s32.totalorder %s18, 1
      %p78 = scmp.ne.s32.totalorder %s73, %s75
      %p79 = scmp.eq.s32.totalorder %s18, 0
      %p80 = por %p78, %p79
      %p81 = scmp.ne.s32.totalorder %s73, %s75
      %p82 = scmp.eq.s32.totalorder %s23, 1
      %p83 = por %p81, %p82
      %p84 = scmp.ne.s32.totalorder %s75, %s76
      %p85 = scmp.eq.s32.totalorder %s23, 0
      %p86 = por %p84, %p85
      %p87 = scmp.ne.s32.totalorder %s75, %s76
      %p88 = scmp.eq.s32.totalorder %s24, 1
      %p89 = por %p87, %p88
      %p91 = scmp.ne.s32.totalorder %s76, %s90
      %p92 = scmp.eq.s32.totalorder %s24, 0
      %p93 = por %p91, %p92
      %s94 = ssub.s32 %s18, %s25
      %p95 = scmp.eq.s32.totalorder %s94, 0
      %s97 = sadd.s32 %s96, 1
      %s98 = scalar_select %p95, %s96, %s97
      %p101 = pneg %p95
      %p102 = scmp.eq.s32.totalorder %s18, 1
      %p103 = por %p101, %p102
      %p104 = scmp.ne.s32.totalorder %s96, %s99
      %p105 = scmp.eq.s32.totalorder %s18, 0
      %p106 = por %p104, %p105
      %p107 = scmp.ne.s32.totalorder %s96, %s99
      %p108 = scmp.eq.s32.totalorder %s23, 1
      %p109 = por %p107, %p108
      %p110 = scmp.ne.s32.totalorder %s99, %s100
      %p111 = scmp.eq.s32.totalorder %s23, 0
      %p112 = por %p110, %p111
      %p113 = scmp.ne.s32.totalorder %s99, %s100
      %p114 = scmp.eq.s32.totalorder %s24, 1
      %p115 = por %p113, %p114
      %p117 = scmp.ne.s32.totalorder %s100, %s116
      %p118 = scmp.eq.s32.totalorder %s24, 0
      %p119 = por %p117, %p118
      %p120 = scmp.le.s32.totalorder 1, %s18
      %p121 = scmp.lt.s32.totalorder %s18, 3
      %p122 = pnand %p120, %p121
      %p123 = pneg %p122
      // Predicated region
      $region9: #{discriminator_forward.9} parent=5 // pred_check
        _
      $region10: #{discriminator_forward.9} parent=5 // pred_check_branch
        %125 = sbr.rel (%p122) target = $region12
      $region11: #{discriminator_forward.9} parent=5 // pred_region
        %s126 = ssub.s32 %s18, 1
        // Predicated region
        $region13: #{discriminator_forward.9} parent=11 // pred_check
          %p127 = pneg %p65
        $region14: #{discriminator_forward.9} parent=11 // pred_check_branch
          %129 = sbr.rel (%p127) target = $region16
        $region15: #{discriminator_forward.9} parent=11 // pred_region
          %s131 = ssub.s32 128, 128
          %132 = vsyncadd [#allocation7], %s131
          %s134 = sshll.u32 [#allocation6], 4
          %s135 = int_to_ptr.vmem [resolvable:$true] %s134
          %137 = dma.hbm_to_vmem [thread:$0]  %s1, 128, %s135, [#allocation7]
        $region16: #{discriminator_forward.9} parent=11 // pred_fallthru
          _
        // Predicated region
        $region17: #{discriminator_forward.9} parent=11 // pred_check
          %p138 = pneg %p86
        $region18: #{discriminator_forward.9} parent=11 // pred_check_branch
          %140 = sbr.rel (%p138) target = $region20
        $region19: #{discriminator_forward.9} parent=11 // pred_region
          _
        $region20: #{discriminator_forward.9} parent=11 // pred_fallthru
          _
      $region12: #{discriminator_forward.9} parent=5 // pred_fallthru
        _
      %p141 = scmp.lt.s32.totalorder %s18, 2
      // Predicated region
      $region21: #{discriminator_forward.9} parent=5 // pred_check
        %p142 = pneg %p141
      $region22: #{discriminator_forward.9} parent=5 // pred_check_branch
        %144 = sbr.rel (%p142) target = $region24
      $region23: #{discriminator_forward.9} parent=5 // pred_region
        // Predicated region
        $region25: #{discriminator_forward.9} parent=23 // pred_check
          %p145 = pneg %p38
        $region26: #{discriminator_forward.9} parent=23 // pred_check_branch
          %147 = sbr.rel (%p145) target = $region28
        $region27: #{discriminator_forward.9} parent=23 // pred_region
          %s148 = sand.u32 %s28, 1
          %s149 = scalar_lea.sflag [#allocation4], %s148
          %s150 = sand.u32 %s28, 1
          %s151 = smul.addr %s150, 512
          %s152 = scalar_lea.vmem [#allocation3], %s151
          %s154 = ssub.s32 8192, 8192
          %155 = vsyncadd %s149, %s154
          %s156 = smul.addr %s18, 128
          %s157 = smul.addr %s156, 64
          %s158 = scalar_lea.hbm %s0, %s157
          %s159 = sshll.u32 %s152, 4
          %s160 = int_to_ptr.vmem [resolvable:$true] %s159
          %165 = dma.hbm_to_vmem [thread:$0]  %s158, 8192, %s160, %s149, 64, 64, 4
        $region28: #{discriminator_forward.9} parent=23 // pred_fallthru
          _
      $region24: #{discriminator_forward.9} parent=5 // pred_fallthru
        _
      %p166 = scmp.le.s32.totalorder 1, %s18
      %p167 = scmp.lt.s32.totalorder %s18, 3
      %p168 = pnand %p166, %p167
      %p169 = pneg %p168
      // Predicated region
      $region29: #{discriminator_forward.9} parent=5 // pred_check
        _
      $region30: #{discriminator_forward.9} parent=5 // pred_check_branch
        %171 = sbr.rel (%p168) target = $region32
      $region31: #{discriminator_forward.9} parent=5 // pred_region
        %s172 = ssub.s32 %s18, 1
        %s173 = sand.u32 %s31, 1
        %s174 = scalar_lea.sflag [#allocation4], %s173
        %s175 = sand.u32 %s31, 1
        %s176 = smul.addr %s175, 512
        %s177 = scalar_lea.vmem [#allocation3], %s176
        // Predicated region
        $region33: #{discriminator_forward.9} parent=31 // pred_check
          %p178 = pneg %p44
        $region34: #{discriminator_forward.9} parent=31 // pred_check_branch
          %180 = sbr.rel (%p178) target = $region36
        $region35: #{discriminator_forward.9} parent=31 // pred_region
          %181 = dma.done %s174, 8192
        $region36: #{discriminator_forward.9} parent=31 // pred_fallthru
          _
        // Predicated region
        $region37: #{discriminator_forward.9} parent=31 // pred_check
          %p182 = pneg %p65
        $region38: #{discriminator_forward.9} parent=31 // pred_check_branch
          %184 = sbr.rel (%p182) target = $region40
        $region39: #{discriminator_forward.9} parent=31 // pred_region
          %185 = dma.done [#allocation7], 128
        $region40: #{discriminator_forward.9} parent=31 // pred_fallthru
          _
        %s186 = sand.u32 %s31, 1
        %s187 = scalar_lea.sflag [#allocation4], %s186
        %s188 = sand.u32 %s31, 1
        %s189 = smul.addr %s188, 512
        %s190 = scalar_lea.vmem [#allocation3], %s189
        %p191 = pneg %p44
        %p192 = pneg %p41
        %p193 = pneg %p65
        %p194 = pneg %p62
        %p195 = pneg %p86
        %p196 = pneg %p83
        %p197 = pneg %p112
        %p198 = pneg %p109
        %s199 = sand.u32 %s99, 1
        %s200 = scalar_lea.sflag [#allocation5], %s199
        %s201 = sand.u32 %s99, 1
        %s202 = scalar_lea.vmem [#allocation8], %s201
        %v204 = vld [vmem:[#allocation6] sm:$0xff]
        %v205 = vld [vmem:[%s177] sm:$0xf]
        %v206 = vld [vmem:[%s177 + $0x4] sm:$0xf]
        %v207 = vld [vmem:[%s177 + $0x8] sm:$0xf]
        %v208 = vld [vmem:[%s177 + $0xc] sm:$0xf]
        %v209 = vld [vmem:[%s177 + $0x10] sm:$0xf]
        %v210 = vld [vmem:[%s177 + $0x14] sm:$0xf]
        %v211 = vld [vmem:[%s177 + $0x18] sm:$0xf]
        %v212 = vld [vmem:[%s177 + $0x1c] sm:$0xf]
        %v213 = vld [vmem:[%s177 + $0x20] sm:$0xf]
        %v214 = vld [vmem:[%s177 + $0x24] sm:$0xf]
        %v215 = vld [vmem:[%s177 + $0x28] sm:$0xf]
        %v216 = vld [vmem:[%s177 + $0x2c] sm:$0xf]
        %v217 = vld [vmem:[%s177 + $0x30] sm:$0xf]
        %v218 = vld [vmem:[%s177 + $0x34] sm:$0xf]
        %v219 = vld [vmem:[%s177 + $0x38] sm:$0xf]
        %v220 = vld [vmem:[%s177 + $0x3c] sm:$0xf]
        %v221 = vld [vmem:[%s177 + $0x40] sm:$0xf]
        %v222 = vld [vmem:[%s177 + $0x44] sm:$0xf]
        %v223 = vld [vmem:[%s177 + $0x48] sm:$0xf]
        %v224 = vld [vmem:[%s177 + $0x4c] sm:$0xf]
        %v225 = vld [vmem:[%s177 + $0x50] sm:$0xf]
        %v226 = vld [vmem:[%s177 + $0x54] sm:$0xf]
        %v227 = vld [vmem:[%s177 + $0x58] sm:$0xf]
        %v228 = vld [vmem:[%s177 + $0x5c] sm:$0xf]
        %v229 = vld [vmem:[%s177 + $0x60] sm:$0xf]
        %v230 = vld [vmem:[%s177 + $0x64] sm:$0xf]
        %v231 = vld [vmem:[%s177 + $0x68] sm:$0xf]
        %v232 = vld [vmem:[%s177 + $0x6c] sm:$0xf]
        %v233 = vld [vmem:[%s177 + $0x70] sm:$0xf]
        %v234 = vld [vmem:[%s177 + $0x74] sm:$0xf]
        %v235 = vld [vmem:[%s177 + $0x78] sm:$0xf]
        %v236 = vld [vmem:[%s177 + $0x7c] sm:$0xf]
        %v237 = vld [vmem:[%s177 + $0x80] sm:$0xf]
        %v238 = vld [vmem:[%s177 + $0x84] sm:$0xf]
        %v239 = vld [vmem:[%s177 + $0x88] sm:$0xf]
        %v240 = vld [vmem:[%s177 + $0x8c] sm:$0xf]
        %v241 = vld [vmem:[%s177 + $0x90] sm:$0xf]
        %v242 = vld [vmem:[%s177 + $0x94] sm:$0xf]
        %v243 = vld [vmem:[%s177 + $0x98] sm:$0xf]
        %v244 = vld [vmem:[%s177 + $0x9c] sm:$0xf]
        %v245 = vld [vmem:[%s177 + $0xa0] sm:$0xf]
        %v246 = vld [vmem:[%s177 + $0xa4] sm:$0xf]
        %v247 = vld [vmem:[%s177 + $0xa8] sm:$0xf]
        %v248 = vld [vmem:[%s177 + $0xac] sm:$0xf]
        %v249 = vld [vmem:[%s177 + $0xb0] sm:$0xf]
        %v250 = vld [vmem:[%s177 + $0xb4] sm:$0xf]
        %v251 = vld [vmem:[%s177 + $0xb8] sm:$0xf]
        %v252 = vld [vmem:[%s177 + $0xbc] sm:$0xf]
        %v253 = vld [vmem:[%s177 + $0xc0] sm:$0xf]
        %v254 = vld [vmem:[%s177 + $0xc4] sm:$0xf]
        %v255 = vld [vmem:[%s177 + $0xc8] sm:$0xf]
        %v256 = vld [vmem:[%s177 + $0xcc] sm:$0xf]
        %v257 = vld [vmem:[%s177 + $0xd0] sm:$0xf]
        %v258 = vld [vmem:[%s177 + $0xd4] sm:$0xf]
        %v259 = vld [vmem:[%s177 + $0xd8] sm:$0xf]
        %v260 = vld [vmem:[%s177 + $0xdc] sm:$0xf]
        %v261 = vld [vmem:[%s177 + $0xe0] sm:$0xf]
        %v262 = vld [vmem:[%s177 + $0xe4] sm:$0xf]
        %v263 = vld [vmem:[%s177 + $0xe8] sm:$0xf]
        %v264 = vld [vmem:[%s177 + $0xec] sm:$0xf]
        %v265 = vld [vmem:[%s177 + $0xf0] sm:$0xf]
        %v266 = vld [vmem:[%s177 + $0xf4] sm:$0xf]
        %v267 = vld [vmem:[%s177 + $0xf8] sm:$0xf]
        %v268 = vld [vmem:[%s177 + $0xfc] sm:$0xf]
        %v269 = vld [vmem:[%s177 + $0x100] sm:$0xf]
        %v270 = vld [vmem:[%s177 + $0x104] sm:$0xf]
        %v271 = vld [vmem:[%s177 + $0x108] sm:$0xf]
        %v272 = vld [vmem:[%s177 + $0x10c] sm:$0xf]
        %v273 = vld [vmem:[%s177 + $0x110] sm:$0xf]
        %v274 = vld [vmem:[%s177 + $0x114] sm:$0xf]
        %v275 = vld [vmem:[%s177 + $0x118] sm:$0xf]
        %v276 = vld [vmem:[%s177 + $0x11c] sm:$0xf]
        %v277 = vld [vmem:[%s177 + $0x120] sm:$0xf]
        %v278 = vld [vmem:[%s177 + $0x124] sm:$0xf]
        %v279 = vld [vmem:[%s177 + $0x128] sm:$0xf]
        %v280 = vld [vmem:[%s177 + $0x12c] sm:$0xf]
        %v281 = vld [vmem:[%s177 + $0x130] sm:$0xf]
        %v282 = vld [vmem:[%s177 + $0x134] sm:$0xf]
        %v283 = vld [vmem:[%s177 + $0x138] sm:$0xf]
        %v284 = vld [vmem:[%s177 + $0x13c] sm:$0xf]
        %v285 = vld [vmem:[%s177 + $0x140] sm:$0xf]
        %v286 = vld [vmem:[%s177 + $0x144] sm:$0xf]
        %v287 = vld [vmem:[%s177 + $0x148] sm:$0xf]
        %v288 = vld [vmem:[%s177 + $0x14c] sm:$0xf]
        %v289 = vld [vmem:[%s177 + $0x150] sm:$0xf]
        %v290 = vld [vmem:[%s177 + $0x154] sm:$0xf]
        %v291 = vld [vmem:[%s177 + $0x158] sm:$0xf]
        %v292 = vld [vmem:[%s177 + $0x15c] sm:$0xf]
        %v293 = vld [vmem:[%s177 + $0x160] sm:$0xf]
        %v294 = vld [vmem:[%s177 + $0x164] sm:$0xf]
        %v295 = vld [vmem:[%s177 + $0x168] sm:$0xf]
        %v296 = vld [vmem:[%s177 + $0x16c] sm:$0xf]
        %v297 = vld [vmem:[%s177 + $0x170] sm:$0xf]
        %v298 = vld [vmem:[%s177 + $0x174] sm:$0xf]
        %v299 = vld [vmem:[%s177 + $0x178] sm:$0xf]
        %v300 = vld [vmem:[%s177 + $0x17c] sm:$0xf]
        %v301 = vld [vmem:[%s177 + $0x180] sm:$0xf]
        %v302 = vld [vmem:[%s177 + $0x184] sm:$0xf]
        %v303 = vld [vmem:[%s177 + $0x188] sm:$0xf]
        %v304 = vld [vmem:[%s177 + $0x18c] sm:$0xf]
        %v305 = vld [vmem:[%s177 + $0x190] sm:$0xf]
        %v306 = vld [vmem:[%s177 + $0x194] sm:$0xf]
        %v307 = vld [vmem:[%s177 + $0x198] sm:$0xf]
        %v308 = vld [vmem:[%s177 + $0x19c] sm:$0xf]
        %v309 = vld [vmem:[%s177 + $0x1a0] sm:$0xf]
        %v310 = vld [vmem:[%s177 + $0x1a4] sm:$0xf]
        %v311 = vld [vmem:[%s177 + $0x1a8] sm:$0xf]
        %v312 = vld [vmem:[%s177 + $0x1ac] sm:$0xf]
        %v313 = vld [vmem:[%s177 + $0x1b0] sm:$0xf]
        %v314 = vld [vmem:[%s177 + $0x1b4] sm:$0xf]
        %v315 = vld [vmem:[%s177 + $0x1b8] sm:$0xf]
        %v316 = vld [vmem:[%s177 + $0x1bc] sm:$0xf]
        %v317 = vld [vmem:[%s177 + $0x1c0] sm:$0xf]
        %v318 = vld [vmem:[%s177 + $0x1c4] sm:$0xf]
        %v319 = vld [vmem:[%s177 + $0x1c8] sm:$0xf]
        %v320 = vld [vmem:[%s177 + $0x1cc] sm:$0xf]
        %v321 = vld [vmem:[%s177 + $0x1d0] sm:$0xf]
        %v322 = vld [vmem:[%s177 + $0x1d4] sm:$0xf]
        %v323 = vld [vmem:[%s177 + $0x1d8] sm:$0xf]
        %v324 = vld [vmem:[%s177 + $0x1dc] sm:$0xf]
        %v325 = vld [vmem:[%s177 + $0x1e0] sm:$0xf]
        %v326 = vld [vmem:[%s177 + $0x1e4] sm:$0xf]
        %v327 = vld [vmem:[%s177 + $0x1e8] sm:$0xf]
        %v328 = vld [vmem:[%s177 + $0x1ec] sm:$0xf]
        %v329 = vld [vmem:[%s177 + $0x1f0] sm:$0xf]
        %v330 = vld [vmem:[%s177 + $0x1f4] sm:$0xf]
        %v331 = vld [vmem:[%s177 + $0x1f8] sm:$0xf]
        %v332 = vld [vmem:[%s177 + $0x1fc] sm:$0xf]
        %v333 = vld [vmem:[#allocation2] sm:$0x1]
        %335 = vset.pattern.permute.xlu0 0
        %336 = vperm.xlu0 %335, %v333
        %v337 = vpop.permute.xlu0 %336
        %v339 = vlaneseq
        %v340 = vshrl.u32 %v339, 7
        %v341 = vsub.s32 0, %v340
        %v342 = vrot.slane %v337, %v341
        %v344 = vcombine.high %v204, %v204
        %v346 = vunpack.c.l.s4 1966171168
        %v347 = vunpack.c.0.s8 %v346
        %v348 = vlaneseq
        %v349 = vshrl.u32 %v348, 7
        %v350 = vsub.s32 %v347, %v349
        %v351 = vrot.slane %v204, %v350
        %v353 = vunpack.c.l.s4 1966171168
        %v354 = vunpack.c.0.s8 %v353
        %v355 = vlaneseq
        %v356 = vshrl.u32 %v355, 7
        %v357 = vsub.s32 %v354, %v356
        %v358 = vrot.slane %v344, %v357
        %v359 = vcombine.high %v351, %v351
        %v360 = vcombine.high %v358, %v358
        %v362 = vunpack.c.l.s4 1966171168
        %v363 = vunpack.c.0.s8 %v362
        %v364 = vlaneseq
        %v365 = vshrl.u32 %v364, 7
        %v366 = vsub.s32 %v363, %v365
        %v367 = vrot.slane %v351, %v366
        %v369 = vunpack.c.l.s4 1966171168
        %v370 = vunpack.c.0.s8 %v369
        %v371 = vlaneseq
        %v372 = vshrl.u32 %v371, 7
        %v373 = vsub.s32 %v370, %v372
        %v374 = vrot.slane %v358, %v373
        %v376 = vunpack.c.l.s4 1966171168
        %v377 = vunpack.c.0.s8 %v376
        %v378 = vlaneseq
        %v379 = vshrl.u32 %v378, 7
        %v380 = vsub.s32 %v377, %v379
        %v381 = vrot.slane %v359, %v380
        %v383 = vunpack.c.l.s4 1966171168
        %v384 = vunpack.c.0.s8 %v383
        %v385 = vlaneseq
        %v386 = vshrl.u32 %v385, 7
        %v387 = vsub.s32 %v384, %v386
        %v388 = vrot.slane %v360, %v387
        %v389 = vcombine.high %v367, %v367
        %v390 = vcombine.high %v374, %v374
        %v391 = vcombine.high %v381, %v381
        %v392 = vcombine.high %v388, %v388
        %v529 = vunpack.c.l.b16 %v205
        %v530 = vunpack.c.l.b16 %v206
        %v531 = vunpack.c.l.b16 %v207
        %v532 = vunpack.c.l.b16 %v208
        %v533 = vunpack.c.l.b16 %v209
        %v534 = vunpack.c.l.b16 %v210
        %v535 = vunpack.c.l.b16 %v211
        %v536 = vunpack.c.l.b16 %v212
        %v537 = vunpack.c.l.b16 %v213
        %v538 = vunpack.c.l.b16 %v214
        %v539 = vunpack.c.l.b16 %v215
        %v540 = vunpack.c.l.b16 %v216
        %v541 = vunpack.c.l.b16 %v217
        %v542 = vunpack.c.l.b16 %v218
        %v543 = vunpack.c.l.b16 %v219
        %v544 = vunpack.c.l.b16 %v220
        %v545 = vunpack.c.l.b16 %v221
        %v546 = vunpack.c.l.b16 %v222
        %v547 = vunpack.c.l.b16 %v223
        %v548 = vunpack.c.l.b16 %v224
        %v549 = vunpack.c.l.b16 %v225
        %v550 = vunpack.c.l.b16 %v226
        %v551 = vunpack.c.l.b16 %v227
        %v552 = vunpack.c.l.b16 %v228
        %v553 = vunpack.c.l.b16 %v229
        %v554 = vunpack.c.l.b16 %v230
        %v555 = vunpack.c.l.b16 %v231
        %v556 = vunpack.c.l.b16 %v232
        %v557 = vunpack.c.l.b16 %v233
        %v558 = vunpack.c.l.b16 %v234
        %v559 = vunpack.c.l.b16 %v235
        %v560 = vunpack.c.l.b16 %v236
        %v561 = vunpack.c.l.b16 %v237
        %v562 = vunpack.c.l.b16 %v238
        %v563 = vunpack.c.l.b16 %v239
        %v564 = vunpack.c.l.b16 %v240
        %v565 = vunpack.c.l.b16 %v241
        %v566 = vunpack.c.l.b16 %v242
        %v567 = vunpack.c.l.b16 %v243
        %v568 = vunpack.c.l.b16 %v244
        %v569 = vunpack.c.l.b16 %v245
        %v570 = vunpack.c.l.b16 %v246
        %v571 = vunpack.c.l.b16 %v247
        %v572 = vunpack.c.l.b16 %v248
        %v573 = vunpack.c.l.b16 %v249
        %v574 = vunpack.c.l.b16 %v250
        %v575 = vunpack.c.l.b16 %v251
        %v576 = vunpack.c.l.b16 %v252
        %v577 = vunpack.c.l.b16 %v253
        %v578 = vunpack.c.l.b16 %v254
        %v579 = vunpack.c.l.b16 %v255
        %v580 = vunpack.c.l.b16 %v256
        %v581 = vunpack.c.l.b16 %v257
        %v582 = vunpack.c.l.b16 %v258
        %v583 = vunpack.c.l.b16 %v259
        %v584 = vunpack.c.l.b16 %v260
        %v585 = vunpack.c.l.b16 %v261
        %v586 = vunpack.c.l.b16 %v262
        %v587 = vunpack.c.l.b16 %v263
        %v588 = vunpack.c.l.b16 %v264
        %v589 = vunpack.c.l.b16 %v265
        %v590 = vunpack.c.l.b16 %v266
        %v591 = vunpack.c.l.b16 %v267
        %v592 = vunpack.c.l.b16 %v268
        %v593 = vunpack.c.l.b16 %v269
        %v594 = vunpack.c.l.b16 %v270
        %v595 = vunpack.c.l.b16 %v271
        %v596 = vunpack.c.l.b16 %v272
        %v597 = vunpack.c.l.b16 %v273
        %v598 = vunpack.c.l.b16 %v274
        %v599 = vunpack.c.l.b16 %v275
        %v600 = vunpack.c.l.b16 %v276
        %v601 = vunpack.c.l.b16 %v277
        %v602 = vunpack.c.l.b16 %v278
        %v603 = vunpack.c.l.b16 %v279
        %v604 = vunpack.c.l.b16 %v280
        %v605 = vunpack.c.l.b16 %v281
        %v606 = vunpack.c.l.b16 %v282
        %v607 = vunpack.c.l.b16 %v283
        %v608 = vunpack.c.l.b16 %v284
        %v609 = vunpack.c.l.b16 %v285
        %v610 = vunpack.c.l.b16 %v286
        %v611 = vunpack.c.l.b16 %v287
        %v612 = vunpack.c.l.b16 %v288
        %v613 = vunpack.c.l.b16 %v289
        %v614 = vunpack.c.l.b16 %v290
        %v615 = vunpack.c.l.b16 %v291
        %v616 = vunpack.c.l.b16 %v292
        %v617 = vunpack.c.l.b16 %v293
        %v618 = vunpack.c.l.b16 %v294
        %v619 = vunpack.c.l.b16 %v295
        %v620 = vunpack.c.l.b16 %v296
        %v621 = vunpack.c.l.b16 %v297
        %v622 = vunpack.c.l.b16 %v298
        %v623 = vunpack.c.l.b16 %v299
        %v624 = vunpack.c.l.b16 %v300
        %v625 = vunpack.c.l.b16 %v301
        %v626 = vunpack.c.l.b16 %v302
        %v627 = vunpack.c.l.b16 %v303
        %v628 = vunpack.c.l.b16 %v304
        %v629 = vunpack.c.l.b16 %v305
        %v630 = vunpack.c.l.b16 %v306
        %v631 = vunpack.c.l.b16 %v307
        %v632 = vunpack.c.l.b16 %v308
        %v633 = vunpack.c.l.b16 %v309
        %v634 = vunpack.c.l.b16 %v310
        %v635 = vunpack.c.l.b16 %v311
        %v636 = vunpack.c.l.b16 %v312
        %v637 = vunpack.c.l.b16 %v313
        %v638 = vunpack.c.l.b16 %v314
        %v639 = vunpack.c.l.b16 %v315
        %v640 = vunpack.c.l.b16 %v316
        %v641 = vunpack.c.l.b16 %v317
        %v642 = vunpack.c.l.b16 %v318
        %v643 = vunpack.c.l.b16 %v319
        %v644 = vunpack.c.l.b16 %v320
        %v645 = vunpack.c.l.b16 %v321
        %v646 = vunpack.c.l.b16 %v322
        %v647 = vunpack.c.l.b16 %v323
        %v648 = vunpack.c.l.b16 %v324
        %v649 = vunpack.c.l.b16 %v325
        %v650 = vunpack.c.l.b16 %v326
        %v651 = vunpack.c.l.b16 %v327
        %v652 = vunpack.c.l.b16 %v328
        %v653 = vunpack.c.l.b16 %v329
        %v654 = vunpack.c.l.b16 %v330
        %v655 = vunpack.c.l.b16 %v331
        %v656 = vunpack.c.l.b16 %v332
        %v657 = vpack.c.b16 %v530, %v529
        %v658 = vpack.c.b16 %v532, %v531
        %v659 = vpack.c.b16 %v534, %v533
        %v660 = vpack.c.b16 %v536, %v535
        %v661 = vpack.c.b16 %v538, %v537
        %v662 = vpack.c.b16 %v540, %v539
        %v663 = vpack.c.b16 %v542, %v541
        %v664 = vpack.c.b16 %v544, %v543
        %v665 = vpack.c.b16 %v546, %v545
        %v666 = vpack.c.b16 %v548, %v547
        %v667 = vpack.c.b16 %v550, %v549
        %v668 = vpack.c.b16 %v552, %v551
        %v669 = vpack.c.b16 %v554, %v553
        %v670 = vpack.c.b16 %v556, %v555
        %v671 = vpack.c.b16 %v558, %v557
        %v672 = vpack.c.b16 %v560, %v559
        %v673 = vpack.c.b16 %v562, %v561
        %v674 = vpack.c.b16 %v564, %v563
        %v675 = vpack.c.b16 %v566, %v565
        %v676 = vpack.c.b16 %v568, %v567
        %v677 = vpack.c.b16 %v570, %v569
        %v678 = vpack.c.b16 %v572, %v571
        %v679 = vpack.c.b16 %v574, %v573
        %v680 = vpack.c.b16 %v576, %v575
        %v681 = vpack.c.b16 %v578, %v577
        %v682 = vpack.c.b16 %v580, %v579
        %v683 = vpack.c.b16 %v582, %v581
        %v684 = vpack.c.b16 %v584, %v583
        %v685 = vpack.c.b16 %v586, %v585
        %v686 = vpack.c.b16 %v588, %v587
        %v687 = vpack.c.b16 %v590, %v589
        %v688 = vpack.c.b16 %v592, %v591
        %v689 = vpack.c.b16 %v594, %v593
        %v690 = vpack.c.b16 %v596, %v595
        %v691 = vpack.c.b16 %v598, %v597
        %v692 = vpack.c.b16 %v600, %v599
        %v693 = vpack.c.b16 %v602, %v601
        %v694 = vpack.c.b16 %v604, %v603
        %v695 = vpack.c.b16 %v606, %v605
        %v696 = vpack.c.b16 %v608, %v607
        %v697 = vpack.c.b16 %v610, %v609
        %v698 = vpack.c.b16 %v612, %v611
        %v699 = vpack.c.b16 %v614, %v613
        %v700 = vpack.c.b16 %v616, %v615
        %v701 = vpack.c.b16 %v618, %v617
        %v702 = vpack.c.b16 %v620, %v619
        %v703 = vpack.c.b16 %v622, %v621
        %v704 = vpack.c.b16 %v624, %v623
        %v705 = vpack.c.b16 %v626, %v625
        %v706 = vpack.c.b16 %v628, %v627
        %v707 = vpack.c.b16 %v630, %v629
        %v708 = vpack.c.b16 %v632, %v631
        %v709 = vpack.c.b16 %v634, %v633
        %v710 = vpack.c.b16 %v636, %v635
        %v711 = vpack.c.b16 %v638, %v637
        %v712 = vpack.c.b16 %v640, %v639
        %v713 = vpack.c.b16 %v642, %v641
        %v714 = vpack.c.b16 %v644, %v643
        %v715 = vpack.c.b16 %v646, %v645
        %v716 = vpack.c.b16 %v648, %v647
        %v717 = vpack.c.b16 %v650, %v649
        %v718 = vpack.c.b16 %v652, %v651
        %v719 = vpack.c.b16 %v654, %v653
        %v720 = vpack.c.b16 %v656, %v655
        %785 = vmatprep.subr.bf16.mxu0 0
        %786 = vmatpush1.bf16.msra.mxu0 %v657
        %787 = vmatprep.subr.bf16.mxu0 0
        %788 = vmatpush1.bf16.msra.mxu0 %v658
        %789 = vmatprep.subr.bf16.mxu0 0
        %790 = vmatpush1.bf16.msra.mxu0 %v659
        %791 = vmatprep.subr.bf16.mxu0 0
        %792 = vmatpush1.bf16.msra.mxu0 %v660
        %793 = vmatprep.subr.bf16.mxu0 0
        %794 = vmatpush1.bf16.msra.mxu0 %v661
        %795 = vmatprep.subr.bf16.mxu0 0
        %796 = vmatpush1.bf16.msra.mxu0 %v662
        %797 = vmatprep.subr.bf16.mxu0 0
        %798 = vmatpush1.bf16.msra.mxu0 %v663
        %799 = vmatprep.subr.bf16.mxu0 0
        %800 = vmatpush1.bf16.msra.mxu0 %v664
        %801 = vmatprep.subr.bf16.mxu0 0
        %802 = vmatpush1.bf16.msra.mxu0 %v665
        %803 = vmatprep.subr.bf16.mxu0 0
        %804 = vmatpush1.bf16.msra.mxu0 %v666
        %805 = vmatprep.subr.bf16.mxu0 0
        %806 = vmatpush1.bf16.msra.mxu0 %v667
        %807 = vmatprep.subr.bf16.mxu0 0
        %808 = vmatpush1.bf16.msra.mxu0 %v668
        %809 = vmatprep.subr.bf16.mxu0 0
        %810 = vmatpush1.bf16.msra.mxu0 %v669
        %811 = vmatprep.subr.bf16.mxu0 0
        %812 = vmatpush1.bf16.msra.mxu0 %v670
        %813 = vmatprep.subr.bf16.mxu0 0
        %814 = vmatpush1.bf16.msra.mxu0 %v671
        %815 = vmatprep.subr.bf16.mxu0 0
        %816 = vmatpush1.bf16.msra.mxu0 %v672
        %817 = vmatprep.mubr.bf16.mxu0 %v381
        %818 = vmatmul.mubr.bf16.gmra.mrb[0].mxu0 %v367
        %v819 = vpop.f32.mrb[0].mxu0
        %v820 = vadd.f32 %v342, %v819
        %v821 = vpop.f32.mrb[0].mxu0
        %v822 = vpop.f32.mrb[0].mxu0
        %v823 = vpop.f32.mrb[0].mxu0
        %824 = vdwg.mxu0
        %825 = vmatprep.subr.bf16.mxu0 0
        %826 = vmatpush1.bf16.msra.mxu0 %v673
        %827 = vmatprep.subr.bf16.mxu0 0
        %828 = vmatpush1.bf16.msra.mxu0 %v674
        %829 = vmatprep.subr.bf16.mxu0 0
        %830 = vmatpush1.bf16.msra.mxu0 %v675
        %831 = vmatprep.subr.bf16.mxu0 0
        %832 = vmatpush1.bf16.msra.mxu0 %v676
        %833 = vmatprep.subr.bf16.mxu0 0
        %834 = vmatpush1.bf16.msra.mxu0 %v677
        %835 = vmatprep.subr.bf16.mxu0 0
        %836 = vmatpush1.bf16.msra.mxu0 %v678
        %837 = vmatprep.subr.bf16.mxu0 0
        %838 = vmatpush1.bf16.msra.mxu0 %v679
        %839 = vmatprep.subr.bf16.mxu0 0
        %840 = vmatpush1.bf16.msra.mxu0 %v680
        %841 = vmatprep.subr.bf16.mxu0 0
        %842 = vmatpush1.bf16.msra.mxu0 %v681
        %843 = vmatprep.subr.bf16.mxu0 0
        %844 = vmatpush1.bf16.msra.mxu0 %v682
        %845 = vmatprep.subr.bf16.mxu0 0
        %846 = vmatpush1.bf16.msra.mxu0 %v683
        %847 = vmatprep.subr.bf16.mxu0 0
        %848 = vmatpush1.bf16.msra.mxu0 %v684
        %849 = vmatprep.subr.bf16.mxu0 0
        %850 = vmatpush1.bf16.msra.mxu0 %v685
        %851 = vmatprep.subr.bf16.mxu0 0
        %852 = vmatpush1.bf16.msra.mxu0 %v686
        %853 = vmatprep.subr.bf16.mxu0 0
        %854 = vmatpush1.bf16.msra.mxu0 %v687
        %855 = vmatprep.subr.bf16.mxu0 0
        %856 = vmatpush1.bf16.msra.mxu0 %v688
        %857 = vmatprep.mubr.bf16.mxu0 %v391
        %858 = vmatmul.mubr.bf16.gmra.mrb[0].mxu0 %v389
        %v859 = vpop.f32.mrb[0].mxu0
        %v860 = vadd.f32 %v820, %v859
        %v861 = vpop.f32.mrb[0].mxu0
        %v862 = vpop.f32.mrb[0].mxu0
        %v863 = vpop.f32.mrb[0].mxu0
        %864 = vdwg.mxu0
        %865 = vmatprep.subr.bf16.mxu0 0
        %866 = vmatpush1.bf16.msra.mxu0 %v689
        %867 = vmatprep.subr.bf16.mxu0 0
        %868 = vmatpush1.bf16.msra.mxu0 %v690
        %869 = vmatprep.subr.bf16.mxu0 0
        %870 = vmatpush1.bf16.msra.mxu0 %v691
        %871 = vmatprep.subr.bf16.mxu0 0
        %872 = vmatpush1.bf16.msra.mxu0 %v692
        %873 = vmatprep.subr.bf16.mxu0 0
        %874 = vmatpush1.bf16.msra.mxu0 %v693
        %875 = vmatprep.subr.bf16.mxu0 0
        %876 = vmatpush1.bf16.msra.mxu0 %v694
        %877 = vmatprep.subr.bf16.mxu0 0
        %878 = vmatpush1.bf16.msra.mxu0 %v695
        %879 = vmatprep.subr.bf16.mxu0 0
        %880 = vmatpush1.bf16.msra.mxu0 %v696
        %881 = vmatprep.subr.bf16.mxu0 0
        %882 = vmatpush1.bf16.msra.mxu0 %v697
        %883 = vmatprep.subr.bf16.mxu0 0
        %884 = vmatpush1.bf16.msra.mxu0 %v698
        %885 = vmatprep.subr.bf16.mxu0 0
        %886 = vmatpush1.bf16.msra.mxu0 %v699
        %887 = vmatprep.subr.bf16.mxu0 0
        %888 = vmatpush1.bf16.msra.mxu0 %v700
        %889 = vmatprep.subr.bf16.mxu0 0
        %890 = vmatpush1.bf16.msra.mxu0 %v701
        %891 = vmatprep.subr.bf16.mxu0 0
        %892 = vmatpush1.bf16.msra.mxu0 %v702
        %893 = vmatprep.subr.bf16.mxu0 0
        %894 = vmatpush1.bf16.msra.mxu0 %v703
        %895 = vmatprep.subr.bf16.mxu0 0
        %896 = vmatpush1.bf16.msra.mxu0 %v704
        %897 = vmatprep.mubr.bf16.mxu0 %v388
        %898 = vmatmul.mubr.bf16.gmra.mrb[0].mxu0 %v374
        %v899 = vpop.f32.mrb[0].mxu0
        %v900 = vadd.f32 %v860, %v899
        %v901 = vpop.f32.mrb[0].mxu0
        %v902 = vpop.f32.mrb[0].mxu0
        %v903 = vpop.f32.mrb[0].mxu0
        %904 = vdwg.mxu0
        %905 = vmatprep.subr.bf16.mxu0 0
        %906 = vmatpush1.bf16.msra.mxu0 %v705
        %907 = vmatprep.subr.bf16.mxu0 0
        %908 = vmatpush1.bf16.msra.mxu0 %v706
        %909 = vmatprep.subr.bf16.mxu0 0
        %910 = vmatpush1.bf16.msra.mxu0 %v707
        %911 = vmatprep.subr.bf16.mxu0 0
        %912 = vmatpush1.bf16.msra.mxu0 %v708
        %913 = vmatprep.subr.bf16.mxu0 0
        %914 = vmatpush1.bf16.msra.mxu0 %v709
        %915 = vmatprep.subr.bf16.mxu0 0
        %916 = vmatpush1.bf16.msra.mxu0 %v710
        %917 = vmatprep.subr.bf16.mxu0 0
        %918 = vmatpush1.bf16.msra.mxu0 %v711
        %919 = vmatprep.subr.bf16.mxu0 0
        %920 = vmatpush1.bf16.msra.mxu0 %v712
        %921 = vmatprep.subr.bf16.mxu0 0
        %922 = vmatpush1.bf16.msra.mxu0 %v713
        %923 = vmatprep.subr.bf16.mxu0 0
        %924 = vmatpush1.bf16.msra.mxu0 %v714
        %925 = vmatprep.subr.bf16.mxu0 0
        %926 = vmatpush1.bf16.msra.mxu0 %v715
        %927 = vmatprep.subr.bf16.mxu0 0
        %928 = vmatpush1.bf16.msra.mxu0 %v716
        %929 = vmatprep.subr.bf16.mxu0 0
        %930 = vmatpush1.bf16.msra.mxu0 %v717
        %931 = vmatprep.subr.bf16.mxu0 0
        %932 = vmatpush1.bf16.msra.mxu0 %v718
        %933 = vmatprep.subr.bf16.mxu0 0
        %934 = vmatpush1.bf16.msra.mxu0 %v719
        %935 = vmatprep.subr.bf16.mxu0 0
        %936 = vmatpush1.bf16.msra.mxu0 %v720
        %937 = vmatprep.mubr.bf16.mxu0 %v392
        %938 = vmatmul.mubr.bf16.gmra.mrb[0].mxu0 %v390
        %v939 = vpop.f32.mrb[0].mxu0
        %v940 = vadd.f32 %v900, %v939
        %v941 = vpop.f32.mrb[0].mxu0
        %v942 = vpop.f32.mrb[0].mxu0
        %v943 = vpop.f32.mrb[0].mxu0
        %944 = vdwg.mxu0
        %v945 = vxor.u32 %v940, 2147483648
        %v946 = vmul.f32 %v945, 1.442695
        %v947 = vpow.pop %v946
        %v948 = vadd.f32 %v947, 1.0
        %v949 = vrcp.pop %v948
        %v950 = vmul.f32 1.0, %v949
        %vm951 = vcmask 24576
        %952 = vst.msk [vmem:[%s202] sm:$0x1] %vm951, %v950
        %s953 = sand.u32 %s99, 1
        %s954 = scalar_lea.sflag [#allocation5], %s953
        %s955 = sand.u32 %s99, 1
        %s956 = scalar_lea.vmem [#allocation8], %s955
        // Predicated region
        $region41: #{discriminator_forward.9} parent=31 // pred_check
          %p957 = pneg %p109
        $region42: #{discriminator_forward.9} parent=31 // pred_check_branch
          %959 = sbr.rel (%p957) target = $region44
        $region43: #{discriminator_forward.9} parent=31 // pred_region
          %s961 = ssub.s32 16, 16
          %962 = vsyncadd %s954, %s961
          %s963 = smul.addr %s23, 16
          %s964 = scalar_lea.hbm %s3, %s963
          %s966 = sshll.u32 %s956, 4
          %s967 = int_to_ptr.vmem [resolvable:$true] %s966
          %969 = dma.vmem_to_hbm [thread:$0]  %s967, 16, %s964, %s954
        $region44: #{discriminator_forward.9} parent=31 // pred_fallthru
          _
      $region32: #{discriminator_forward.9} parent=5 // pred_fallthru
        _
      %p970 = scmp.le.s32.totalorder 2, %s18
      // Predicated region
      $region45: #{discriminator_forward.9} parent=5 // pred_check
        %p971 = pneg %p970
      $region46: #{discriminator_forward.9} parent=5 // pred_check_branch
        %973 = sbr.rel (%p971) target = $region48
      $region47: #{discriminator_forward.9} parent=5 // pred_region
        %s974 = ssub.s32 %s18, 2
        // Predicated region
        $region49: #{discriminator_forward.9} parent=47 // pred_check
          %p975 = pneg %p115
        $region50: #{discriminator_forward.9} parent=47 // pred_check_branch
          %977 = sbr.rel (%p975) target = $region52
        $region51: #{discriminator_forward.9} parent=47 // pred_region
          %s978 = sand.u32 %s100, 1
          %s979 = scalar_lea.sflag [#allocation5], %s978
          %s980 = sand.u32 %s100, 1
          %s981 = scalar_lea.vmem [#allocation8], %s980
          %982 = dma.done %s979, 16
        $region52: #{discriminator_forward.9} parent=47 // pred_fallthru
          _
      $region48: #{discriminator_forward.9} parent=5 // pred_fallthru
        _
    $region6: #{discriminator_forward.9} parent=1 // loop_footer
      %s22 = sadd.s32 1, %s18
    $region7: #{discriminator_forward.9} parent=1 // loop_footer_branch
      %17 = sbr.rel target = $region3
    $region8: #{discriminator_forward.9} parent=1 // loop_exit
      _
    %983 = vsyncpa [#allocation4], 1
    %s984 = scalar_lea.sflag [#allocation4], 1
    %985 = vsyncpa %s984, 1
    %986 = vsyncpa [#allocation7], 1
    %987 = vsyncpa [#allocation5], 1
    %s988 = scalar_lea.sflag [#allocation5], 1
    %989 = vsyncpa %s988, 1

</llo_original>
